<compile_context>
chip_gen: v7x
topology: tpu7x:2x2x1
jax: 0.10.0
libtpu: 0.0.40
codegen_flags: <defaults>
</compile_context>

<pallas_src>
import functools
from typing import NamedTuple

import jax
import jax.numpy as jnp
from jax.experimental import pallas as pl
from jax.experimental.pallas import tpu as pltpu


def _round_up(x, m):
    return ((x + m - 1) // m) * m


# -----------------------------------------------------------------------------
# Fused GRU layer kernel.
#
# Grid = (batch_blocks, time_chunks); batch axis 'parallel' (megacore capable),
# time axis 'arbitrary' (serial hidden-state carry in VMEM scratch).
# Per grid step:
#   1. gi = x_chunk @ W_ih + b_gi  -> one [chunk*bblk, Din] x [Din, 3H] MXU
#      matmul into VMEM scratch (no HBM round trip for gi).
#   2. fori_loop over the chunk: only h @ W_hh + gate math on the serial path.
# NOTE: hN is written once per batch block (last time chunk) under pl.when;
# this relies on the time axis being 'arbitrary' with a constant hN index map.
# -----------------------------------------------------------------------------
def _gru_layer_kernel(lens_ref, x_ref, h0_ref, wih_ref, bgi_ref, whh_ref,
                      bhn_ref, y_ref, hN_ref, gi_scratch, h_scratch, *,
                      hidden_pad, chunk, bblk, unroll):
    c = pl.program_id(1)
    Hp = hidden_pad

    @pl.when(c == 0)
    def _init():
        h_scratch[...] = h0_ref[...].astype(jnp.float32)

    # Hoisted, time-parallel half of the GRU for this chunk (one big matmul).
    # b_ih (all gates) + b_hh (r, z gates) are pre-folded into bgi.
    gi_scratch[...] = (
        jnp.dot(x_ref[...], wih_ref[...], preferred_element_type=jnp.float32)
        + bgi_ref[...]
    )

    whh = whh_ref[...]            # [Hp, 3Hp]  bf16 (MXU input)
    bhn = bhn_ref[...]            # [1, Hp]    f32 (b_hh of the n gate)
    lens = lens_ref[...]          # [bblk, 1]  int32
    t_base = c * chunk

    def step(tt, h_prev):
        row = pl.multiple_of(tt * bblk, bblk)
        gi = gi_scratch[pl.ds(row, bblk), :]                      # [bblk, 3Hp]
        gh = jnp.dot(h_prev.astype(whh.dtype), whh,
                     preferred_element_type=jnp.float32)          # [bblk, 3Hp]
        # PyTorch GRU gate order [r | z | n]
        r = jax.nn.sigmoid(gi[:, 0:Hp] + gh[:, 0:Hp])
        z = jax.nn.sigmoid(gi[:, Hp:2 * Hp] + gh[:, Hp:2 * Hp])
        n = jnp.tanh(gi[:, 2 * Hp:3 * Hp] + r * (gh[:, 2 * Hp:3 * Hp] + bhn))
        h_new = n + z * (h_prev - n)                  # == (1-z)*n + z*h_prev

        # packed-sequence semantics: hidden updates only on valid steps,
        # padded steps emit zeros (pad_packed_sequence padding value).
        valid = (t_base + tt) < lens                              # [bblk, 1]
        h_next = jnp.where(valid, h_new, h_prev)
        y_ref[pl.ds(row, bblk), :] = jnp.where(valid, h_new, 0.0).astype(
            y_ref.dtype)
        return h_next

    h_final = jax.lax.fori_loop(0, chunk, step, h_scratch[...], unroll=unroll)
    h_scratch[...] = h_final

    @pl.when(c == pl.num_programs(1) - 1)
    def _finalize():
        hN_ref[...] = h_final.astype(hN_ref.dtype)


def gru_layer(x_blk, lens_b1, h0, wih, bgi, whh, bhn, *, chunk, bblk,
              n_bblk, n_chunks, out_dtype):
    """One GRU layer.

    x_blk:   [n_bblk*n_chunks*chunk*bblk, Din]   blocked layout (see forward)
    lens_b1: [B_pad, 1] int32 (padded rows have length 0)
    h0:      [B_pad, H_pad] f32
    Returns (y_blk [rows, H_pad] out_dtype, h_last [B_pad, H_pad] f32).
    """
    rows, din = x_blk.shape
    hp = whh.shape[0]
    g = 3 * hp
    b_pad = n_bblk * bblk
    tile = chunk * bblk
    unroll = True if chunk <= 16 else 8

    kernel = functools.partial(_gru_layer_kernel, hidden_pad=hp, chunk=chunk,
                               bblk=bblk, unroll=unroll)

    def xy_map(bb, c):
        return (bb * n_chunks + c, 0)

    y_blk, h_last = pl.pallas_call(
        kernel,
        out_shape=(
            jax.ShapeDtypeStruct((rows, hp), out_dtype),
            jax.ShapeDtypeStruct((b_pad, hp), jnp.float32),
        ),
        grid_spec=pltpu.PrefetchScalarGridSpec(
            num_scalar_prefetch=0,
            grid=(n_bblk, n_chunks),
            in_specs=[
                pl.BlockSpec((bblk, 1), lambda bb, c: (bb, 0)),    # lens
                pl.BlockSpec((tile, din), xy_map),                 # x chunk
                pl.BlockSpec((bblk, hp), lambda bb, c: (bb, 0)),   # h0
                pl.BlockSpec((din, g), lambda bb, c: (0, 0)),      # W_ih
                pl.BlockSpec((1, g), lambda bb, c: (0, 0)),        # b_gi
                pl.BlockSpec((hp, g), lambda bb, c: (0, 0)),       # W_hh
                pl.BlockSpec((1, hp), lambda bb, c: (0, 0)),       # b_hh_n
            ],
            out_specs=[
                pl.BlockSpec((tile, hp), xy_map),                  # y chunk
                pl.BlockSpec((bblk, hp), lambda bb, c: (bb, 0)),   # last hidden
            ],
            scratch_shapes=[
                pltpu.VMEM((tile, g), jnp.float32),    # fused gi for the chunk
                pltpu.VMEM((bblk, hp), jnp.float32),   # hidden carry
            ],
        ),
        compiler_params=pltpu.CompilerParams(
            dimension_semantics=("parallel", "arbitrary")),
    )(lens_b1, x_blk, h0, wih, bgi, whh, bhn)
    return y_blk, h_last


# -----------------------------------------------------------------------------
# EncoderRNN config / params / forward
# -----------------------------------------------------------------------------
class EncoderConfig(NamedTuple):
    vocab_size: int
    embed_size: int
    hidden_size: int
    hidden_pad: int
    num_layers: int
    pad_idx: int


def init_encoder(key, vocab_size, embed_size, hidden_size, num_layers,
                 pad_idx=0, weights_dtype=jnp.bfloat16):
    H = hidden_size
    H_pad = _round_up(H, 128)
    keys = jax.random.split(key, 1 + 4 * num_layers)

    emb = jax.random.normal(keys[0], (vocab_size, embed_size), jnp.float32)
    emb = emb.at[pad_idx].set(0.0)          # nn.Embedding padding_idx row = 0

    bound = float(hidden_size) ** -0.5
    layers = []
    for l in range(num_layers):
        k_ih, k_hh, k_bih, k_bhh = keys[1 + 4 * l: 5 + 4 * l]
        in_dim = embed_size if l == 0 else H
        in_pad = embed_size if l == 0 else H_pad

        # logical parameters (transposed vs PyTorch so kernels do x @ W)
        wih = jax.random.uniform(k_ih, (in_dim, 3, H), jnp.float32, -bound, bound)
        whh = jax.random.uniform(k_hh, (H, 3, H), jnp.float32, -bound, bound)
        bih = jax.random.uniform(k_bih, (3, H), jnp.float32, -bound, bound)
        bhh = jax.random.uniform(k_bhh, (3, H), jnp.float32, -bound, bound)

        # pad to lane-aligned kernel layout (zeros keep padded hidden columns
        # exactly zero through the recurrence)
        wih_p = jnp.zeros((in_pad, 3, H_pad), jnp.float32).at[:in_dim, :, :H].set(wih)
        whh_p = jnp.zeros((H_pad, 3, H_pad), jnp.float32).at[:H, :, :H].set(whh)
        # fold b_ih (all gates) + b_hh (r, z only) into the hoisted projection
        b_gi = jnp.zeros((3, H_pad), jnp.float32).at[:, :H].set(
            bih + bhh.at[2].set(0.0))
        b_hn = jnp.zeros((1, H_pad), jnp.float32).at[0, :H].set(bhh[2])

        layers.append({
            "wih": wih_p.reshape(in_pad, 3 * H_pad).astype(weights_dtype),
            "whh": whh_p.reshape(H_pad, 3 * H_pad).astype(weights_dtype),
            "b_gi": b_gi.reshape(1, 3 * H_pad),
            "b_hn": b_hn,
        })

    cfg = EncoderConfig(vocab_size, embed_size, hidden_size, H_pad,
                        num_layers, pad_idx)
    params = {"embedding": emb, "layers": layers}
    return cfg, params


def encoder_rnn_forward(cfg, params, text_vec, text_lens, hidden=None,
                        use_packed=True):
    """text_vec: int32 [B, T] (batch_first), text_lens: int32 [B].

    Returns (output [B, T, H], hidden [num_layers, B, H],
             attention_mask [B, T] bool).  Output is zero-padded past each
    sequence's length (same padding value as pad_packed_sequence); it is kept
    at full static length T so the function is jittable (no host sync).
    """
    B, T = text_vec.shape
    H, H_pad, L = cfg.hidden_size, cfg.hidden_pad, cfg.num_layers
    compute_dtype = params["layers"][0]["wih"].dtype

    attention_mask = text_vec != cfg.pad_idx

    # embedding lookup (plain JAX gather) + dropout in eval mode (identity)
    embedded = jnp.take(params["embedding"], text_vec, axis=0)      # [B, T, E]

    # geometry: batch padded to 16 rows (bf16 sublane packing); batch blocks
    # of 16 form a 'parallel' grid axis (v7x megacore when B is large).
    bblk = 16
    B_pad = _round_up(B, bblk)
    n_bblk = B_pad // bblk
    chunk = min(T, 64)
    # keep the fused gi scratch (chunk*bblk x 3*H_pad f32) modest so the
    # kernel fits comfortably under v7x / v5e scoped-VMEM limits at large H
    while chunk > 8 and chunk * bblk * 3 * H_pad * 4 > (8 << 20):
        chunk //= 2
    T_pad = _round_up(T, chunk)
    n_chunks = T_pad // chunk

    # time-major, padded
    x = jnp.transpose(embedded, (1, 0, 2))                           # [T, B, E]
    x = jnp.pad(x, ((0, T_pad - T), (0, B_pad - B), (0, 0)))

    def to_blocked(a):   # [T_pad, B_pad, D] -> [n_bblk*n_chunks*chunk*bblk, D]
        d = a.shape[-1]
        a = a.reshape(n_chunks, chunk, n_bblk, bblk, d)
        a = jnp.transpose(a, (2, 0, 1, 3, 4))
        return a.reshape(n_bblk * n_chunks * chunk * bblk, d)

    def from_blocked(a):  # inverse of to_blocked
        d = a.shape[-1]
        a = a.reshape(n_bblk, n_chunks, chunk, bblk, d)
        a = jnp.transpose(a, (1, 2, 0, 3, 4))
        return a.reshape(T_pad, B_pad, d)

    x_blk = to_blocked(x).astype(compute_dtype)

    if use_packed:
        lens = text_lens.astype(jnp.int32)
    else:
        lens = jnp.full((B,), T, jnp.int32)
    lens_b1 = jnp.pad(lens, (0, B_pad - B)).reshape(B_pad, 1)   # padded rows: 0

    if hidden is None:
        h0_pad = jnp.zeros((L, B_pad, H_pad), jnp.float32)
    else:
        h0_pad = jnp.pad(hidden.astype(jnp.float32),
                         ((0, 0), (0, B_pad - B), (0, H_pad - H)))

    layer_in = x_blk
    last_hiddens = []
    y_blk = None
    for l in range(L):
        lp = params["layers"][l]
        # intermediate layers stream bf16 straight into the next layer
        # (no separate cast pass); only the last layer writes f32.
        out_dtype = jnp.float32 if l == L - 1 else compute_dtype
        y_blk, h_last = gru_layer(layer_in, lens_b1, h0_pad[l], lp["wih"],
                                  lp["b_gi"], lp["whh"], lp["b_hn"],
                                  chunk=chunk, bblk=bblk, n_bblk=n_bblk,
                                  n_chunks=n_chunks, out_dtype=out_dtype)
        last_hiddens.append(h_last)
        layer_in = y_blk

    y = from_blocked(y_blk)                                    # [T_pad, B_pad, H_pad]
    output = jnp.transpose(y, (1, 0, 2))[:B, :T, :H]           # [B, T, H]
    hidden_out = jnp.stack(last_hiddens, axis=0)[:, :B, :H]    # [L, B, H]
    return output, hidden_out, attention_mask


# -----------------------------------------------------------------------------
if __name__ == "__main__":
    vocab_size, embed_size, hidden_size, num_layers = 50, 16, 32, 2
    pad_idx = 0
    B, T = 2, 8

    key = jax.random.PRNGKey(0)
    k_param, k_tok = jax.random.split(key)

    cfg, params = init_encoder(k_param, vocab_size, embed_size, hidden_size,
                               num_layers, pad_idx=pad_idx)

    # lengths sorted descending (pack_padded_sequence enforce_sorted=True)
    text_lens = jnp.array([8, 5], dtype=jnp.int32)
    tokens = jax.random.randint(k_tok, (B, T), 1, vocab_size, dtype=jnp.int32)
    pos = jnp.arange(T)[None, :]
    text_vec = jnp.where(pos < text_lens[:, None], tokens, pad_idx)

    fwd = jax.jit(encoder_rnn_forward, static_argnums=(0,),
                  static_argnames=("use_packed",))
    output, hidden, attention_mask = fwd(cfg, params, text_vec, text_lens,
                                         use_packed=True)

    jax.block_until_ready((output, hidden, attention_mask))
    assert output.shape == (B, T, hidden_size)
    assert hidden.shape == (num_layers, B, hidden_size)
    assert attention_mask.shape == (B, T)
    print("KERNEL_OK")
</pallas_src>

<mosaic_0001>
module attributes {stable_mosaic.version = 11 : i64} {
  func.func @_gru_layer_kernel(%arg0: i32, %arg1: i32, %arg2: memref<16x1xi32, #tpu.memory_space<vmem>>, %arg3: memref<128x16xbf16, #tpu.memory_space<vmem>>, %arg4: memref<16x128xf32, #tpu.memory_space<vmem>>, %arg5: memref<16x384xbf16, #tpu.memory_space<vmem>>, %arg6: memref<1x384xf32, #tpu.memory_space<vmem>>, %arg7: memref<128x384xbf16, #tpu.memory_space<vmem>>, %arg8: memref<1x128xf32, #tpu.memory_space<vmem>>, %arg9: memref<128x128xbf16, #tpu.memory_space<vmem>>, %arg10: memref<16x128xf32, #tpu.memory_space<vmem>>, %arg11: memref<128x384xf32, #tpu.memory_space<vmem>>, %arg12: memref<16x128xf32, #tpu.memory_space<vmem>>) attributes {dimension_semantics = [#tpu.dimension_semantics<parallel>, #tpu.dimension_semantics<arbitrary>], iteration_bounds = array<i64: 1, 1>, scalar_prefetch = 0 : i64, scratch_operands = 2 : i64, tpu.core_type = #tpu.core_type<tc>, window_params = [{transform_indices = @transform_0, window_bounds = array<i64: 16, 1>}, {transform_indices = @transform_1, window_bounds = array<i64: 128, 16>}, {transform_indices = @transform_2, window_bounds = array<i64: 16, 128>}, {pipeline_mode = #tpu.pipeline_mode<synchronous>, transform_indices = @transform_3, window_bounds = array<i64: 16, 384>}, {pipeline_mode = #tpu.pipeline_mode<synchronous>, transform_indices = @transform_4, window_bounds = array<i64: 1, 384>}, {pipeline_mode = #tpu.pipeline_mode<synchronous>, transform_indices = @transform_5, window_bounds = array<i64: 128, 384>}, {pipeline_mode = #tpu.pipeline_mode<synchronous>, transform_indices = @transform_6, window_bounds = array<i64: 1, 128>}, {transform_indices = @transform_7, window_bounds = array<i64: 128, 128>}, {transform_indices = @transform_8, window_bounds = array<i64: 16, 128>}]} {
    %c0_i32 = arith.constant 0 : i32
    %0 = arith.cmpi eq, %arg1, %c0_i32 : i32
    %1 = arith.extui %0 : i1 to i32
    %c0_i32_0 = arith.constant 0 : i32
    %2 = arith.cmpi ne, %1, %c0_i32_0 : i32
    scf.if %2 {
      %c0_77 = arith.constant 0 : index
      %c0_78 = arith.constant 0 : index
      %379 = vector.load %arg4[%c0_77, %c0_78] : memref<16x128xf32, #tpu.memory_space<vmem>>, vector<16x128xf32>
      %c0_79 = arith.constant 0 : index
      %c0_80 = arith.constant 0 : index
      %380 = vector.load %arg12[%c0_79, %c0_80] : memref<16x128xf32, #tpu.memory_space<vmem>>, vector<16x128xf32>
      tpu.vector_store %arg12[%c0_79, %c0_80], %379 {strides = array<i32>} : memref<16x128xf32, #tpu.memory_space<vmem>>, vector<16x128xf32>,
    } else {
    }
    %c0 = arith.constant 0 : index
    %c0_1 = arith.constant 0 : index
    %3 = vector.load %arg3[%c0, %c0_1] : memref<128x16xbf16, #tpu.memory_space<vmem>>, vector<128x16xbf16>
    %c0_2 = arith.constant 0 : index
    %c0_3 = arith.constant 0 : index
    %4 = vector.load %arg5[%c0_2, %c0_3] : memref<16x384xbf16, #tpu.memory_space<vmem>>, vector<16x384xbf16>
    %cst = arith.constant dense<0.000000e+00> : vector<128x384xf32>
    %5 = tpu.matmul %3, %4, %cst {dimension_numbers = #tpu.dot_dimension_numbers<[1], [0], [0], [1], [0, 0, 1, 1], [], []>} : vector<128x16xbf16>, vector<16x384xbf16>, vector<128x384xf32> -> vector<128x384xf32>
    %c0_4 = arith.constant 0 : index
    %c0_5 = arith.constant 0 : index
    %6 = vector.load %arg6[%c0_4, %c0_5] : memref<1x384xf32, #tpu.memory_space<vmem>>, vector<1x384xf32>
    %7 = vector.broadcast %6 : vector<1x384xf32> to vector<128x384xf32>
    %8 = arith.addf %5, %7 : vector<128x384xf32>
    %c0_6 = arith.constant 0 : index
    %c0_7 = arith.constant 0 : index
    %9 = vector.load %arg11[%c0_6, %c0_7] : memref<128x384xf32, #tpu.memory_space<vmem>>, vector<128x384xf32>
    tpu.vector_store %arg11[%c0_6, %c0_7], %8 {strides = array<i32>} : memref<128x384xf32, #tpu.memory_space<vmem>>, vector<128x384xf32>,
    %c0_8 = arith.constant 0 : index
    %c0_9 = arith.constant 0 : index
    %10 = vector.load %arg7[%c0_8, %c0_9] : memref<128x384xbf16, #tpu.memory_space<vmem>>, vector<128x384xbf16>
    %c0_10 = arith.constant 0 : index
    %c0_11 = arith.constant 0 : index
    %11 = vector.load %arg8[%c0_10, %c0_11] : memref<1x128xf32, #tpu.memory_space<vmem>>, vector<1x128xf32>
    %c0_12 = arith.constant 0 : index
    %c0_13 = arith.constant 0 : index
    %12 = vector.load %arg2[%c0_12, %c0_13] : memref<16x1xi32, #tpu.memory_space<vmem>>, vector<16x1xi32>
    %c8_i32 = arith.constant 8 : i32
    %13 = arith.muli %arg1, %c8_i32 : i32
    %c0_14 = arith.constant 0 : index
    %c0_15 = arith.constant 0 : index
    %14 = vector.load %arg12[%c0_14, %c0_15] : memref<16x128xf32, #tpu.memory_space<vmem>>, vector<16x128xf32>
    %c0_i32_16 = arith.constant 0 : i32
    %c16_i32 = arith.constant 16 : i32
    %15 = arith.muli %c0_i32_16, %c16_i32 : i32
    %16 = tpu.assume_multiple %15, 16 : i32
    %17 = arith.index_cast %16 : i32 to index
    %c0_17 = arith.constant 0 : index
    %18 = vector.load %arg11[%17, %c0_17] : memref<128x384xf32, #tpu.memory_space<vmem>>, vector<16x384xf32>
    %19 = arith.truncf %14 : vector<16x128xf32> to vector<16x128xbf16>
    %cst_18 = arith.constant dense<0.000000e+00> : vector<16x384xf32>
    %20 = tpu.matmul %19, %10, %cst_18 {dimension_numbers = #tpu.dot_dimension_numbers<[1], [0], [0], [1], [0, 0, 1, 1], [], []>} : vector<16x128xbf16>, vector<128x384xbf16>, vector<16x384xf32> -> vector<16x384xf32>
    %21 = vector.extract_strided_slice %18 {offsets = [0, 0], sizes = [16, 128], strides = [1, 1]} : vector<16x384xf32> to vector<16x128xf32>
    %22 = vector.extract_strided_slice %20 {offsets = [0, 0], sizes = [16, 128], strides = [1, 1]} : vector<16x384xf32> to vector<16x128xf32>
    %23 = arith.addf %21, %22 : vector<16x128xf32>
    %24 = arith.negf %23 : vector<16x128xf32>
    %25 = math.exp %24 : vector<16x128xf32>
    %cst_19 = arith.constant 1.000000e+00 : f32
    %26 = vector.broadcast %cst_19 : f32 to vector<16x128xf32>
    %27 = arith.addf %26, %25 : vector<16x128xf32>
    %28 = arith.divf %26, %27 : vector<16x128xf32>
    %29 = vector.extract_strided_slice %18 {offsets = [0, 128], sizes = [16, 128], strides = [1, 1]} : vector<16x384xf32> to vector<16x128xf32>
    %30 = vector.extract_strided_slice %20 {offsets = [0, 128], sizes = [16, 128], strides = [1, 1]} : vector<16x384xf32> to vector<16x128xf32>
    %31 = arith.addf %29, %30 : vector<16x128xf32>
    %32 = arith.negf %31 : vector<16x128xf32>
    %33 = math.exp %32 : vector<16x128xf32>
    %cst_20 = arith.constant 1.000000e+00 : f32
    %34 = vector.broadcast %cst_20 : f32 to vector<16x128xf32>
    %35 = arith.addf %34, %33 : vector<16x128xf32>
    %36 = arith.divf %34, %35 : vector<16x128xf32>
    %37 = vector.extract_strided_slice %18 {offsets = [0, 256], sizes = [16, 128], strides = [1, 1]} : vector<16x384xf32> to vector<16x128xf32>
    %38 = vector.extract_strided_slice %20 {offsets = [0, 256], sizes = [16, 128], strides = [1, 1]} : vector<16x384xf32> to vector<16x128xf32>
    %39 = vector.broadcast %11 : vector<1x128xf32> to vector<16x128xf32>
    %40 = arith.addf %38, %39 : vector<16x128xf32>
    %41 = arith.mulf %28, %40 : vector<16x128xf32>
    %42 = arith.addf %37, %41 : vector<16x128xf32>
    %43 = math.tanh %42 : vector<16x128xf32>
    %44 = arith.subf %14, %43 : vector<16x128xf32>
    %45 = arith.mulf %36, %44 : vector<16x128xf32>
    %46 = arith.addf %43, %45 : vector<16x128xf32>
    %47 = arith.addi %13, %c0_i32_16 : i32
    %48 = vector.broadcast %47 : i32 to vector<16x1xi32>
    %49 = arith.cmpi slt, %48, %12 : vector<16x1xi32>
    %50 = vector.shape_cast %49 : vector<16x1xi1> to vector<16x1xi1>
    %51 = vector.broadcast %50 : vector<16x1xi1> to vector<16x128xi1>
    %52 = arith.select %51, %46, %14 : vector<16x128xi1>, vector<16x128xf32>
    %cst_21 = arith.constant 0.000000e+00 : f32
    %53 = vector.shape_cast %49 : vector<16x1xi1> to vector<16x1xi1>
    %54 = vector.broadcast %53 : vector<16x1xi1> to vector<16x128xi1>
    %55 = vector.broadcast %cst_21 : f32 to vector<16x128xf32>
    %56 = arith.select %54, %46, %55 : vector<16x128xi1>, vector<16x128xf32>
    %57 = arith.truncf %56 : vector<16x128xf32> to vector<16x128xbf16>
    %58 = arith.index_cast %16 : i32 to index
    %c0_22 = arith.constant 0 : index
    %59 = vector.load %arg9[%58, %c0_22] : memref<128x128xbf16, #tpu.memory_space<vmem>>, vector<16x128xbf16>
    tpu.vector_store %arg9[%58, %c0_22], %57 {strides = array<i32>} : memref<128x128xbf16, #tpu.memory_space<vmem>>, vector<16x128xbf16>,
    %c1_i32 = arith.constant 1 : i32
    %c16_i32_23 = arith.constant 16 : i32
    %60 = arith.muli %c1_i32, %c16_i32_23 : i32
    %61 = tpu.assume_multiple %60, 16 : i32
    %62 = arith.index_cast %61 : i32 to index
    %c0_24 = arith.constant 0 : index
    %63 = vector.load %arg11[%62, %c0_24] : memref<128x384xf32, #tpu.memory_space<vmem>>, vector<16x384xf32>
    %64 = arith.truncf %52 : vector<16x128xf32> to vector<16x128xbf16>
    %cst_25 = arith.constant dense<0.000000e+00> : vector<16x384xf32>
    %65 = tpu.matmul %64, %10, %cst_25 {dimension_numbers = #tpu.dot_dimension_numbers<[1], [0], [0], [1], [0, 0, 1, 1], [], []>} : vector<16x128xbf16>, vector<128x384xbf16>, vector<16x384xf32> -> vector<16x384xf32>
    %66 = vector.extract_strided_slice %63 {offsets = [0, 0], sizes = [16, 128], strides = [1, 1]} : vector<16x384xf32> to vector<16x128xf32>
    %67 = vector.extract_strided_slice %65 {offsets = [0, 0], sizes = [16, 128], strides = [1, 1]} : vector<16x384xf32> to vector<16x128xf32>
    %68 = arith.addf %66, %67 : vector<16x128xf32>
    %69 = arith.negf %68 : vector<16x128xf32>
    %70 = math.exp %69 : vector<16x128xf32>
    %cst_26 = arith.constant 1.000000e+00 : f32
    %71 = vector.broadcast %cst_26 : f32 to vector<16x128xf32>
    %72 = arith.addf %71, %70 : vector<16x128xf32>
    %73 = arith.divf %71, %72 : vector<16x128xf32>
    %74 = vector.extract_strided_slice %63 {offsets = [0, 128], sizes = [16, 128], strides = [1, 1]} : vector<16x384xf32> to vector<16x128xf32>
    %75 = vector.extract_strided_slice %65 {offsets = [0, 128], sizes = [16, 128], strides = [1, 1]} : vector<16x384xf32> to vector<16x128xf32>
    %76 = arith.addf %74, %75 : vector<16x128xf32>
    %77 = arith.negf %76 : vector<16x128xf32>
    %78 = math.exp %77 : vector<16x128xf32>
    %cst_27 = arith.constant 1.000000e+00 : f32
    %79 = vector.broadcast %cst_27 : f32 to vector<16x128xf32>
    %80 = arith.addf %79, %78 : vector<16x128xf32>
    %81 = arith.divf %79, %80 : vector<16x128xf32>
    %82 = vector.extract_strided_slice %63 {offsets = [0, 256], sizes = [16, 128], strides = [1, 1]} : vector<16x384xf32> to vector<16x128xf32>
    %83 = vector.extract_strided_slice %65 {offsets = [0, 256], sizes = [16, 128], strides = [1, 1]} : vector<16x384xf32> to vector<16x128xf32>
    %84 = vector.broadcast %11 : vector<1x128xf32> to vector<16x128xf32>
    %85 = arith.addf %83, %84 : vector<16x128xf32>
    %86 = arith.mulf %73, %85 : vector<16x128xf32>
    %87 = arith.addf %82, %86 : vector<16x128xf32>
    %88 = math.tanh %87 : vector<16x128xf32>
    %89 = arith.subf %52, %88 : vector<16x128xf32>
    %90 = arith.mulf %81, %89 : vector<16x128xf32>
    %91 = arith.addf %88, %90 : vector<16x128xf32>
    %92 = arith.addi %13, %c1_i32 : i32
    %93 = vector.broadcast %92 : i32 to vector<16x1xi32>
    %94 = arith.cmpi slt, %93, %12 : vector<16x1xi32>
    %95 = vector.shape_cast %94 : vector<16x1xi1> to vector<16x1xi1>
    %96 = vector.broadcast %95 : vector<16x1xi1> to vector<16x128xi1>
    %97 = arith.select %96, %91, %52 : vector<16x128xi1>, vector<16x128xf32>
    %cst_28 = arith.constant 0.000000e+00 : f32
    %98 = vector.shape_cast %94 : vector<16x1xi1> to vector<16x1xi1>
    %99 = vector.broadcast %98 : vector<16x1xi1> to vector<16x128xi1>
    %100 = vector.broadcast %cst_28 : f32 to vector<16x128xf32>
    %101 = arith.select %99, %91, %100 : vector<16x128xi1>, vector<16x128xf32>
    %102 = arith.truncf %101 : vector<16x128xf32> to vector<16x128xbf16>
    %103 = arith.index_cast %61 : i32 to index
    %c0_29 = arith.constant 0 : index
    %104 = vector.load %arg9[%103, %c0_29] : memref<128x128xbf16, #tpu.memory_space<vmem>>, vector<16x128xbf16>
    tpu.vector_store %arg9[%103, %c0_29], %102 {strides = array<i32>} : memref<128x128xbf16, #tpu.memory_space<vmem>>, vector<16x128xbf16>,
    %c2_i32 = arith.constant 2 : i32
    %c16_i32_30 = arith.constant 16 : i32
    %105 = arith.muli %c2_i32, %c16_i32_30 : i32
    %106 = tpu.assume_multiple %105, 16 : i32
    %107 = arith.index_cast %106 : i32 to index
    %c0_31 = arith.constant 0 : index
    %108 = vector.load %arg11[%107, %c0_31] : memref<128x384xf32, #tpu.memory_space<vmem>>, vector<16x384xf32>
    %109 = arith.truncf %97 : vector<16x128xf32> to vector<16x128xbf16>
    %cst_32 = arith.constant dense<0.000000e+00> : vector<16x384xf32>
    %110 = tpu.matmul %109, %10, %cst_32 {dimension_numbers = #tpu.dot_dimension_numbers<[1], [0], [0], [1], [0, 0, 1, 1], [], []>} : vector<16x128xbf16>, vector<128x384xbf16>, vector<16x384xf32> -> vector<16x384xf32>
    %111 = vector.extract_strided_slice %108 {offsets = [0, 0], sizes = [16, 128], strides = [1, 1]} : vector<16x384xf32> to vector<16x128xf32>
    %112 = vector.extract_strided_slice %110 {offsets = [0, 0], sizes = [16, 128], strides = [1, 1]} : vector<16x384xf32> to vector<16x128xf32>
    %113 = arith.addf %111, %112 : vector<16x128xf32>
    %114 = arith.negf %113 : vector<16x128xf32>
    %115 = math.exp %114 : vector<16x128xf32>
    %cst_33 = arith.constant 1.000000e+00 : f32
    %116 = vector.broadcast %cst_33 : f32 to vector<16x128xf32>
    %117 = arith.addf %116, %115 : vector<16x128xf32>
    %118 = arith.divf %116, %117 : vector<16x128xf32>
    %119 = vector.extract_strided_slice %108 {offsets = [0, 128], sizes = [16, 128], strides = [1, 1]} : vector<16x384xf32> to vector<16x128xf32>
    %120 = vector.extract_strided_slice %110 {offsets = [0, 128], sizes = [16, 128], strides = [1, 1]} : vector<16x384xf32> to vector<16x128xf32>
    %121 = arith.addf %119, %120 : vector<16x128xf32>
    %122 = arith.negf %121 : vector<16x128xf32>
    %123 = math.exp %122 : vector<16x128xf32>
    %cst_34 = arith.constant 1.000000e+00 : f32
    %124 = vector.broadcast %cst_34 : f32 to vector<16x128xf32>
    %125 = arith.addf %124, %123 : vector<16x128xf32>
    %126 = arith.divf %124, %125 : vector<16x128xf32>
    %127 = vector.extract_strided_slice %108 {offsets = [0, 256], sizes = [16, 128], strides = [1, 1]} : vector<16x384xf32> to vector<16x128xf32>
    %128 = vector.extract_strided_slice %110 {offsets = [0, 256], sizes = [16, 128], strides = [1, 1]} : vector<16x384xf32> to vector<16x128xf32>
    %129 = vector.broadcast %11 : vector<1x128xf32> to vector<16x128xf32>
    %130 = arith.addf %128, %129 : vector<16x128xf32>
    %131 = arith.mulf %118, %130 : vector<16x128xf32>
    %132 = arith.addf %127, %131 : vector<16x128xf32>
    %133 = math.tanh %132 : vector<16x128xf32>
    %134 = arith.subf %97, %133 : vector<16x128xf32>
    %135 = arith.mulf %126, %134 : vector<16x128xf32>
    %136 = arith.addf %133, %135 : vector<16x128xf32>
    %137 = arith.addi %13, %c2_i32 : i32
    %138 = vector.broadcast %137 : i32 to vector<16x1xi32>
    %139 = arith.cmpi slt, %138, %12 : vector<16x1xi32>
    %140 = vector.shape_cast %139 : vector<16x1xi1> to vector<16x1xi1>
    %141 = vector.broadcast %140 : vector<16x1xi1> to vector<16x128xi1>
    %142 = arith.select %141, %136, %97 : vector<16x128xi1>, vector<16x128xf32>
    %cst_35 = arith.constant 0.000000e+00 : f32
    %143 = vector.shape_cast %139 : vector<16x1xi1> to vector<16x1xi1>
    %144 = vector.broadcast %143 : vector<16x1xi1> to vector<16x128xi1>
    %145 = vector.broadcast %cst_35 : f32 to vector<16x128xf32>
    %146 = arith.select %144, %136, %145 : vector<16x128xi1>, vector<16x128xf32>
    %147 = arith.truncf %146 : vector<16x128xf32> to vector<16x128xbf16>
    %148 = arith.index_cast %106 : i32 to index
    %c0_36 = arith.constant 0 : index
    %149 = vector.load %arg9[%148, %c0_36] : memref<128x128xbf16, #tpu.memory_space<vmem>>, vector<16x128xbf16>
    tpu.vector_store %arg9[%148, %c0_36], %147 {strides = array<i32>} : memref<128x128xbf16, #tpu.memory_space<vmem>>, vector<16x128xbf16>,
    %c3_i32 = arith.constant 3 : i32
    %c16_i32_37 = arith.constant 16 : i32
    %150 = arith.muli %c3_i32, %c16_i32_37 : i32
    %151 = tpu.assume_multiple %150, 16 : i32
    %152 = arith.index_cast %151 : i32 to index
    %c0_38 = arith.constant 0 : index
    %153 = vector.load %arg11[%152, %c0_38] : memref<128x384xf32, #tpu.memory_space<vmem>>, vector<16x384xf32>
    %154 = arith.truncf %142 : vector<16x128xf32> to vector<16x128xbf16>
    %cst_39 = arith.constant dense<0.000000e+00> : vector<16x384xf32>
    %155 = tpu.matmul %154, %10, %cst_39 {dimension_numbers = #tpu.dot_dimension_numbers<[1], [0], [0], [1], [0, 0, 1, 1], [], []>} : vector<16x128xbf16>, vector<128x384xbf16>, vector<16x384xf32> -> vector<16x384xf32>
    %156 = vector.extract_strided_slice %153 {offsets = [0, 0], sizes = [16, 128], strides = [1, 1]} : vector<16x384xf32> to vector<16x128xf32>
    %157 = vector.extract_strided_slice %155 {offsets = [0, 0], sizes = [16, 128], strides = [1, 1]} : vector<16x384xf32> to vector<16x128xf32>
    %158 = arith.addf %156, %157 : vector<16x128xf32>
    %159 = arith.negf %158 : vector<16x128xf32>
    %160 = math.exp %159 : vector<16x128xf32>
    %cst_40 = arith.constant 1.000000e+00 : f32
    %161 = vector.broadcast %cst_40 : f32 to vector<16x128xf32>
    %162 = arith.addf %161, %160 : vector<16x128xf32>
    %163 = arith.divf %161, %162 : vector<16x128xf32>
    %164 = vector.extract_strided_slice %153 {offsets = [0, 128], sizes = [16, 128], strides = [1, 1]} : vector<16x384xf32> to vector<16x128xf32>
    %165 = vector.extract_strided_slice %155 {offsets = [0, 128], sizes = [16, 128], strides = [1, 1]} : vector<16x384xf32> to vector<16x128xf32>
    %166 = arith.addf %164, %165 : vector<16x128xf32>
    %167 = arith.negf %166 : vector<16x128xf32>
    %168 = math.exp %167 : vector<16x128xf32>
    %cst_41 = arith.constant 1.000000e+00 : f32
    %169 = vector.broadcast %cst_41 : f32 to vector<16x128xf32>
    %170 = arith.addf %169, %168 : vector<16x128xf32>
    %171 = arith.divf %169, %170 : vector<16x128xf32>
    %172 = vector.extract_strided_slice %153 {offsets = [0, 256], sizes = [16, 128], strides = [1, 1]} : vector<16x384xf32> to vector<16x128xf32>
    %173 = vector.extract_strided_slice %155 {offsets = [0, 256], sizes = [16, 128], strides = [1, 1]} : vector<16x384xf32> to vector<16x128xf32>
    %174 = vector.broadcast %11 : vector<1x128xf32> to vector<16x128xf32>
    %175 = arith.addf %173, %174 : vector<16x128xf32>
    %176 = arith.mulf %163, %175 : vector<16x128xf32>
    %177 = arith.addf %172, %176 : vector<16x128xf32>
    %178 = math.tanh %177 : vector<16x128xf32>
    %179 = arith.subf %142, %178 : vector<16x128xf32>
    %180 = arith.mulf %171, %179 : vector<16x128xf32>
    %181 = arith.addf %178, %180 : vector<16x128xf32>
    %182 = arith.addi %13, %c3_i32 : i32
    %183 = vector.broadcast %182 : i32 to vector<16x1xi32>
    %184 = arith.cmpi slt, %183, %12 : vector<16x1xi32>
    %185 = vector.shape_cast %184 : vector<16x1xi1> to vector<16x1xi1>
    %186 = vector.broadcast %185 : vector<16x1xi1> to vector<16x128xi1>
    %187 = arith.select %186, %181, %142 : vector<16x128xi1>, vector<16x128xf32>
    %cst_42 = arith.constant 0.000000e+00 : f32
    %188 = vector.shape_cast %184 : vector<16x1xi1> to vector<16x1xi1>
    %189 = vector.broadcast %188 : vector<16x1xi1> to vector<16x128xi1>
    %190 = vector.broadcast %cst_42 : f32 to vector<16x128xf32>
    %191 = arith.select %189, %181, %190 : vector<16x128xi1>, vector<16x128xf32>
    %192 = arith.truncf %191 : vector<16x128xf32> to vector<16x128xbf16>
    %193 = arith.index_cast %151 : i32 to index
    %c0_43 = arith.constant 0 : index
    %194 = vector.load %arg9[%193, %c0_43] : memref<128x128xbf16, #tpu.memory_space<vmem>>, vector<16x128xbf16>
    tpu.vector_store %arg9[%193, %c0_43], %192 {strides = array<i32>} : memref<128x128xbf16, #tpu.memory_space<vmem>>, vector<16x128xbf16>,
    %c4_i32 = arith.constant 4 : i32
    %c16_i32_44 = arith.constant 16 : i32
    %195 = arith.muli %c4_i32, %c16_i32_44 : i32
    %196 = tpu.assume_multiple %195, 16 : i32
    %197 = arith.index_cast %196 : i32 to index
    %c0_45 = arith.constant 0 : index
    %198 = vector.load %arg11[%197, %c0_45] : memref<128x384xf32, #tpu.memory_space<vmem>>, vector<16x384xf32>
    %199 = arith.truncf %187 : vector<16x128xf32> to vector<16x128xbf16>
    %cst_46 = arith.constant dense<0.000000e+00> : vector<16x384xf32>
    %200 = tpu.matmul %199, %10, %cst_46 {dimension_numbers = #tpu.dot_dimension_numbers<[1], [0], [0], [1], [0, 0, 1, 1], [], []>} : vector<16x128xbf16>, vector<128x384xbf16>, vector<16x384xf32> -> vector<16x384xf32>
    %201 = vector.extract_strided_slice %198 {offsets = [0, 0], sizes = [16, 128], strides = [1, 1]} : vector<16x384xf32> to vector<16x128xf32>
    %202 = vector.extract_strided_slice %200 {offsets = [0, 0], sizes = [16, 128], strides = [1, 1]} : vector<16x384xf32> to vector<16x128xf32>
    %203 = arith.addf %201, %202 : vector<16x128xf32>
    %204 = arith.negf %203 : vector<16x128xf32>
    %205 = math.exp %204 : vector<16x128xf32>
    %cst_47 = arith.constant 1.000000e+00 : f32
    %206 = vector.broadcast %cst_47 : f32 to vector<16x128xf32>
    %207 = arith.addf %206, %205 : vector<16x128xf32>
    %208 = arith.divf %206, %207 : vector<16x128xf32>
    %209 = vector.extract_strided_slice %198 {offsets = [0, 128], sizes = [16, 128], strides = [1, 1]} : vector<16x384xf32> to vector<16x128xf32>
    %210 = vector.extract_strided_slice %200 {offsets = [0, 128], sizes = [16, 128], strides = [1, 1]} : vector<16x384xf32> to vector<16x128xf32>
    %211 = arith.addf %209, %210 : vector<16x128xf32>
    %212 = arith.negf %211 : vector<16x128xf32>
    %213 = math.exp %212 : vector<16x128xf32>
    %cst_48 = arith.constant 1.000000e+00 : f32
    %214 = vector.broadcast %cst_48 : f32 to vector<16x128xf32>
    %215 = arith.addf %214, %213 : vector<16x128xf32>
    %216 = arith.divf %214, %215 : vector<16x128xf32>
    %217 = vector.extract_strided_slice %198 {offsets = [0, 256], sizes = [16, 128], strides = [1, 1]} : vector<16x384xf32> to vector<16x128xf32>
    %218 = vector.extract_strided_slice %200 {offsets = [0, 256], sizes = [16, 128], strides = [1, 1]} : vector<16x384xf32> to vector<16x128xf32>
    %219 = vector.broadcast %11 : vector<1x128xf32> to vector<16x128xf32>
    %220 = arith.addf %218, %219 : vector<16x128xf32>
    %221 = arith.mulf %208, %220 : vector<16x128xf32>
    %222 = arith.addf %217, %221 : vector<16x128xf32>
    %223 = math.tanh %222 : vector<16x128xf32>
    %224 = arith.subf %187, %223 : vector<16x128xf32>
    %225 = arith.mulf %216, %224 : vector<16x128xf32>
    %226 = arith.addf %223, %225 : vector<16x128xf32>
    %227 = arith.addi %13, %c4_i32 : i32
    %228 = vector.broadcast %227 : i32 to vector<16x1xi32>
    %229 = arith.cmpi slt, %228, %12 : vector<16x1xi32>
    %230 = vector.shape_cast %229 : vector<16x1xi1> to vector<16x1xi1>
    %231 = vector.broadcast %230 : vector<16x1xi1> to vector<16x128xi1>
    %232 = arith.select %231, %226, %187 : vector<16x128xi1>, vector<16x128xf32>
    %cst_49 = arith.constant 0.000000e+00 : f32
    %233 = vector.shape_cast %229 : vector<16x1xi1> to vector<16x1xi1>
    %234 = vector.broadcast %233 : vector<16x1xi1> to vector<16x128xi1>
    %235 = vector.broadcast %cst_49 : f32 to vector<16x128xf32>
    %236 = arith.select %234, %226, %235 : vector<16x128xi1>, vector<16x128xf32>
    %237 = arith.truncf %236 : vector<16x128xf32> to vector<16x128xbf16>
    %238 = arith.index_cast %196 : i32 to index
    %c0_50 = arith.constant 0 : index
    %239 = vector.load %arg9[%238, %c0_50] : memref<128x128xbf16, #tpu.memory_space<vmem>>, vector<16x128xbf16>
    tpu.vector_store %arg9[%238, %c0_50], %237 {strides = array<i32>} : memref<128x128xbf16, #tpu.memory_space<vmem>>, vector<16x128xbf16>,
    %c5_i32 = arith.constant 5 : i32
    %c16_i32_51 = arith.constant 16 : i32
    %240 = arith.muli %c5_i32, %c16_i32_51 : i32
    %241 = tpu.assume_multiple %240, 16 : i32
    %242 = arith.index_cast %241 : i32 to index
    %c0_52 = arith.constant 0 : index
    %243 = vector.load %arg11[%242, %c0_52] : memref<128x384xf32, #tpu.memory_space<vmem>>, vector<16x384xf32>
    %244 = arith.truncf %232 : vector<16x128xf32> to vector<16x128xbf16>
    %cst_53 = arith.constant dense<0.000000e+00> : vector<16x384xf32>
    %245 = tpu.matmul %244, %10, %cst_53 {dimension_numbers = #tpu.dot_dimension_numbers<[1], [0], [0], [1], [0, 0, 1, 1], [], []>} : vector<16x128xbf16>, vector<128x384xbf16>, vector<16x384xf32> -> vector<16x384xf32>
    %246 = vector.extract_strided_slice %243 {offsets = [0, 0], sizes = [16, 128], strides = [1, 1]} : vector<16x384xf32> to vector<16x128xf32>
    %247 = vector.extract_strided_slice %245 {offsets = [0, 0], sizes = [16, 128], strides = [1, 1]} : vector<16x384xf32> to vector<16x128xf32>
    %248 = arith.addf %246, %247 : vector<16x128xf32>
    %249 = arith.negf %248 : vector<16x128xf32>
    %250 = math.exp %249 : vector<16x128xf32>
    %cst_54 = arith.constant 1.000000e+00 : f32
    %251 = vector.broadcast %cst_54 : f32 to vector<16x128xf32>
    %252 = arith.addf %251, %250 : vector<16x128xf32>
    %253 = arith.divf %251, %252 : vector<16x128xf32>
    %254 = vector.extract_strided_slice %243 {offsets = [0, 128], sizes = [16, 128], strides = [1, 1]} : vector<16x384xf32> to vector<16x128xf32>
    %255 = vector.extract_strided_slice %245 {offsets = [0, 128], sizes = [16, 128], strides = [1, 1]} : vector<16x384xf32> to vector<16x128xf32>
    %256 = arith.addf %254, %255 : vector<16x128xf32>
    %257 = arith.negf %256 : vector<16x128xf32>
    %258 = math.exp %257 : vector<16x128xf32>
    %cst_55 = arith.constant 1.000000e+00 : f32
    %259 = vector.broadcast %cst_55 : f32 to vector<16x128xf32>
    %260 = arith.addf %259, %258 : vector<16x128xf32>
    %261 = arith.divf %259, %260 : vector<16x128xf32>
    %262 = vector.extract_strided_slice %243 {offsets = [0, 256], sizes = [16, 128], strides = [1, 1]} : vector<16x384xf32> to vector<16x128xf32>
    %263 = vector.extract_strided_slice %245 {offsets = [0, 256], sizes = [16, 128], strides = [1, 1]} : vector<16x384xf32> to vector<16x128xf32>
    %264 = vector.broadcast %11 : vector<1x128xf32> to vector<16x128xf32>
    %265 = arith.addf %263, %264 : vector<16x128xf32>
    %266 = arith.mulf %253, %265 : vector<16x128xf32>
    %267 = arith.addf %262, %266 : vector<16x128xf32>
    %268 = math.tanh %267 : vector<16x128xf32>
    %269 = arith.subf %232, %268 : vector<16x128xf32>
    %270 = arith.mulf %261, %269 : vector<16x128xf32>
    %271 = arith.addf %268, %270 : vector<16x128xf32>
    %272 = arith.addi %13, %c5_i32 : i32
    %273 = vector.broadcast %272 : i32 to vector<16x1xi32>
    %274 = arith.cmpi slt, %273, %12 : vector<16x1xi32>
    %275 = vector.shape_cast %274 : vector<16x1xi1> to vector<16x1xi1>
    %276 = vector.broadcast %275 : vector<16x1xi1> to vector<16x128xi1>
    %277 = arith.select %276, %271, %232 : vector<16x128xi1>, vector<16x128xf32>
    %cst_56 = arith.constant 0.000000e+00 : f32
    %278 = vector.shape_cast %274 : vector<16x1xi1> to vector<16x1xi1>
    %279 = vector.broadcast %278 : vector<16x1xi1> to vector<16x128xi1>
    %280 = vector.broadcast %cst_56 : f32 to vector<16x128xf32>
    %281 = arith.select %279, %271, %280 : vector<16x128xi1>, vector<16x128xf32>
    %282 = arith.truncf %281 : vector<16x128xf32> to vector<16x128xbf16>
    %283 = arith.index_cast %241 : i32 to index
    %c0_57 = arith.constant 0 : index
    %284 = vector.load %arg9[%283, %c0_57] : memref<128x128xbf16, #tpu.memory_space<vmem>>, vector<16x128xbf16>
    tpu.vector_store %arg9[%283, %c0_57], %282 {strides = array<i32>} : memref<128x128xbf16, #tpu.memory_space<vmem>>, vector<16x128xbf16>,
    %c6_i32 = arith.constant 6 : i32
    %c16_i32_58 = arith.constant 16 : i32
    %285 = arith.muli %c6_i32, %c16_i32_58 : i32
    %286 = tpu.assume_multiple %285, 16 : i32
    %287 = arith.index_cast %286 : i32 to index
    %c0_59 = arith.constant 0 : index
    %288 = vector.load %arg11[%287, %c0_59] : memref<128x384xf32, #tpu.memory_space<vmem>>, vector<16x384xf32>
    %289 = arith.truncf %277 : vector<16x128xf32> to vector<16x128xbf16>
    %cst_60 = arith.constant dense<0.000000e+00> : vector<16x384xf32>
    %290 = tpu.matmul %289, %10, %cst_60 {dimension_numbers = #tpu.dot_dimension_numbers<[1], [0], [0], [1], [0, 0, 1, 1], [], []>} : vector<16x128xbf16>, vector<128x384xbf16>, vector<16x384xf32> -> vector<16x384xf32>
    %291 = vector.extract_strided_slice %288 {offsets = [0, 0], sizes = [16, 128], strides = [1, 1]} : vector<16x384xf32> to vector<16x128xf32>
    %292 = vector.extract_strided_slice %290 {offsets = [0, 0], sizes = [16, 128], strides = [1, 1]} : vector<16x384xf32> to vector<16x128xf32>
    %293 = arith.addf %291, %292 : vector<16x128xf32>
    %294 = arith.negf %293 : vector<16x128xf32>
    %295 = math.exp %294 : vector<16x128xf32>
    %cst_61 = arith.constant 1.000000e+00 : f32
    %296 = vector.broadcast %cst_61 : f32 to vector<16x128xf32>
    %297 = arith.addf %296, %295 : vector<16x128xf32>
    %298 = arith.divf %296, %297 : vector<16x128xf32>
    %299 = vector.extract_strided_slice %288 {offsets = [0, 128], sizes = [16, 128], strides = [1, 1]} : vector<16x384xf32> to vector<16x128xf32>
    %300 = vector.extract_strided_slice %290 {offsets = [0, 128], sizes = [16, 128], strides = [1, 1]} : vector<16x384xf32> to vector<16x128xf32>
    %301 = arith.addf %299, %300 : vector<16x128xf32>
    %302 = arith.negf %301 : vector<16x128xf32>
    %303 = math.exp %302 : vector<16x128xf32>
    %cst_62 = arith.constant 1.000000e+00 : f32
    %304 = vector.broadcast %cst_62 : f32 to vector<16x128xf32>
    %305 = arith.addf %304, %303 : vector<16x128xf32>
    %306 = arith.divf %304, %305 : vector<16x128xf32>
    %307 = vector.extract_strided_slice %288 {offsets = [0, 256], sizes = [16, 128], strides = [1, 1]} : vector<16x384xf32> to vector<16x128xf32>
    %308 = vector.extract_strided_slice %290 {offsets = [0, 256], sizes = [16, 128], strides = [1, 1]} : vector<16x384xf32> to vector<16x128xf32>
    %309 = vector.broadcast %11 : vector<1x128xf32> to vector<16x128xf32>
    %310 = arith.addf %308, %309 : vector<16x128xf32>
    %311 = arith.mulf %298, %310 : vector<16x128xf32>
    %312 = arith.addf %307, %311 : vector<16x128xf32>
    %313 = math.tanh %312 : vector<16x128xf32>
    %314 = arith.subf %277, %313 : vector<16x128xf32>
    %315 = arith.mulf %306, %314 : vector<16x128xf32>
    %316 = arith.addf %313, %315 : vector<16x128xf32>
    %317 = arith.addi %13, %c6_i32 : i32
    %318 = vector.broadcast %317 : i32 to vector<16x1xi32>
    %319 = arith.cmpi slt, %318, %12 : vector<16x1xi32>
    %320 = vector.shape_cast %319 : vector<16x1xi1> to vector<16x1xi1>
    %321 = vector.broadcast %320 : vector<16x1xi1> to vector<16x128xi1>
    %322 = arith.select %321, %316, %277 : vector<16x128xi1>, vector<16x128xf32>
    %cst_63 = arith.constant 0.000000e+00 : f32
    %323 = vector.shape_cast %319 : vector<16x1xi1> to vector<16x1xi1>
    %324 = vector.broadcast %323 : vector<16x1xi1> to vector<16x128xi1>
    %325 = vector.broadcast %cst_63 : f32 to vector<16x128xf32>
    %326 = arith.select %324, %316, %325 : vector<16x128xi1>, vector<16x128xf32>
    %327 = arith.truncf %326 : vector<16x128xf32> to vector<16x128xbf16>
    %328 = arith.index_cast %286 : i32 to index
    %c0_64 = arith.constant 0 : index
    %329 = vector.load %arg9[%328, %c0_64] : memref<128x128xbf16, #tpu.memory_space<vmem>>, vector<16x128xbf16>
    tpu.vector_store %arg9[%328, %c0_64], %327 {strides = array<i32>} : memref<128x128xbf16, #tpu.memory_space<vmem>>, vector<16x128xbf16>,
    %c7_i32 = arith.constant 7 : i32
    %c16_i32_65 = arith.constant 16 : i32
    %330 = arith.muli %c7_i32, %c16_i32_65 : i32
    %331 = tpu.assume_multiple %330, 16 : i32
    %332 = arith.index_cast %331 : i32 to index
    %c0_66 = arith.constant 0 : index
    %333 = vector.load %arg11[%332, %c0_66] : memref<128x384xf32, #tpu.memory_space<vmem>>, vector<16x384xf32>
    %334 = arith.truncf %322 : vector<16x128xf32> to vector<16x128xbf16>
    %cst_67 = arith.constant dense<0.000000e+00> : vector<16x384xf32>
    %335 = tpu.matmul %334, %10, %cst_67 {dimension_numbers = #tpu.dot_dimension_numbers<[1], [0], [0], [1], [0, 0, 1, 1], [], []>} : vector<16x128xbf16>, vector<128x384xbf16>, vector<16x384xf32> -> vector<16x384xf32>
    %336 = vector.extract_strided_slice %333 {offsets = [0, 0], sizes = [16, 128], strides = [1, 1]} : vector<16x384xf32> to vector<16x128xf32>
    %337 = vector.extract_strided_slice %335 {offsets = [0, 0], sizes = [16, 128], strides = [1, 1]} : vector<16x384xf32> to vector<16x128xf32>
    %338 = arith.addf %336, %337 : vector<16x128xf32>
    %339 = arith.negf %338 : vector<16x128xf32>
    %340 = math.exp %339 : vector<16x128xf32>
    %cst_68 = arith.constant 1.000000e+00 : f32
    %341 = vector.broadcast %cst_68 : f32 to vector<16x128xf32>
    %342 = arith.addf %341, %340 : vector<16x128xf32>
    %343 = arith.divf %341, %342 : vector<16x128xf32>
    %344 = vector.extract_strided_slice %333 {offsets = [0, 128], sizes = [16, 128], strides = [1, 1]} : vector<16x384xf32> to vector<16x128xf32>
    %345 = vector.extract_strided_slice %335 {offsets = [0, 128], sizes = [16, 128], strides = [1, 1]} : vector<16x384xf32> to vector<16x128xf32>
    %346 = arith.addf %344, %345 : vector<16x128xf32>
    %347 = arith.negf %346 : vector<16x128xf32>
    %348 = math.exp %347 : vector<16x128xf32>
    %cst_69 = arith.constant 1.000000e+00 : f32
    %349 = vector.broadcast %cst_69 : f32 to vector<16x128xf32>
    %350 = arith.addf %349, %348 : vector<16x128xf32>
    %351 = arith.divf %349, %350 : vector<16x128xf32>
    %352 = vector.extract_strided_slice %333 {offsets = [0, 256], sizes = [16, 128], strides = [1, 1]} : vector<16x384xf32> to vector<16x128xf32>
    %353 = vector.extract_strided_slice %335 {offsets = [0, 256], sizes = [16, 128], strides = [1, 1]} : vector<16x384xf32> to vector<16x128xf32>
    %354 = vector.broadcast %11 : vector<1x128xf32> to vector<16x128xf32>
    %355 = arith.addf %353, %354 : vector<16x128xf32>
    %356 = arith.mulf %343, %355 : vector<16x128xf32>
    %357 = arith.addf %352, %356 : vector<16x128xf32>
    %358 = math.tanh %357 : vector<16x128xf32>
    %359 = arith.subf %322, %358 : vector<16x128xf32>
    %360 = arith.mulf %351, %359 : vector<16x128xf32>
    %361 = arith.addf %358, %360 : vector<16x128xf32>
    %362 = arith.addi %13, %c7_i32 : i32
    %363 = vector.broadcast %362 : i32 to vector<16x1xi32>
    %364 = arith.cmpi slt, %363, %12 : vector<16x1xi32>
    %365 = vector.shape_cast %364 : vector<16x1xi1> to vector<16x1xi1>
    %366 = vector.broadcast %365 : vector<16x1xi1> to vector<16x128xi1>
    %367 = arith.select %366, %361, %322 : vector<16x128xi1>, vector<16x128xf32>
    %cst_70 = arith.constant 0.000000e+00 : f32
    %368 = vector.shape_cast %364 : vector<16x1xi1> to vector<16x1xi1>
    %369 = vector.broadcast %368 : vector<16x1xi1> to vector<16x128xi1>
    %370 = vector.broadcast %cst_70 : f32 to vector<16x128xf32>
    %371 = arith.select %369, %361, %370 : vector<16x128xi1>, vector<16x128xf32>
    %372 = arith.truncf %371 : vector<16x128xf32> to vector<16x128xbf16>
    %373 = arith.index_cast %331 : i32 to index
    %c0_71 = arith.constant 0 : index
    %374 = vector.load %arg9[%373, %c0_71] : memref<128x128xbf16, #tpu.memory_space<vmem>>, vector<16x128xbf16>
    tpu.vector_store %arg9[%373, %c0_71], %372 {strides = array<i32>} : memref<128x128xbf16, #tpu.memory_space<vmem>>, vector<16x128xbf16>,
    %c8_i32_72 = arith.constant 8 : i32
    %c0_73 = arith.constant 0 : index
    %c0_74 = arith.constant 0 : index
    %375 = vector.load %arg12[%c0_73, %c0_74] : memref<16x128xf32, #tpu.memory_space<vmem>>, vector<16x128xf32>
    tpu.vector_store %arg12[%c0_73, %c0_74], %367 {strides = array<i32>} : memref<16x128xf32, #tpu.memory_space<vmem>>, vector<16x128xf32>,
    %c0_i32_75 = arith.constant 0 : i32
    %376 = arith.cmpi eq, %arg1, %c0_i32_75 : i32
    %377 = arith.extui %376 : i1 to i32
    %c0_i32_76 = arith.constant 0 : i32
    %378 = arith.cmpi ne, %377, %c0_i32_76 : i32
    scf.if %378 {
      %c0_77 = arith.constant 0 : index
      %c0_78 = arith.constant 0 : index
      %379 = vector.load %arg10[%c0_77, %c0_78] : memref<16x128xf32, #tpu.memory_space<vmem>>, vector<16x128xf32>
      tpu.vector_store %arg10[%c0_77, %c0_78], %367 {strides = array<i32>} : memref<16x128xf32, #tpu.memory_space<vmem>>, vector<16x128xf32>,
    } else {
    }
    return
  }
  func.func @transform_0(%arg0: i32, %arg1: i32) -> (i32, i32) {
    %c0_i32 = arith.constant 0 : i32
    %c0_i32_0 = arith.constant 0 : i32
    return %arg0, %c0_i32 : i32, i32
  }
  func.func @transform_1(%arg0: i32, %arg1: i32) -> (i32, i32) {
    %c1_i32 = arith.constant 1 : i32
    %0 = arith.muli %arg0, %c1_i32 : i32
    %1 = arith.addi %0, %arg1 : i32
    %c0_i32 = arith.constant 0 : i32
    %c0_i32_0 = arith.constant 0 : i32
    return %1, %c0_i32 : i32, i32
  }
  func.func @transform_2(%arg0: i32, %arg1: i32) -> (i32, i32) {
    %c0_i32 = arith.constant 0 : i32
    %c0_i32_0 = arith.constant 0 : i32
    return %arg0, %c0_i32 : i32, i32
  }
  func.func @transform_3(%arg0: i32, %arg1: i32) -> (i32, i32) {
    %c0_i32 = arith.constant 0 : i32
    %c0_i32_0 = arith.constant 0 : i32
    %c0_i32_1 = arith.constant 0 : i32
    return %c0_i32, %c0_i32_0 : i32, i32
  }
  func.func @transform_4(%arg0: i32, %arg1: i32) -> (i32, i32) {
    %c0_i32 = arith.constant 0 : i32
    %c0_i32_0 = arith.constant 0 : i32
    %c0_i32_1 = arith.constant 0 : i32
    return %c0_i32, %c0_i32_0 : i32, i32
  }
  func.func @transform_5(%arg0: i32, %arg1: i32) -> (i32, i32) {
    %c0_i32 = arith.constant 0 : i32
    %c0_i32_0 = arith.constant 0 : i32
    %c0_i32_1 = arith.constant 0 : i32
    return %c0_i32, %c0_i32_0 : i32, i32
  }
  func.func @transform_6(%arg0: i32, %arg1: i32) -> (i32, i32) {
    %c0_i32 = arith.constant 0 : i32
    %c0_i32_0 = arith.constant 0 : i32
    %c0_i32_1 = arith.constant 0 : i32
    return %c0_i32, %c0_i32_0 : i32, i32
  }
  func.func @transform_7(%arg0: i32, %arg1: i32) -> (i32, i32) {
    %c1_i32 = arith.constant 1 : i32
    %0 = arith.muli %arg0, %c1_i32 : i32
    %1 = arith.addi %0, %arg1 : i32
    %c0_i32 = arith.constant 0 : i32
    %c0_i32_0 = arith.constant 0 : i32
    return %1, %c0_i32 : i32, i32
  }
  func.func @transform_8(%arg0: i32, %arg1: i32) -> (i32, i32) {
    %c0_i32 = arith.constant 0 : i32
    %c0_i32_0 = arith.constant 0 : i32
    return %arg0, %c0_i32 : i32, i32
  }
}

module attributes {stable_mosaic.version = 11 : i64} {
  func.func @_gru_layer_kernel(%arg0: i32, %arg1: i32, %arg2: memref<16x1xi32, #tpu.memory_space<vmem>>, %arg3: memref<128x128xbf16, #tpu.memory_space<vmem>>, %arg4: memref<16x128xf32, #tpu.memory_space<vmem>>, %arg5: memref<128x384xbf16, #tpu.memory_space<vmem>>, %arg6: memref<1x384xf32, #tpu.memory_space<vmem>>, %arg7: memref<128x384xbf16, #tpu.memory_space<vmem>>, %arg8: memref<1x128xf32, #tpu.memory_space<vmem>>, %arg9: memref<128x128xf32, #tpu.memory_space<vmem>>, %arg10: memref<16x128xf32, #tpu.memory_space<vmem>>, %arg11: memref<128x384xf32, #tpu.memory_space<vmem>>, %arg12: memref<16x128xf32, #tpu.memory_space<vmem>>) attributes {dimension_semantics = [#tpu.dimension_semantics<parallel>, #tpu.dimension_semantics<arbitrary>], iteration_bounds = array<i64: 1, 1>, scalar_prefetch = 0 : i64, scratch_operands = 2 : i64, tpu.core_type = #tpu.core_type<tc>, window_params = [{transform_indices = @transform_0, window_bounds = array<i64: 16, 1>}, {transform_indices = @transform_1, window_bounds = array<i64: 128, 128>}, {transform_indices = @transform_2, window_bounds = array<i64: 16, 128>}, {pipeline_mode = #tpu.pipeline_mode<synchronous>, transform_indices = @transform_3, window_bounds = array<i64: 128, 384>}, {pipeline_mode = #tpu.pipeline_mode<synchronous>, transform_indices = @transform_4, window_bounds = array<i64: 1, 384>}, {pipeline_mode = #tpu.pipeline_mode<synchronous>, transform_indices = @transform_5, window_bounds = array<i64: 128, 384>}, {pipeline_mode = #tpu.pipeline_mode<synchronous>, transform_indices = @transform_6, window_bounds = array<i64: 1, 128>}, {transform_indices = @transform_7, window_bounds = array<i64: 128, 128>}, {transform_indices = @transform_8, window_bounds = array<i64: 16, 128>}]} {
    %c0_i32 = arith.constant 0 : i32
    %0 = arith.cmpi eq, %arg1, %c0_i32 : i32
    %1 = arith.extui %0 : i1 to i32
    %c0_i32_0 = arith.constant 0 : i32
    %2 = arith.cmpi ne, %1, %c0_i32_0 : i32
    scf.if %2 {
      %c0_77 = arith.constant 0 : index
      %c0_78 = arith.constant 0 : index
      %371 = vector.load %arg4[%c0_77, %c0_78] : memref<16x128xf32, #tpu.memory_space<vmem>>, vector<16x128xf32>
      %c0_79 = arith.constant 0 : index
      %c0_80 = arith.constant 0 : index
      %372 = vector.load %arg12[%c0_79, %c0_80] : memref<16x128xf32, #tpu.memory_space<vmem>>, vector<16x128xf32>
      tpu.vector_store %arg12[%c0_79, %c0_80], %371 {strides = array<i32>} : memref<16x128xf32, #tpu.memory_space<vmem>>, vector<16x128xf32>,
    } else {
    }
    %c0 = arith.constant 0 : index
    %c0_1 = arith.constant 0 : index
    %3 = vector.load %arg3[%c0, %c0_1] : memref<128x128xbf16, #tpu.memory_space<vmem>>, vector<128x128xbf16>
    %c0_2 = arith.constant 0 : index
    %c0_3 = arith.constant 0 : index
    %4 = vector.load %arg5[%c0_2, %c0_3] : memref<128x384xbf16, #tpu.memory_space<vmem>>, vector<128x384xbf16>
    %cst = arith.constant dense<0.000000e+00> : vector<128x384xf32>
    %5 = tpu.matmul %3, %4, %cst {dimension_numbers = #tpu.dot_dimension_numbers<[1], [0], [0], [1], [0, 0, 1, 1], [], []>} : vector<128x128xbf16>, vector<128x384xbf16>, vector<128x384xf32> -> vector<128x384xf32>
    %c0_4 = arith.constant 0 : index
    %c0_5 = arith.constant 0 : index
    %6 = vector.load %arg6[%c0_4, %c0_5] : memref<1x384xf32, #tpu.memory_space<vmem>>, vector<1x384xf32>
    %7 = vector.broadcast %6 : vector<1x384xf32> to vector<128x384xf32>
    %8 = arith.addf %5, %7 : vector<128x384xf32>
    %c0_6 = arith.constant 0 : index
    %c0_7 = arith.constant 0 : index
    %9 = vector.load %arg11[%c0_6, %c0_7] : memref<128x384xf32, #tpu.memory_space<vmem>>, vector<128x384xf32>
    tpu.vector_store %arg11[%c0_6, %c0_7], %8 {strides = array<i32>} : memref<128x384xf32, #tpu.memory_space<vmem>>, vector<128x384xf32>,
    %c0_8 = arith.constant 0 : index
    %c0_9 = arith.constant 0 : index
    %10 = vector.load %arg7[%c0_8, %c0_9] : memref<128x384xbf16, #tpu.memory_space<vmem>>, vector<128x384xbf16>
    %c0_10 = arith.constant 0 : index
    %c0_11 = arith.constant 0 : index
    %11 = vector.load %arg8[%c0_10, %c0_11] : memref<1x128xf32, #tpu.memory_space<vmem>>, vector<1x128xf32>
    %c0_12 = arith.constant 0 : index
    %c0_13 = arith.constant 0 : index
    %12 = vector.load %arg2[%c0_12, %c0_13] : memref<16x1xi32, #tpu.memory_space<vmem>>, vector<16x1xi32>
    %c8_i32 = arith.constant 8 : i32
    %13 = arith.muli %arg1, %c8_i32 : i32
    %c0_14 = arith.constant 0 : index
    %c0_15 = arith.constant 0 : index
    %14 = vector.load %arg12[%c0_14, %c0_15] : memref<16x128xf32, #tpu.memory_space<vmem>>, vector<16x128xf32>
    %c0_i32_16 = arith.constant 0 : i32
    %c16_i32 = arith.constant 16 : i32
    %15 = arith.muli %c0_i32_16, %c16_i32 : i32
    %16 = tpu.assume_multiple %15, 16 : i32
    %17 = arith.index_cast %16 : i32 to index
    %c0_17 = arith.constant 0 : index
    %18 = vector.load %arg11[%17, %c0_17] : memref<128x384xf32, #tpu.memory_space<vmem>>, vector<16x384xf32>
    %19 = arith.truncf %14 : vector<16x128xf32> to vector<16x128xbf16>
    %cst_18 = arith.constant dense<0.000000e+00> : vector<16x384xf32>
    %20 = tpu.matmul %19, %10, %cst_18 {dimension_numbers = #tpu.dot_dimension_numbers<[1], [0], [0], [1], [0, 0, 1, 1], [], []>} : vector<16x128xbf16>, vector<128x384xbf16>, vector<16x384xf32> -> vector<16x384xf32>
    %21 = vector.extract_strided_slice %18 {offsets = [0, 0], sizes = [16, 128], strides = [1, 1]} : vector<16x384xf32> to vector<16x128xf32>
    %22 = vector.extract_strided_slice %20 {offsets = [0, 0], sizes = [16, 128], strides = [1, 1]} : vector<16x384xf32> to vector<16x128xf32>
    %23 = arith.addf %21, %22 : vector<16x128xf32>
    %24 = arith.negf %23 : vector<16x128xf32>
    %25 = math.exp %24 : vector<16x128xf32>
    %cst_19 = arith.constant 1.000000e+00 : f32
    %26 = vector.broadcast %cst_19 : f32 to vector<16x128xf32>
    %27 = arith.addf %26, %25 : vector<16x128xf32>
    %28 = arith.divf %26, %27 : vector<16x128xf32>
    %29 = vector.extract_strided_slice %18 {offsets = [0, 128], sizes = [16, 128], strides = [1, 1]} : vector<16x384xf32> to vector<16x128xf32>
    %30 = vector.extract_strided_slice %20 {offsets = [0, 128], sizes = [16, 128], strides = [1, 1]} : vector<16x384xf32> to vector<16x128xf32>
    %31 = arith.addf %29, %30 : vector<16x128xf32>
    %32 = arith.negf %31 : vector<16x128xf32>
    %33 = math.exp %32 : vector<16x128xf32>
    %cst_20 = arith.constant 1.000000e+00 : f32
    %34 = vector.broadcast %cst_20 : f32 to vector<16x128xf32>
    %35 = arith.addf %34, %33 : vector<16x128xf32>
    %36 = arith.divf %34, %35 : vector<16x128xf32>
    %37 = vector.extract_strided_slice %18 {offsets = [0, 256], sizes = [16, 128], strides = [1, 1]} : vector<16x384xf32> to vector<16x128xf32>
    %38 = vector.extract_strided_slice %20 {offsets = [0, 256], sizes = [16, 128], strides = [1, 1]} : vector<16x384xf32> to vector<16x128xf32>
    %39 = vector.broadcast %11 : vector<1x128xf32> to vector<16x128xf32>
    %40 = arith.addf %38, %39 : vector<16x128xf32>
    %41 = arith.mulf %28, %40 : vector<16x128xf32>
    %42 = arith.addf %37, %41 : vector<16x128xf32>
    %43 = math.tanh %42 : vector<16x128xf32>
    %44 = arith.subf %14, %43 : vector<16x128xf32>
    %45 = arith.mulf %36, %44 : vector<16x128xf32>
    %46 = arith.addf %43, %45 : vector<16x128xf32>
    %47 = arith.addi %13, %c0_i32_16 : i32
    %48 = vector.broadcast %47 : i32 to vector<16x1xi32>
    %49 = arith.cmpi slt, %48, %12 : vector<16x1xi32>
    %50 = vector.shape_cast %49 : vector<16x1xi1> to vector<16x1xi1>
    %51 = vector.broadcast %50 : vector<16x1xi1> to vector<16x128xi1>
    %52 = arith.select %51, %46, %14 : vector<16x128xi1>, vector<16x128xf32>
    %cst_21 = arith.constant 0.000000e+00 : f32
    %53 = vector.shape_cast %49 : vector<16x1xi1> to vector<16x1xi1>
    %54 = vector.broadcast %53 : vector<16x1xi1> to vector<16x128xi1>
    %55 = vector.broadcast %cst_21 : f32 to vector<16x128xf32>
    %56 = arith.select %54, %46, %55 : vector<16x128xi1>, vector<16x128xf32>
    %57 = arith.index_cast %16 : i32 to index
    %c0_22 = arith.constant 0 : index
    %58 = vector.load %arg9[%57, %c0_22] : memref<128x128xf32, #tpu.memory_space<vmem>>, vector<16x128xf32>
    tpu.vector_store %arg9[%57, %c0_22], %56 {strides = array<i32>} : memref<128x128xf32, #tpu.memory_space<vmem>>, vector<16x128xf32>,
    %c1_i32 = arith.constant 1 : i32
    %c16_i32_23 = arith.constant 16 : i32
    %59 = arith.muli %c1_i32, %c16_i32_23 : i32
    %60 = tpu.assume_multiple %59, 16 : i32
    %61 = arith.index_cast %60 : i32 to index
    %c0_24 = arith.constant 0 : index
    %62 = vector.load %arg11[%61, %c0_24] : memref<128x384xf32, #tpu.memory_space<vmem>>, vector<16x384xf32>
    %63 = arith.truncf %52 : vector<16x128xf32> to vector<16x128xbf16>
    %cst_25 = arith.constant dense<0.000000e+00> : vector<16x384xf32>
    %64 = tpu.matmul %63, %10, %cst_25 {dimension_numbers = #tpu.dot_dimension_numbers<[1], [0], [0], [1], [0, 0, 1, 1], [], []>} : vector<16x128xbf16>, vector<128x384xbf16>, vector<16x384xf32> -> vector<16x384xf32>
    %65 = vector.extract_strided_slice %62 {offsets = [0, 0], sizes = [16, 128], strides = [1, 1]} : vector<16x384xf32> to vector<16x128xf32>
    %66 = vector.extract_strided_slice %64 {offsets = [0, 0], sizes = [16, 128], strides = [1, 1]} : vector<16x384xf32> to vector<16x128xf32>
    %67 = arith.addf %65, %66 : vector<16x128xf32>
    %68 = arith.negf %67 : vector<16x128xf32>
    %69 = math.exp %68 : vector<16x128xf32>
    %cst_26 = arith.constant 1.000000e+00 : f32
    %70 = vector.broadcast %cst_26 : f32 to vector<16x128xf32>
    %71 = arith.addf %70, %69 : vector<16x128xf32>
    %72 = arith.divf %70, %71 : vector<16x128xf32>
    %73 = vector.extract_strided_slice %62 {offsets = [0, 128], sizes = [16, 128], strides = [1, 1]} : vector<16x384xf32> to vector<16x128xf32>
    %74 = vector.extract_strided_slice %64 {offsets = [0, 128], sizes = [16, 128], strides = [1, 1]} : vector<16x384xf32> to vector<16x128xf32>
    %75 = arith.addf %73, %74 : vector<16x128xf32>
    %76 = arith.negf %75 : vector<16x128xf32>
    %77 = math.exp %76 : vector<16x128xf32>
    %cst_27 = arith.constant 1.000000e+00 : f32
    %78 = vector.broadcast %cst_27 : f32 to vector<16x128xf32>
    %79 = arith.addf %78, %77 : vector<16x128xf32>
    %80 = arith.divf %78, %79 : vector<16x128xf32>
    %81 = vector.extract_strided_slice %62 {offsets = [0, 256], sizes = [16, 128], strides = [1, 1]} : vector<16x384xf32> to vector<16x128xf32>
    %82 = vector.extract_strided_slice %64 {offsets = [0, 256], sizes = [16, 128], strides = [1, 1]} : vector<16x384xf32> to vector<16x128xf32>
    %83 = vector.broadcast %11 : vector<1x128xf32> to vector<16x128xf32>
    %84 = arith.addf %82, %83 : vector<16x128xf32>
    %85 = arith.mulf %72, %84 : vector<16x128xf32>
    %86 = arith.addf %81, %85 : vector<16x128xf32>
    %87 = math.tanh %86 : vector<16x128xf32>
    %88 = arith.subf %52, %87 : vector<16x128xf32>
    %89 = arith.mulf %80, %88 : vector<16x128xf32>
    %90 = arith.addf %87, %89 : vector<16x128xf32>
    %91 = arith.addi %13, %c1_i32 : i32
    %92 = vector.broadcast %91 : i32 to vector<16x1xi32>
    %93 = arith.cmpi slt, %92, %12 : vector<16x1xi32>
    %94 = vector.shape_cast %93 : vector<16x1xi1> to vector<16x1xi1>
    %95 = vector.broadcast %94 : vector<16x1xi1> to vector<16x128xi1>
    %96 = arith.select %95, %90, %52 : vector<16x128xi1>, vector<16x128xf32>
    %cst_28 = arith.constant 0.000000e+00 : f32
    %97 = vector.shape_cast %93 : vector<16x1xi1> to vector<16x1xi1>
    %98 = vector.broadcast %97 : vector<16x1xi1> to vector<16x128xi1>
    %99 = vector.broadcast %cst_28 : f32 to vector<16x128xf32>
    %100 = arith.select %98, %90, %99 : vector<16x128xi1>, vector<16x128xf32>
    %101 = arith.index_cast %60 : i32 to index
    %c0_29 = arith.constant 0 : index
    %102 = vector.load %arg9[%101, %c0_29] : memref<128x128xf32, #tpu.memory_space<vmem>>, vector<16x128xf32>
    tpu.vector_store %arg9[%101, %c0_29], %100 {strides = array<i32>} : memref<128x128xf32, #tpu.memory_space<vmem>>, vector<16x128xf32>,
    %c2_i32 = arith.constant 2 : i32
    %c16_i32_30 = arith.constant 16 : i32
    %103 = arith.muli %c2_i32, %c16_i32_30 : i32
    %104 = tpu.assume_multiple %103, 16 : i32
    %105 = arith.index_cast %104 : i32 to index
    %c0_31 = arith.constant 0 : index
    %106 = vector.load %arg11[%105, %c0_31] : memref<128x384xf32, #tpu.memory_space<vmem>>, vector<16x384xf32>
    %107 = arith.truncf %96 : vector<16x128xf32> to vector<16x128xbf16>
    %cst_32 = arith.constant dense<0.000000e+00> : vector<16x384xf32>
    %108 = tpu.matmul %107, %10, %cst_32 {dimension_numbers = #tpu.dot_dimension_numbers<[1], [0], [0], [1], [0, 0, 1, 1], [], []>} : vector<16x128xbf16>, vector<128x384xbf16>, vector<16x384xf32> -> vector<16x384xf32>
    %109 = vector.extract_strided_slice %106 {offsets = [0, 0], sizes = [16, 128], strides = [1, 1]} : vector<16x384xf32> to vector<16x128xf32>
    %110 = vector.extract_strided_slice %108 {offsets = [0, 0], sizes = [16, 128], strides = [1, 1]} : vector<16x384xf32> to vector<16x128xf32>
    %111 = arith.addf %109, %110 : vector<16x128xf32>
    %112 = arith.negf %111 : vector<16x128xf32>
    %113 = math.exp %112 : vector<16x128xf32>
    %cst_33 = arith.constant 1.000000e+00 : f32
    %114 = vector.broadcast %cst_33 : f32 to vector<16x128xf32>
    %115 = arith.addf %114, %113 : vector<16x128xf32>
    %116 = arith.divf %114, %115 : vector<16x128xf32>
    %117 = vector.extract_strided_slice %106 {offsets = [0, 128], sizes = [16, 128], strides = [1, 1]} : vector<16x384xf32> to vector<16x128xf32>
    %118 = vector.extract_strided_slice %108 {offsets = [0, 128], sizes = [16, 128], strides = [1, 1]} : vector<16x384xf32> to vector<16x128xf32>
    %119 = arith.addf %117, %118 : vector<16x128xf32>
    %120 = arith.negf %119 : vector<16x128xf32>
    %121 = math.exp %120 : vector<16x128xf32>
    %cst_34 = arith.constant 1.000000e+00 : f32
    %122 = vector.broadcast %cst_34 : f32 to vector<16x128xf32>
    %123 = arith.addf %122, %121 : vector<16x128xf32>
    %124 = arith.divf %122, %123 : vector<16x128xf32>
    %125 = vector.extract_strided_slice %106 {offsets = [0, 256], sizes = [16, 128], strides = [1, 1]} : vector<16x384xf32> to vector<16x128xf32>
    %126 = vector.extract_strided_slice %108 {offsets = [0, 256], sizes = [16, 128], strides = [1, 1]} : vector<16x384xf32> to vector<16x128xf32>
    %127 = vector.broadcast %11 : vector<1x128xf32> to vector<16x128xf32>
    %128 = arith.addf %126, %127 : vector<16x128xf32>
    %129 = arith.mulf %116, %128 : vector<16x128xf32>
    %130 = arith.addf %125, %129 : vector<16x128xf32>
    %131 = math.tanh %130 : vector<16x128xf32>
    %132 = arith.subf %96, %131 : vector<16x128xf32>
    %133 = arith.mulf %124, %132 : vector<16x128xf32>
    %134 = arith.addf %131, %133 : vector<16x128xf32>
    %135 = arith.addi %13, %c2_i32 : i32
    %136 = vector.broadcast %135 : i32 to vector<16x1xi32>
    %137 = arith.cmpi slt, %136, %12 : vector<16x1xi32>
    %138 = vector.shape_cast %137 : vector<16x1xi1> to vector<16x1xi1>
    %139 = vector.broadcast %138 : vector<16x1xi1> to vector<16x128xi1>
    %140 = arith.select %139, %134, %96 : vector<16x128xi1>, vector<16x128xf32>
    %cst_35 = arith.constant 0.000000e+00 : f32
    %141 = vector.shape_cast %137 : vector<16x1xi1> to vector<16x1xi1>
    %142 = vector.broadcast %141 : vector<16x1xi1> to vector<16x128xi1>
    %143 = vector.broadcast %cst_35 : f32 to vector<16x128xf32>
    %144 = arith.select %142, %134, %143 : vector<16x128xi1>, vector<16x128xf32>
    %145 = arith.index_cast %104 : i32 to index
    %c0_36 = arith.constant 0 : index
    %146 = vector.load %arg9[%145, %c0_36] : memref<128x128xf32, #tpu.memory_space<vmem>>, vector<16x128xf32>
    tpu.vector_store %arg9[%145, %c0_36], %144 {strides = array<i32>} : memref<128x128xf32, #tpu.memory_space<vmem>>, vector<16x128xf32>,
    %c3_i32 = arith.constant 3 : i32
    %c16_i32_37 = arith.constant 16 : i32
    %147 = arith.muli %c3_i32, %c16_i32_37 : i32
    %148 = tpu.assume_multiple %147, 16 : i32
    %149 = arith.index_cast %148 : i32 to index
    %c0_38 = arith.constant 0 : index
    %150 = vector.load %arg11[%149, %c0_38] : memref<128x384xf32, #tpu.memory_space<vmem>>, vector<16x384xf32>
    %151 = arith.truncf %140 : vector<16x128xf32> to vector<16x128xbf16>
    %cst_39 = arith.constant dense<0.000000e+00> : vector<16x384xf32>
    %152 = tpu.matmul %151, %10, %cst_39 {dimension_numbers = #tpu.dot_dimension_numbers<[1], [0], [0], [1], [0, 0, 1, 1], [], []>} : vector<16x128xbf16>, vector<128x384xbf16>, vector<16x384xf32> -> vector<16x384xf32>
    %153 = vector.extract_strided_slice %150 {offsets = [0, 0], sizes = [16, 128], strides = [1, 1]} : vector<16x384xf32> to vector<16x128xf32>
    %154 = vector.extract_strided_slice %152 {offsets = [0, 0], sizes = [16, 128], strides = [1, 1]} : vector<16x384xf32> to vector<16x128xf32>
    %155 = arith.addf %153, %154 : vector<16x128xf32>
    %156 = arith.negf %155 : vector<16x128xf32>
    %157 = math.exp %156 : vector<16x128xf32>
    %cst_40 = arith.constant 1.000000e+00 : f32
    %158 = vector.broadcast %cst_40 : f32 to vector<16x128xf32>
    %159 = arith.addf %158, %157 : vector<16x128xf32>
    %160 = arith.divf %158, %159 : vector<16x128xf32>
    %161 = vector.extract_strided_slice %150 {offsets = [0, 128], sizes = [16, 128], strides = [1, 1]} : vector<16x384xf32> to vector<16x128xf32>
    %162 = vector.extract_strided_slice %152 {offsets = [0, 128], sizes = [16, 128], strides = [1, 1]} : vector<16x384xf32> to vector<16x128xf32>
    %163 = arith.addf %161, %162 : vector<16x128xf32>
    %164 = arith.negf %163 : vector<16x128xf32>
    %165 = math.exp %164 : vector<16x128xf32>
    %cst_41 = arith.constant 1.000000e+00 : f32
    %166 = vector.broadcast %cst_41 : f32 to vector<16x128xf32>
    %167 = arith.addf %166, %165 : vector<16x128xf32>
    %168 = arith.divf %166, %167 : vector<16x128xf32>
    %169 = vector.extract_strided_slice %150 {offsets = [0, 256], sizes = [16, 128], strides = [1, 1]} : vector<16x384xf32> to vector<16x128xf32>
    %170 = vector.extract_strided_slice %152 {offsets = [0, 256], sizes = [16, 128], strides = [1, 1]} : vector<16x384xf32> to vector<16x128xf32>
    %171 = vector.broadcast %11 : vector<1x128xf32> to vector<16x128xf32>
    %172 = arith.addf %170, %171 : vector<16x128xf32>
    %173 = arith.mulf %160, %172 : vector<16x128xf32>
    %174 = arith.addf %169, %173 : vector<16x128xf32>
    %175 = math.tanh %174 : vector<16x128xf32>
    %176 = arith.subf %140, %175 : vector<16x128xf32>
    %177 = arith.mulf %168, %176 : vector<16x128xf32>
    %178 = arith.addf %175, %177 : vector<16x128xf32>
    %179 = arith.addi %13, %c3_i32 : i32
    %180 = vector.broadcast %179 : i32 to vector<16x1xi32>
    %181 = arith.cmpi slt, %180, %12 : vector<16x1xi32>
    %182 = vector.shape_cast %181 : vector<16x1xi1> to vector<16x1xi1>
    %183 = vector.broadcast %182 : vector<16x1xi1> to vector<16x128xi1>
    %184 = arith.select %183, %178, %140 : vector<16x128xi1>, vector<16x128xf32>
    %cst_42 = arith.constant 0.000000e+00 : f32
    %185 = vector.shape_cast %181 : vector<16x1xi1> to vector<16x1xi1>
    %186 = vector.broadcast %185 : vector<16x1xi1> to vector<16x128xi1>
    %187 = vector.broadcast %cst_42 : f32 to vector<16x128xf32>
    %188 = arith.select %186, %178, %187 : vector<16x128xi1>, vector<16x128xf32>
    %189 = arith.index_cast %148 : i32 to index
    %c0_43 = arith.constant 0 : index
    %190 = vector.load %arg9[%189, %c0_43] : memref<128x128xf32, #tpu.memory_space<vmem>>, vector<16x128xf32>
    tpu.vector_store %arg9[%189, %c0_43], %188 {strides = array<i32>} : memref<128x128xf32, #tpu.memory_space<vmem>>, vector<16x128xf32>,
    %c4_i32 = arith.constant 4 : i32
    %c16_i32_44 = arith.constant 16 : i32
    %191 = arith.muli %c4_i32, %c16_i32_44 : i32
    %192 = tpu.assume_multiple %191, 16 : i32
    %193 = arith.index_cast %192 : i32 to index
    %c0_45 = arith.constant 0 : index
    %194 = vector.load %arg11[%193, %c0_45] : memref<128x384xf32, #tpu.memory_space<vmem>>, vector<16x384xf32>
    %195 = arith.truncf %184 : vector<16x128xf32> to vector<16x128xbf16>
    %cst_46 = arith.constant dense<0.000000e+00> : vector<16x384xf32>
    %196 = tpu.matmul %195, %10, %cst_46 {dimension_numbers = #tpu.dot_dimension_numbers<[1], [0], [0], [1], [0, 0, 1, 1], [], []>} : vector<16x128xbf16>, vector<128x384xbf16>, vector<16x384xf32> -> vector<16x384xf32>
    %197 = vector.extract_strided_slice %194 {offsets = [0, 0], sizes = [16, 128], strides = [1, 1]} : vector<16x384xf32> to vector<16x128xf32>
    %198 = vector.extract_strided_slice %196 {offsets = [0, 0], sizes = [16, 128], strides = [1, 1]} : vector<16x384xf32> to vector<16x128xf32>
    %199 = arith.addf %197, %198 : vector<16x128xf32>
    %200 = arith.negf %199 : vector<16x128xf32>
    %201 = math.exp %200 : vector<16x128xf32>
    %cst_47 = arith.constant 1.000000e+00 : f32
    %202 = vector.broadcast %cst_47 : f32 to vector<16x128xf32>
    %203 = arith.addf %202, %201 : vector<16x128xf32>
    %204 = arith.divf %202, %203 : vector<16x128xf32>
    %205 = vector.extract_strided_slice %194 {offsets = [0, 128], sizes = [16, 128], strides = [1, 1]} : vector<16x384xf32> to vector<16x128xf32>
    %206 = vector.extract_strided_slice %196 {offsets = [0, 128], sizes = [16, 128], strides = [1, 1]} : vector<16x384xf32> to vector<16x128xf32>
    %207 = arith.addf %205, %206 : vector<16x128xf32>
    %208 = arith.negf %207 : vector<16x128xf32>
    %209 = math.exp %208 : vector<16x128xf32>
    %cst_48 = arith.constant 1.000000e+00 : f32
    %210 = vector.broadcast %cst_48 : f32 to vector<16x128xf32>
    %211 = arith.addf %210, %209 : vector<16x128xf32>
    %212 = arith.divf %210, %211 : vector<16x128xf32>
    %213 = vector.extract_strided_slice %194 {offsets = [0, 256], sizes = [16, 128], strides = [1, 1]} : vector<16x384xf32> to vector<16x128xf32>
    %214 = vector.extract_strided_slice %196 {offsets = [0, 256], sizes = [16, 128], strides = [1, 1]} : vector<16x384xf32> to vector<16x128xf32>
    %215 = vector.broadcast %11 : vector<1x128xf32> to vector<16x128xf32>
    %216 = arith.addf %214, %215 : vector<16x128xf32>
    %217 = arith.mulf %204, %216 : vector<16x128xf32>
    %218 = arith.addf %213, %217 : vector<16x128xf32>
    %219 = math.tanh %218 : vector<16x128xf32>
    %220 = arith.subf %184, %219 : vector<16x128xf32>
    %221 = arith.mulf %212, %220 : vector<16x128xf32>
    %222 = arith.addf %219, %221 : vector<16x128xf32>
    %223 = arith.addi %13, %c4_i32 : i32
    %224 = vector.broadcast %223 : i32 to vector<16x1xi32>
    %225 = arith.cmpi slt, %224, %12 : vector<16x1xi32>
    %226 = vector.shape_cast %225 : vector<16x1xi1> to vector<16x1xi1>
    %227 = vector.broadcast %226 : vector<16x1xi1> to vector<16x128xi1>
    %228 = arith.select %227, %222, %184 : vector<16x128xi1>, vector<16x128xf32>
    %cst_49 = arith.constant 0.000000e+00 : f32
    %229 = vector.shape_cast %225 : vector<16x1xi1> to vector<16x1xi1>
    %230 = vector.broadcast %229 : vector<16x1xi1> to vector<16x128xi1>
    %231 = vector.broadcast %cst_49 : f32 to vector<16x128xf32>
    %232 = arith.select %230, %222, %231 : vector<16x128xi1>, vector<16x128xf32>
    %233 = arith.index_cast %192 : i32 to index
    %c0_50 = arith.constant 0 : index
    %234 = vector.load %arg9[%233, %c0_50] : memref<128x128xf32, #tpu.memory_space<vmem>>, vector<16x128xf32>
    tpu.vector_store %arg9[%233, %c0_50], %232 {strides = array<i32>} : memref<128x128xf32, #tpu.memory_space<vmem>>, vector<16x128xf32>,
    %c5_i32 = arith.constant 5 : i32
    %c16_i32_51 = arith.constant 16 : i32
    %235 = arith.muli %c5_i32, %c16_i32_51 : i32
    %236 = tpu.assume_multiple %235, 16 : i32
    %237 = arith.index_cast %236 : i32 to index
    %c0_52 = arith.constant 0 : index
    %238 = vector.load %arg11[%237, %c0_52] : memref<128x384xf32, #tpu.memory_space<vmem>>, vector<16x384xf32>
    %239 = arith.truncf %228 : vector<16x128xf32> to vector<16x128xbf16>
    %cst_53 = arith.constant dense<0.000000e+00> : vector<16x384xf32>
    %240 = tpu.matmul %239, %10, %cst_53 {dimension_numbers = #tpu.dot_dimension_numbers<[1], [0], [0], [1], [0, 0, 1, 1], [], []>} : vector<16x128xbf16>, vector<128x384xbf16>, vector<16x384xf32> -> vector<16x384xf32>
    %241 = vector.extract_strided_slice %238 {offsets = [0, 0], sizes = [16, 128], strides = [1, 1]} : vector<16x384xf32> to vector<16x128xf32>
    %242 = vector.extract_strided_slice %240 {offsets = [0, 0], sizes = [16, 128], strides = [1, 1]} : vector<16x384xf32> to vector<16x128xf32>
    %243 = arith.addf %241, %242 : vector<16x128xf32>
    %244 = arith.negf %243 : vector<16x128xf32>
    %245 = math.exp %244 : vector<16x128xf32>
    %cst_54 = arith.constant 1.000000e+00 : f32
    %246 = vector.broadcast %cst_54 : f32 to vector<16x128xf32>
    %247 = arith.addf %246, %245 : vector<16x128xf32>
    %248 = arith.divf %246, %247 : vector<16x128xf32>
    %249 = vector.extract_strided_slice %238 {offsets = [0, 128], sizes = [16, 128], strides = [1, 1]} : vector<16x384xf32> to vector<16x128xf32>
    %250 = vector.extract_strided_slice %240 {offsets = [0, 128], sizes = [16, 128], strides = [1, 1]} : vector<16x384xf32> to vector<16x128xf32>
    %251 = arith.addf %249, %250 : vector<16x128xf32>
    %252 = arith.negf %251 : vector<16x128xf32>
    %253 = math.exp %252 : vector<16x128xf32>
    %cst_55 = arith.constant 1.000000e+00 : f32
    %254 = vector.broadcast %cst_55 : f32 to vector<16x128xf32>
    %255 = arith.addf %254, %253 : vector<16x128xf32>
    %256 = arith.divf %254, %255 : vector<16x128xf32>
    %257 = vector.extract_strided_slice %238 {offsets = [0, 256], sizes = [16, 128], strides = [1, 1]} : vector<16x384xf32> to vector<16x128xf32>
    %258 = vector.extract_strided_slice %240 {offsets = [0, 256], sizes = [16, 128], strides = [1, 1]} : vector<16x384xf32> to vector<16x128xf32>
    %259 = vector.broadcast %11 : vector<1x128xf32> to vector<16x128xf32>
    %260 = arith.addf %258, %259 : vector<16x128xf32>
    %261 = arith.mulf %248, %260 : vector<16x128xf32>
    %262 = arith.addf %257, %261 : vector<16x128xf32>
    %263 = math.tanh %262 : vector<16x128xf32>
    %264 = arith.subf %228, %263 : vector<16x128xf32>
    %265 = arith.mulf %256, %264 : vector<16x128xf32>
    %266 = arith.addf %263, %265 : vector<16x128xf32>
    %267 = arith.addi %13, %c5_i32 : i32
    %268 = vector.broadcast %267 : i32 to vector<16x1xi32>
    %269 = arith.cmpi slt, %268, %12 : vector<16x1xi32>
    %270 = vector.shape_cast %269 : vector<16x1xi1> to vector<16x1xi1>
    %271 = vector.broadcast %270 : vector<16x1xi1> to vector<16x128xi1>
    %272 = arith.select %271, %266, %228 : vector<16x128xi1>, vector<16x128xf32>
    %cst_56 = arith.constant 0.000000e+00 : f32
    %273 = vector.shape_cast %269 : vector<16x1xi1> to vector<16x1xi1>
    %274 = vector.broadcast %273 : vector<16x1xi1> to vector<16x128xi1>
    %275 = vector.broadcast %cst_56 : f32 to vector<16x128xf32>
    %276 = arith.select %274, %266, %275 : vector<16x128xi1>, vector<16x128xf32>
    %277 = arith.index_cast %236 : i32 to index
    %c0_57 = arith.constant 0 : index
    %278 = vector.load %arg9[%277, %c0_57] : memref<128x128xf32, #tpu.memory_space<vmem>>, vector<16x128xf32>
    tpu.vector_store %arg9[%277, %c0_57], %276 {strides = array<i32>} : memref<128x128xf32, #tpu.memory_space<vmem>>, vector<16x128xf32>,
    %c6_i32 = arith.constant 6 : i32
    %c16_i32_58 = arith.constant 16 : i32
    %279 = arith.muli %c6_i32, %c16_i32_58 : i32
    %280 = tpu.assume_multiple %279, 16 : i32
    %281 = arith.index_cast %280 : i32 to index
    %c0_59 = arith.constant 0 : index
    %282 = vector.load %arg11[%281, %c0_59] : memref<128x384xf32, #tpu.memory_space<vmem>>, vector<16x384xf32>
    %283 = arith.truncf %272 : vector<16x128xf32> to vector<16x128xbf16>
    %cst_60 = arith.constant dense<0.000000e+00> : vector<16x384xf32>
    %284 = tpu.matmul %283, %10, %cst_60 {dimension_numbers = #tpu.dot_dimension_numbers<[1], [0], [0], [1], [0, 0, 1, 1], [], []>} : vector<16x128xbf16>, vector<128x384xbf16>, vector<16x384xf32> -> vector<16x384xf32>
    %285 = vector.extract_strided_slice %282 {offsets = [0, 0], sizes = [16, 128], strides = [1, 1]} : vector<16x384xf32> to vector<16x128xf32>
    %286 = vector.extract_strided_slice %284 {offsets = [0, 0], sizes = [16, 128], strides = [1, 1]} : vector<16x384xf32> to vector<16x128xf32>
    %287 = arith.addf %285, %286 : vector<16x128xf32>
    %288 = arith.negf %287 : vector<16x128xf32>
    %289 = math.exp %288 : vector<16x128xf32>
    %cst_61 = arith.constant 1.000000e+00 : f32
    %290 = vector.broadcast %cst_61 : f32 to vector<16x128xf32>
    %291 = arith.addf %290, %289 : vector<16x128xf32>
    %292 = arith.divf %290, %291 : vector<16x128xf32>
    %293 = vector.extract_strided_slice %282 {offsets = [0, 128], sizes = [16, 128], strides = [1, 1]} : vector<16x384xf32> to vector<16x128xf32>
    %294 = vector.extract_strided_slice %284 {offsets = [0, 128], sizes = [16, 128], strides = [1, 1]} : vector<16x384xf32> to vector<16x128xf32>
    %295 = arith.addf %293, %294 : vector<16x128xf32>
    %296 = arith.negf %295 : vector<16x128xf32>
    %297 = math.exp %296 : vector<16x128xf32>
    %cst_62 = arith.constant 1.000000e+00 : f32
    %298 = vector.broadcast %cst_62 : f32 to vector<16x128xf32>
    %299 = arith.addf %298, %297 : vector<16x128xf32>
    %300 = arith.divf %298, %299 : vector<16x128xf32>
    %301 = vector.extract_strided_slice %282 {offsets = [0, 256], sizes = [16, 128], strides = [1, 1]} : vector<16x384xf32> to vector<16x128xf32>
    %302 = vector.extract_strided_slice %284 {offsets = [0, 256], sizes = [16, 128], strides = [1, 1]} : vector<16x384xf32> to vector<16x128xf32>
    %303 = vector.broadcast %11 : vector<1x128xf32> to vector<16x128xf32>
    %304 = arith.addf %302, %303 : vector<16x128xf32>
    %305 = arith.mulf %292, %304 : vector<16x128xf32>
    %306 = arith.addf %301, %305 : vector<16x128xf32>
    %307 = math.tanh %306 : vector<16x128xf32>
    %308 = arith.subf %272, %307 : vector<16x128xf32>
    %309 = arith.mulf %300, %308 : vector<16x128xf32>
    %310 = arith.addf %307, %309 : vector<16x128xf32>
    %311 = arith.addi %13, %c6_i32 : i32
    %312 = vector.broadcast %311 : i32 to vector<16x1xi32>
    %313 = arith.cmpi slt, %312, %12 : vector<16x1xi32>
    %314 = vector.shape_cast %313 : vector<16x1xi1> to vector<16x1xi1>
    %315 = vector.broadcast %314 : vector<16x1xi1> to vector<16x128xi1>
    %316 = arith.select %315, %310, %272 : vector<16x128xi1>, vector<16x128xf32>
    %cst_63 = arith.constant 0.000000e+00 : f32
    %317 = vector.shape_cast %313 : vector<16x1xi1> to vector<16x1xi1>
    %318 = vector.broadcast %317 : vector<16x1xi1> to vector<16x128xi1>
    %319 = vector.broadcast %cst_63 : f32 to vector<16x128xf32>
    %320 = arith.select %318, %310, %319 : vector<16x128xi1>, vector<16x128xf32>
    %321 = arith.index_cast %280 : i32 to index
    %c0_64 = arith.constant 0 : index
    %322 = vector.load %arg9[%321, %c0_64] : memref<128x128xf32, #tpu.memory_space<vmem>>, vector<16x128xf32>
    tpu.vector_store %arg9[%321, %c0_64], %320 {strides = array<i32>} : memref<128x128xf32, #tpu.memory_space<vmem>>, vector<16x128xf32>,
    %c7_i32 = arith.constant 7 : i32
    %c16_i32_65 = arith.constant 16 : i32
    %323 = arith.muli %c7_i32, %c16_i32_65 : i32
    %324 = tpu.assume_multiple %323, 16 : i32
    %325 = arith.index_cast %324 : i32 to index
    %c0_66 = arith.constant 0 : index
    %326 = vector.load %arg11[%325, %c0_66] : memref<128x384xf32, #tpu.memory_space<vmem>>, vector<16x384xf32>
    %327 = arith.truncf %316 : vector<16x128xf32> to vector<16x128xbf16>
    %cst_67 = arith.constant dense<0.000000e+00> : vector<16x384xf32>
    %328 = tpu.matmul %327, %10, %cst_67 {dimension_numbers = #tpu.dot_dimension_numbers<[1], [0], [0], [1], [0, 0, 1, 1], [], []>} : vector<16x128xbf16>, vector<128x384xbf16>, vector<16x384xf32> -> vector<16x384xf32>
    %329 = vector.extract_strided_slice %326 {offsets = [0, 0], sizes = [16, 128], strides = [1, 1]} : vector<16x384xf32> to vector<16x128xf32>
    %330 = vector.extract_strided_slice %328 {offsets = [0, 0], sizes = [16, 128], strides = [1, 1]} : vector<16x384xf32> to vector<16x128xf32>
    %331 = arith.addf %329, %330 : vector<16x128xf32>
    %332 = arith.negf %331 : vector<16x128xf32>
    %333 = math.exp %332 : vector<16x128xf32>
    %cst_68 = arith.constant 1.000000e+00 : f32
    %334 = vector.broadcast %cst_68 : f32 to vector<16x128xf32>
    %335 = arith.addf %334, %333 : vector<16x128xf32>
    %336 = arith.divf %334, %335 : vector<16x128xf32>
    %337 = vector.extract_strided_slice %326 {offsets = [0, 128], sizes = [16, 128], strides = [1, 1]} : vector<16x384xf32> to vector<16x128xf32>
    %338 = vector.extract_strided_slice %328 {offsets = [0, 128], sizes = [16, 128], strides = [1, 1]} : vector<16x384xf32> to vector<16x128xf32>
    %339 = arith.addf %337, %338 : vector<16x128xf32>
    %340 = arith.negf %339 : vector<16x128xf32>
    %341 = math.exp %340 : vector<16x128xf32>
    %cst_69 = arith.constant 1.000000e+00 : f32
    %342 = vector.broadcast %cst_69 : f32 to vector<16x128xf32>
    %343 = arith.addf %342, %341 : vector<16x128xf32>
    %344 = arith.divf %342, %343 : vector<16x128xf32>
    %345 = vector.extract_strided_slice %326 {offsets = [0, 256], sizes = [16, 128], strides = [1, 1]} : vector<16x384xf32> to vector<16x128xf32>
    %346 = vector.extract_strided_slice %328 {offsets = [0, 256], sizes = [16, 128], strides = [1, 1]} : vector<16x384xf32> to vector<16x128xf32>
    %347 = vector.broadcast %11 : vector<1x128xf32> to vector<16x128xf32>
    %348 = arith.addf %346, %347 : vector<16x128xf32>
    %349 = arith.mulf %336, %348 : vector<16x128xf32>
    %350 = arith.addf %345, %349 : vector<16x128xf32>
    %351 = math.tanh %350 : vector<16x128xf32>
    %352 = arith.subf %316, %351 : vector<16x128xf32>
    %353 = arith.mulf %344, %352 : vector<16x128xf32>
    %354 = arith.addf %351, %353 : vector<16x128xf32>
    %355 = arith.addi %13, %c7_i32 : i32
    %356 = vector.broadcast %355 : i32 to vector<16x1xi32>
    %357 = arith.cmpi slt, %356, %12 : vector<16x1xi32>
    %358 = vector.shape_cast %357 : vector<16x1xi1> to vector<16x1xi1>
    %359 = vector.broadcast %358 : vector<16x1xi1> to vector<16x128xi1>
    %360 = arith.select %359, %354, %316 : vector<16x128xi1>, vector<16x128xf32>
    %cst_70 = arith.constant 0.000000e+00 : f32
    %361 = vector.shape_cast %357 : vector<16x1xi1> to vector<16x1xi1>
    %362 = vector.broadcast %361 : vector<16x1xi1> to vector<16x128xi1>
    %363 = vector.broadcast %cst_70 : f32 to vector<16x128xf32>
    %364 = arith.select %362, %354, %363 : vector<16x128xi1>, vector<16x128xf32>
    %365 = arith.index_cast %324 : i32 to index
    %c0_71 = arith.constant 0 : index
    %366 = vector.load %arg9[%365, %c0_71] : memref<128x128xf32, #tpu.memory_space<vmem>>, vector<16x128xf32>
    tpu.vector_store %arg9[%365, %c0_71], %364 {strides = array<i32>} : memref<128x128xf32, #tpu.memory_space<vmem>>, vector<16x128xf32>,
    %c8_i32_72 = arith.constant 8 : i32
    %c0_73 = arith.constant 0 : index
    %c0_74 = arith.constant 0 : index
    %367 = vector.load %arg12[%c0_73, %c0_74] : memref<16x128xf32, #tpu.memory_space<vmem>>, vector<16x128xf32>
    tpu.vector_store %arg12[%c0_73, %c0_74], %360 {strides = array<i32>} : memref<16x128xf32, #tpu.memory_space<vmem>>, vector<16x128xf32>,
    %c0_i32_75 = arith.constant 0 : i32
    %368 = arith.cmpi eq, %arg1, %c0_i32_75 : i32
    %369 = arith.extui %368 : i1 to i32
    %c0_i32_76 = arith.constant 0 : i32
    %370 = arith.cmpi ne, %369, %c0_i32_76 : i32
    scf.if %370 {
      %c0_77 = arith.constant 0 : index
      %c0_78 = arith.constant 0 : index
      %371 = vector.load %arg10[%c0_77, %c0_78] : memref<16x128xf32, #tpu.memory_space<vmem>>, vector<16x128xf32>
      tpu.vector_store %arg10[%c0_77, %c0_78], %360 {strides = array<i32>} : memref<16x128xf32, #tpu.memory_space<vmem>>, vector<16x128xf32>,
    } else {
    }
    return
  }
  func.func @transform_0(%arg0: i32, %arg1: i32) -> (i32, i32) {
    %c0_i32 = arith.constant 0 : i32
    %c0_i32_0 = arith.constant 0 : i32
    return %arg0, %c0_i32 : i32, i32
  }
  func.func @transform_1(%arg0: i32, %arg1: i32) -> (i32, i32) {
    %c1_i32 = arith.constant 1 : i32
    %0 = arith.muli %arg0, %c1_i32 : i32
    %1 = arith.addi %0, %arg1 : i32
    %c0_i32 = arith.constant 0 : i32
    %c0_i32_0 = arith.constant 0 : i32
    return %1, %c0_i32 : i32, i32
  }
  func.func @transform_2(%arg0: i32, %arg1: i32) -> (i32, i32) {
    %c0_i32 = arith.constant 0 : i32
    %c0_i32_0 = arith.constant 0 : i32
    return %arg0, %c0_i32 : i32, i32
  }
  func.func @transform_3(%arg0: i32, %arg1: i32) -> (i32, i32) {
    %c0_i32 = arith.constant 0 : i32
    %c0_i32_0 = arith.constant 0 : i32
    %c0_i32_1 = arith.constant 0 : i32
    return %c0_i32, %c0_i32_0 : i32, i32
  }
  func.func @transform_4(%arg0: i32, %arg1: i32) -> (i32, i32) {
    %c0_i32 = arith.constant 0 : i32
    %c0_i32_0 = arith.constant 0 : i32
    %c0_i32_1 = arith.constant 0 : i32
    return %c0_i32, %c0_i32_0 : i32, i32
  }
  func.func @transform_5(%arg0: i32, %arg1: i32) -> (i32, i32) {
    %c0_i32 = arith.constant 0 : i32
    %c0_i32_0 = arith.constant 0 : i32
    %c0_i32_1 = arith.constant 0 : i32
    return %c0_i32, %c0_i32_0 : i32, i32
  }
  func.func @transform_6(%arg0: i32, %arg1: i32) -> (i32, i32) {
    %c0_i32 = arith.constant 0 : i32
    %c0_i32_0 = arith.constant 0 : i32
    %c0_i32_1 = arith.constant 0 : i32
    return %c0_i32, %c0_i32_0 : i32, i32
  }
  func.func @transform_7(%arg0: i32, %arg1: i32) -> (i32, i32) {
    %c1_i32 = arith.constant 1 : i32
    %0 = arith.muli %arg0, %c1_i32 : i32
    %1 = arith.addi %0, %arg1 : i32
    %c0_i32 = arith.constant 0 : i32
    %c0_i32_0 = arith.constant 0 : i32
    return %1, %c0_i32 : i32, i32
  }
  func.func @transform_8(%arg0: i32, %arg1: i32) -> (i32, i32) {
    %c0_i32 = arith.constant 0 : i32
    %c0_i32_0 = arith.constant 0 : i32
    return %arg0, %c0_i32 : i32, i32
  }
}

</mosaic_0001>

<llo_original>
// kernel: encoder_rnn_forward.3
$region0: #{encoder_rnn_forward.3}
  #allocation0 [shape = 'u32[]', space=smem, size = 0x4, offset = 0x4, fixed_abs, tag = 'smem constant byte address 0x4 - core index']
  #allocation1 [shape = 'u32[144,128]{1,0:T(1,128)}', space=vmem, size = 0x12000, scoped, tag = 'internal scratch']
  #allocation2 [shape = 'f32[128,384]{1,0:T(8,128)}', space=vmem, size = 0x30000, scoped, tag = 'scratch operand']
  #allocation3 [shape = 'f32[16,128]{1,0:T(8,128)}', space=vmem, size = 0x2000, scoped, tag = 'scratch operand']
  %s0 = inlined_call_operand.vmem [shape: s32[16,1], index: 0, kind: input, shape index: {}]
  %s1 = inlined_call_operand.vmem [shape: bf16[128,128], index: 1, kind: input, shape index: {}]
  %s2 = inlined_call_operand.vmem [shape: f32[16,128], index: 2, kind: input, shape index: {}]
  %s3 = inlined_call_operand.vmem [shape: bf16[128,384], index: 3, kind: input, shape index: {}]
  %s4 = inlined_call_operand.vmem [shape: f32[1,384], index: 4, kind: input, shape index: {}]
  %s5 = inlined_call_operand.vmem [shape: bf16[128,384], index: 5, kind: input, shape index: {}]
  %s6 = inlined_call_operand.hbm [shape: f32[1,128], index: 6, kind: input, shape index: {}]
  %s7 = inlined_call_operand.vmem [shape: f32[128,128], index: 7, kind: output, shape index: {0}]
  %s8 = inlined_call_operand.vmem [shape: f32[16,128], index: 8, kind: output, shape index: {1}]
  %9 = xla_tuple %s7, %s8
  %s10 = sld [smem:[#allocation0]]
  $region58: #{encoder_rnn_forward.3} parent=0
    _
  %s12 = ssub.s32 1, %s10
  %s13 = scalar_select 0, %s12, %s10
  $region1: #{encoder_rnn_forward.3} parent=0
    #allocation4 [shape = 'u8[512]{0}', space=vmem, size = 0x400, scoped, tag = 'input window, operand 6, single buffered']
    #allocation5 [shape = 's32[1]{0}', space=sflag, size = 0x4, scoped, tag = 'scoped memory for encoder_rnn_forward.3']
    %14 = vsyncpa [#allocation5], 0
    // Predicated region
    $region2: #{encoder_rnn_forward.3} parent=1 // pred_check
      _
    $region3: #{encoder_rnn_forward.3} parent=1 // pred_check_branch
      %16 = sbr.rel (0) target = $region5
    $region4: #{encoder_rnn_forward.3} parent=1 // pred_region
      _
    $region5: #{encoder_rnn_forward.3} parent=1 // pred_fallthru
      _
    // Predicated region
    $region6: #{encoder_rnn_forward.3} parent=1 // pred_check
      _
    $region7: #{encoder_rnn_forward.3} parent=1 // pred_check_branch
      %18 = sbr.rel (0) target = $region9
    $region8: #{encoder_rnn_forward.3} parent=1 // pred_region
      %s19 = sadd.s32 0, 0
      %s20 = smul.u32 16, %s19
      %p21 = scmp.lt.s32.totalorder %s20, 15
      %s22 = scalar_select %p21, %s20, 15
      %s23 = smul.addr %s22, 4
      %s24 = scalar_lea.vmem %s1, %s23
      %s25 = sadd.s32 0, 0
      %s26 = smul.u32 16, %s25
    $region9: #{encoder_rnn_forward.3} parent=1 // pred_fallthru
      _
    // Predicated region
    $region10: #{encoder_rnn_forward.3} parent=1 // pred_check
      _
    $region11: #{encoder_rnn_forward.3} parent=1 // pred_check_branch
      %28 = sbr.rel (0) target = $region13
    $region12: #{encoder_rnn_forward.3} parent=1 // pred_region
      _
    $region13: #{encoder_rnn_forward.3} parent=1 // pred_fallthru
      _
    // Predicated region
    $region14: #{encoder_rnn_forward.3} parent=1 // pred_check
      _
    $region15: #{encoder_rnn_forward.3} parent=1 // pred_check_branch
      %30 = sbr.rel (0) target = $region17
    $region16: #{encoder_rnn_forward.3} parent=1 // pred_region
      _
    $region17: #{encoder_rnn_forward.3} parent=1 // pred_fallthru
      _
    // Predicated region
    $region18: #{encoder_rnn_forward.3} parent=1 // pred_check
      _
    $region19: #{encoder_rnn_forward.3} parent=1 // pred_check_branch
      %32 = sbr.rel (0) target = $region21
    $region20: #{encoder_rnn_forward.3} parent=1 // pred_region
      _
    $region21: #{encoder_rnn_forward.3} parent=1 // pred_fallthru
      _
    // Predicated region
    $region22: #{encoder_rnn_forward.3} parent=1 // pred_check
      _
    $region23: #{encoder_rnn_forward.3} parent=1 // pred_check_branch
      %34 = sbr.rel (0) target = $region25
    $region24: #{encoder_rnn_forward.3} parent=1 // pred_region
      _
    $region25: #{encoder_rnn_forward.3} parent=1 // pred_fallthru
      _
    // Predicated region
    $region26: #{encoder_rnn_forward.3} parent=1 // pred_check
      _
    $region27: #{encoder_rnn_forward.3} parent=1 // pred_check_branch
      %36 = sbr.rel (0) target = $region29
    $region28: #{encoder_rnn_forward.3} parent=1 // pred_region
      %s38 = ssub.s32 16, 16
      %39 = vsyncadd [#allocation5], %s38
      %s41 = sshll.u32 [#allocation4], 4
      %s42 = int_to_ptr.vmem [resolvable:$true] %s41
      %44 = dma.hbm_to_vmem [thread:$0]  %s6, 16, %s42, [#allocation5]
    $region29: #{encoder_rnn_forward.3} parent=1 // pred_fallthru
      _
    // Predicated region
    $region30: #{encoder_rnn_forward.3} parent=1 // pred_check
      _
    $region31: #{encoder_rnn_forward.3} parent=1 // pred_check_branch
      %46 = sbr.rel (0) target = $region33
    $region32: #{encoder_rnn_forward.3} parent=1 // pred_region
      %47 = dma.done [#allocation5], 16
    $region33: #{encoder_rnn_forward.3} parent=1 // pred_fallthru
      _
    %s48 = sadd.s32 0, 0
    %s49 = smul.u32 16, %s48
    %p50 = scmp.lt.s32.totalorder %s49, 15
    %s51 = scalar_select %p50, %s49, 15
    %s52 = smul.addr %s51, 4
    %s53 = scalar_lea.vmem %s1, %s52
    %s54 = sadd.s32 0, 0
    %s55 = smul.u32 16, %s54
    %p56 = scmp.lt.s32.totalorder %s55, 15
    %s57 = scalar_select %p56, %s55, 15
    %s58 = smul.addr %s57, 8
    %s59 = scalar_lea.vmem %s7, %s58
    %s60 = sadd.s32 0, 0
    %s61 = smul.u32 16, %s60
    %p62 = scmp.lt.s32.totalorder %s61, 15
    %s63 = scalar_select %p62, %s61, 15
    %s64 = smul.addr %s63, 4
    %s65 = scalar_lea.vmem %s1, %s64
    %s66 = sadd.s32 0, 0
    %s67 = smul.u32 16, %s66
    %s68 = sadd.s32 0, 0
    %s69 = smul.u32 16, %s68
    %p70 = scmp.lt.s32.totalorder %s69, 15
    %s71 = scalar_select %p70, %s69, 15
    %s72 = smul.addr %s71, 8
    %s73 = scalar_lea.vmem %s7, %s72
    %s74 = sadd.s32 0, 0
    %s75 = smul.u32 16, %s74
    %p77 = scmp.eq.s32.totalorder 0, 0
    // Predicated region
    $region34: #{encoder_rnn_forward.3} parent=1 // pred_check
      %p78 = pneg %p77
    $region35: #{encoder_rnn_forward.3} parent=1 // pred_check_branch
      %80 = sbr.rel (%p78) target = $region37
    $region36: #{encoder_rnn_forward.3} parent=1 // pred_region
      %v81 = vld [vmem:[%s2] sm:$0xff]
      %v82 = vld [vmem:[%s2 + $0x8] sm:$0xff]
      %83 = vst [vmem:[#allocation3] sm:$0xff] %v81
      %84 = vst [vmem:[#allocation3 + $0x8] sm:$0xff] %v82
    $region37: #{encoder_rnn_forward.3} parent=1 // pred_fallthru
      _
    %v85 = vld [vmem:[%s65] sm:$0xf]
    %v86 = vld [vmem:[%s65 + $0x4] sm:$0xf]
    %v87 = vld [vmem:[%s65 + $0x8] sm:$0xf]
    %v88 = vld [vmem:[%s65 + $0xc] sm:$0xf]
    %v89 = vld [vmem:[%s65 + $0x10] sm:$0xf]
    %v90 = vld [vmem:[%s65 + $0x14] sm:$0xf]
    %v91 = vld [vmem:[%s65 + $0x18] sm:$0xf]
    %v92 = vld [vmem:[%s65 + $0x1c] sm:$0xf]
    %v93 = vld [vmem:[%s65 + $0x20] sm:$0xf]
    %v94 = vld [vmem:[%s65 + $0x24] sm:$0xf]
    %v95 = vld [vmem:[%s65 + $0x28] sm:$0xf]
    %v96 = vld [vmem:[%s65 + $0x2c] sm:$0xf]
    %v97 = vld [vmem:[%s65 + $0x30] sm:$0xf]
    %v98 = vld [vmem:[%s65 + $0x34] sm:$0xf]
    %v99 = vld [vmem:[%s65 + $0x38] sm:$0xf]
    %v100 = vld [vmem:[%s65 + $0x3c] sm:$0xf]
    %v101 = vld [vmem:[%s3] sm:$0xff]
    %v102 = vld [vmem:[%s3 + $0x8] sm:$0xf]
    %v103 = vld [vmem:[%s3 + $0xc] sm:$0xff]
    %v104 = vld [vmem:[%s3 + $0x14] sm:$0xf]
    %v105 = vld [vmem:[%s3 + $0x18] sm:$0xff]
    %v106 = vld [vmem:[%s3 + $0x20] sm:$0xf]
    %v107 = vld [vmem:[%s3 + $0x24] sm:$0xff]
    %v108 = vld [vmem:[%s3 + $0x2c] sm:$0xf]
    %v109 = vld [vmem:[%s3 + $0x30] sm:$0xff]
    %v110 = vld [vmem:[%s3 + $0x38] sm:$0xf]
    %v111 = vld [vmem:[%s3 + $0x3c] sm:$0xff]
    %v112 = vld [vmem:[%s3 + $0x44] sm:$0xf]
    %v113 = vld [vmem:[%s3 + $0x48] sm:$0xff]
    %v114 = vld [vmem:[%s3 + $0x50] sm:$0xf]
    %v115 = vld [vmem:[%s3 + $0x54] sm:$0xff]
    %v116 = vld [vmem:[%s3 + $0x5c] sm:$0xf]
    %v117 = vld [vmem:[%s3 + $0x60] sm:$0xff]
    %v118 = vld [vmem:[%s3 + $0x68] sm:$0xf]
    %v119 = vld [vmem:[%s3 + $0x6c] sm:$0xff]
    %v120 = vld [vmem:[%s3 + $0x74] sm:$0xf]
    %v121 = vld [vmem:[%s3 + $0x78] sm:$0xff]
    %v122 = vld [vmem:[%s3 + $0x80] sm:$0xf]
    %v123 = vld [vmem:[%s3 + $0x84] sm:$0xff]
    %v124 = vld [vmem:[%s3 + $0x8c] sm:$0xf]
    %v125 = vld [vmem:[%s3 + $0x90] sm:$0xff]
    %v126 = vld [vmem:[%s3 + $0x98] sm:$0xf]
    %v127 = vld [vmem:[%s3 + $0x9c] sm:$0xff]
    %v128 = vld [vmem:[%s3 + $0xa4] sm:$0xf]
    %v129 = vld [vmem:[%s3 + $0xa8] sm:$0xff]
    %v130 = vld [vmem:[%s3 + $0xb0] sm:$0xf]
    %v131 = vld [vmem:[%s3 + $0xb4] sm:$0xff]
    %v132 = vld [vmem:[%s3 + $0xbc] sm:$0xf]
    %v133 = vld [vmem:[%s4] sm:$0x7]
    %v135 = vlaneseq
    %v136 = vshrl.u32 %v135, 7
    %v137 = vsub.s32 0, %v136
    %v138 = vrot.slane %v133, %v137
    %v139 = vlaneseq
    %v140 = vshrl.u32 %v139, 7
    %v141 = vsub.s32 1, %v140
    %v142 = vrot.slane %v133, %v141
    %v143 = vlaneseq
    %v144 = vshrl.u32 %v143, 7
    %v145 = vsub.s32 2, %v144
    %v146 = vrot.slane %v133, %v145
    %v166 = vunpack.c.l.b16 %v85
    %v167 = vunpack.c.l.b16 %v86
    %v168 = vunpack.c.l.b16 %v87
    %v169 = vunpack.c.l.b16 %v88
    %v170 = vunpack.c.l.b16 %v89
    %v171 = vunpack.c.l.b16 %v90
    %v172 = vunpack.c.l.b16 %v91
    %v173 = vunpack.c.l.b16 %v92
    %v174 = vunpack.c.l.b16 %v93
    %v175 = vunpack.c.l.b16 %v94
    %v176 = vunpack.c.l.b16 %v95
    %v177 = vunpack.c.l.b16 %v96
    %v178 = vunpack.c.l.b16 %v97
    %v179 = vunpack.c.l.b16 %v98
    %v180 = vunpack.c.l.b16 %v99
    %v181 = vunpack.c.l.b16 %v100
    %v182 = vpack.c.b16 %v167, %v166
    %v183 = vpack.c.b16 %v169, %v168
    %v184 = vpack.c.b16 %v171, %v170
    %v185 = vpack.c.b16 %v173, %v172
    %v186 = vpack.c.b16 %v175, %v174
    %v187 = vpack.c.b16 %v177, %v176
    %v188 = vpack.c.b16 %v179, %v178
    %v189 = vpack.c.b16 %v181, %v180
    %v230 = vunpack.c.l.b16 %v101
    %v231 = vunpack.c.h.b16 %v101
    %v232 = vunpack.c.l.b16 %v102
    %v233 = vunpack.c.l.b16 %v103
    %v234 = vunpack.c.h.b16 %v103
    %v235 = vunpack.c.l.b16 %v104
    %v236 = vunpack.c.l.b16 %v105
    %v237 = vunpack.c.h.b16 %v105
    %v238 = vunpack.c.l.b16 %v106
    %v239 = vunpack.c.l.b16 %v107
    %v240 = vunpack.c.h.b16 %v107
    %v241 = vunpack.c.l.b16 %v108
    %v242 = vunpack.c.l.b16 %v109
    %v243 = vunpack.c.h.b16 %v109
    %v244 = vunpack.c.l.b16 %v110
    %v245 = vunpack.c.l.b16 %v111
    %v246 = vunpack.c.h.b16 %v111
    %v247 = vunpack.c.l.b16 %v112
    %v248 = vunpack.c.l.b16 %v113
    %v249 = vunpack.c.h.b16 %v113
    %v250 = vunpack.c.l.b16 %v114
    %v251 = vunpack.c.l.b16 %v115
    %v252 = vunpack.c.h.b16 %v115
    %v253 = vunpack.c.l.b16 %v116
    %v254 = vunpack.c.l.b16 %v117
    %v255 = vunpack.c.h.b16 %v117
    %v256 = vunpack.c.l.b16 %v118
    %v257 = vunpack.c.l.b16 %v119
    %v258 = vunpack.c.h.b16 %v119
    %v259 = vunpack.c.l.b16 %v120
    %v260 = vunpack.c.l.b16 %v121
    %v261 = vunpack.c.h.b16 %v121
    %v262 = vunpack.c.l.b16 %v122
    %v263 = vunpack.c.l.b16 %v123
    %v264 = vunpack.c.h.b16 %v123
    %v265 = vunpack.c.l.b16 %v124
    %v266 = vunpack.c.l.b16 %v125
    %v267 = vunpack.c.h.b16 %v125
    %v268 = vunpack.c.l.b16 %v126
    %v269 = vunpack.c.l.b16 %v127
    %v270 = vunpack.c.h.b16 %v127
    %v271 = vunpack.c.l.b16 %v128
    %v272 = vunpack.c.l.b16 %v129
    %v273 = vunpack.c.h.b16 %v129
    %v274 = vunpack.c.l.b16 %v130
    %v275 = vunpack.c.l.b16 %v131
    %v276 = vunpack.c.h.b16 %v131
    %v277 = vunpack.c.l.b16 %v132
    %v278 = vpack.c.b16 %v233, %v230
    %v279 = vpack.c.b16 %v234, %v231
    %v280 = vpack.c.b16 %v235, %v232
    %v281 = vpack.c.b16 %v239, %v236
    %v282 = vpack.c.b16 %v240, %v237
    %v283 = vpack.c.b16 %v241, %v238
    %v284 = vpack.c.b16 %v245, %v242
    %v285 = vpack.c.b16 %v246, %v243
    %v286 = vpack.c.b16 %v247, %v244
    %v287 = vpack.c.b16 %v251, %v248
    %v288 = vpack.c.b16 %v252, %v249
    %v289 = vpack.c.b16 %v253, %v250
    %v290 = vpack.c.b16 %v257, %v254
    %v291 = vpack.c.b16 %v258, %v255
    %v292 = vpack.c.b16 %v259, %v256
    %v293 = vpack.c.b16 %v263, %v260
    %v294 = vpack.c.b16 %v264, %v261
    %v295 = vpack.c.b16 %v265, %v262
    %v296 = vpack.c.b16 %v269, %v266
    %v297 = vpack.c.b16 %v270, %v267
    %v298 = vpack.c.b16 %v271, %v268
    %v299 = vpack.c.b16 %v275, %v272
    %v300 = vpack.c.b16 %v276, %v273
    %v301 = vpack.c.b16 %v277, %v274
    %326 = vmatprep.subr.bf16.mxu0 %v279
    %327 = vmatpush1.bf16.msra.mxu0 %v278
    %328 = vmatprep.subr.bf16.mxu0 %v282
    %329 = vmatpush1.bf16.msra.mxu0 %v281
    %330 = vmatprep.subr.bf16.mxu0 %v285
    %331 = vmatpush1.bf16.msra.mxu0 %v284
    %332 = vmatprep.subr.bf16.mxu0 %v288
    %333 = vmatpush1.bf16.msra.mxu0 %v287
    %334 = vmatprep.subr.bf16.mxu0 %v291
    %335 = vmatpush1.bf16.msra.mxu0 %v290
    %336 = vmatprep.subr.bf16.mxu0 %v294
    %337 = vmatpush1.bf16.msra.mxu0 %v293
    %338 = vmatprep.subr.bf16.mxu0 %v297
    %339 = vmatpush1.bf16.msra.mxu0 %v296
    %340 = vmatprep.subr.bf16.mxu0 %v300
    %341 = vmatpush1.bf16.msra.mxu0 %v299
    %342 = vmatprep.subr.bf16.mxu0 0
    %343 = vmatpush1.bf16.msra.mxu0 0
    %344 = vmatprep.subr.bf16.mxu0 0
    %345 = vmatpush1.bf16.msra.mxu0 0
    %346 = vmatprep.subr.bf16.mxu0 0
    %347 = vmatpush1.bf16.msra.mxu0 0
    %348 = vmatprep.subr.bf16.mxu0 0
    %349 = vmatpush1.bf16.msra.mxu0 0
    %350 = vmatprep.subr.bf16.mxu0 0
    %351 = vmatpush1.bf16.msra.mxu0 0
    %352 = vmatprep.subr.bf16.mxu0 0
    %353 = vmatpush1.bf16.msra.mxu0 0
    %354 = vmatprep.subr.bf16.mxu0 0
    %355 = vmatpush1.bf16.msra.mxu0 0
    %356 = vmatprep.subr.bf16.mxu0 0
    %357 = vmatpush1.bf16.msra.mxu0 0
    %358 = vmatprep.mubr.bf16.mxu0 0
    %359 = vmatmul.mubr.bf16.gmra.mrb[0].mxu0 %v182
    %v360 = vpop.f32.mrb[0].mxu0
    %v361 = vadd.f32 %v138, %v360
    %v362 = vpop.f32.mrb[0].mxu0
    %v363 = vadd.f32 %v142, %v362
    %v364 = vpop.f32.mrb[0].mxu0
    %v365 = vadd.f32 %v138, %v364
    %v366 = vpop.f32.mrb[0].mxu0
    %v367 = vadd.f32 %v142, %v366
    %368 = vmatprep.mubr.bf16.mxu0 0
    %369 = vmatmul.mubr.bf16.gmra.mrb[0].mxu0 %v183
    %v370 = vpop.f32.mrb[0].mxu0
    %v371 = vadd.f32 %v138, %v370
    %v372 = vpop.f32.mrb[0].mxu0
    %v373 = vadd.f32 %v142, %v372
    %v374 = vpop.f32.mrb[0].mxu0
    %v375 = vadd.f32 %v138, %v374
    %v376 = vpop.f32.mrb[0].mxu0
    %v377 = vadd.f32 %v142, %v376
    %378 = vmatprep.mubr.bf16.mxu0 0
    %379 = vmatmul.mubr.bf16.gmra.mrb[0].mxu0 %v184
    %v380 = vpop.f32.mrb[0].mxu0
    %v381 = vadd.f32 %v138, %v380
    %v382 = vpop.f32.mrb[0].mxu0
    %v383 = vadd.f32 %v142, %v382
    %v384 = vpop.f32.mrb[0].mxu0
    %v385 = vadd.f32 %v138, %v384
    %v386 = vpop.f32.mrb[0].mxu0
    %v387 = vadd.f32 %v142, %v386
    %388 = vmatprep.mubr.bf16.mxu0 0
    %389 = vmatmul.mubr.bf16.gmra.mrb[0].mxu0 %v185
    %v390 = vpop.f32.mrb[0].mxu0
    %v391 = vadd.f32 %v138, %v390
    %v392 = vpop.f32.mrb[0].mxu0
    %v393 = vadd.f32 %v142, %v392
    %v394 = vpop.f32.mrb[0].mxu0
    %v395 = vadd.f32 %v138, %v394
    %v396 = vpop.f32.mrb[0].mxu0
    %v397 = vadd.f32 %v142, %v396
    %398 = vmatprep.mubr.bf16.mxu0 0
    %399 = vmatmul.mubr.bf16.gmra.mrb[0].mxu0 %v186
    %v400 = vpop.f32.mrb[0].mxu0
    %v401 = vadd.f32 %v138, %v400
    %v402 = vpop.f32.mrb[0].mxu0
    %v403 = vadd.f32 %v142, %v402
    %v404 = vpop.f32.mrb[0].mxu0
    %v405 = vadd.f32 %v138, %v404
    %v406 = vpop.f32.mrb[0].mxu0
    %v407 = vadd.f32 %v142, %v406
    %408 = vmatprep.mubr.bf16.mxu0 0
    %409 = vmatmul.mubr.bf16.gmra.mrb[0].mxu0 %v187
    %v410 = vpop.f32.mrb[0].mxu0
    %v411 = vadd.f32 %v138, %v410
    %v412 = vpop.f32.mrb[0].mxu0
    %v413 = vadd.f32 %v142, %v412
    %v414 = vpop.f32.mrb[0].mxu0
    %v415 = vadd.f32 %v138, %v414
    %v416 = vpop.f32.mrb[0].mxu0
    %v417 = vadd.f32 %v142, %v416
    %418 = vmatprep.mubr.bf16.mxu0 0
    %419 = vmatmul.mubr.bf16.gmra.mrb[0].mxu0 %v188
    %v420 = vpop.f32.mrb[0].mxu0
    %v421 = vadd.f32 %v138, %v420
    %v422 = vpop.f32.mrb[0].mxu0
    %v423 = vadd.f32 %v142, %v422
    %v424 = vpop.f32.mrb[0].mxu0
    %v425 = vadd.f32 %v138, %v424
    %v426 = vpop.f32.mrb[0].mxu0
    %v427 = vadd.f32 %v142, %v426
    %428 = vmatprep.mubr.bf16.mxu0 0
    %429 = vmatmul.mubr.bf16.gmra.mrb[0].mxu0 %v189
    %v430 = vpop.f32.mrb[0].mxu0
    %v431 = vadd.f32 %v138, %v430
    %v432 = vpop.f32.mrb[0].mxu0
    %v433 = vadd.f32 %v142, %v432
    %v434 = vpop.f32.mrb[0].mxu0
    %v435 = vadd.f32 %v138, %v434
    %v436 = vpop.f32.mrb[0].mxu0
    %v437 = vadd.f32 %v142, %v436
    %438 = vdwg.mxu0
    %439 = vmatprep.subr.bf16.mxu0 0
    %440 = vmatpush1.bf16.msra.mxu0 %v280
    %441 = vmatprep.subr.bf16.mxu0 0
    %442 = vmatpush1.bf16.msra.mxu0 %v283
    %443 = vmatprep.subr.bf16.mxu0 0
    %444 = vmatpush1.bf16.msra.mxu0 %v286
    %445 = vmatprep.subr.bf16.mxu0 0
    %446 = vmatpush1.bf16.msra.mxu0 %v289
    %447 = vmatprep.subr.bf16.mxu0 0
    %448 = vmatpush1.bf16.msra.mxu0 %v292
    %449 = vmatprep.subr.bf16.mxu0 0
    %450 = vmatpush1.bf16.msra.mxu0 %v295
    %451 = vmatprep.subr.bf16.mxu0 0
    %452 = vmatpush1.bf16.msra.mxu0 %v298
    %453 = vmatprep.subr.bf16.mxu0 0
    %454 = vmatpush1.bf16.msra.mxu0 %v301
    %455 = vmatprep.subr.bf16.mxu0 0
    %456 = vmatpush1.bf16.msra.mxu0 0
    %457 = vmatprep.subr.bf16.mxu0 0
    %458 = vmatpush1.bf16.msra.mxu0 0
    %459 = vmatprep.subr.bf16.mxu0 0
    %460 = vmatpush1.bf16.msra.mxu0 0
    %461 = vmatprep.subr.bf16.mxu0 0
    %462 = vmatpush1.bf16.msra.mxu0 0
    %463 = vmatprep.subr.bf16.mxu0 0
    %464 = vmatpush1.bf16.msra.mxu0 0
    %465 = vmatprep.subr.bf16.mxu0 0
    %466 = vmatpush1.bf16.msra.mxu0 0
    %467 = vmatprep.subr.bf16.mxu0 0
    %468 = vmatpush1.bf16.msra.mxu0 0
    %469 = vmatprep.subr.bf16.mxu0 0
    %470 = vmatpush1.bf16.msra.mxu0 0
    %471 = vmatprep.mubr.bf16.mxu0 0
    %472 = vmatmul.mubr.bf16.gmra.mrb[0].mxu0 %v182
    %v473 = vpop.f32.mrb[0].mxu0
    %v474 = vadd.f32 %v146, %v473
    %v475 = vpop.f32.mrb[0].mxu0
    %v476 = vpop.f32.mrb[0].mxu0
    %v477 = vadd.f32 %v146, %v476
    %v478 = vpop.f32.mrb[0].mxu0
    %479 = vmatprep.mubr.bf16.mxu0 0
    %480 = vmatmul.mubr.bf16.gmra.mrb[0].mxu0 %v183
    %v481 = vpop.f32.mrb[0].mxu0
    %v482 = vadd.f32 %v146, %v481
    %v483 = vpop.f32.mrb[0].mxu0
    %v484 = vpop.f32.mrb[0].mxu0
    %v485 = vadd.f32 %v146, %v484
    %v486 = vpop.f32.mrb[0].mxu0
    %487 = vmatprep.mubr.bf16.mxu0 0
    %488 = vmatmul.mubr.bf16.gmra.mrb[0].mxu0 %v184
    %v489 = vpop.f32.mrb[0].mxu0
    %v490 = vadd.f32 %v146, %v489
    %v491 = vpop.f32.mrb[0].mxu0
    %v492 = vpop.f32.mrb[0].mxu0
    %v493 = vadd.f32 %v146, %v492
    %v494 = vpop.f32.mrb[0].mxu0
    %495 = vmatprep.mubr.bf16.mxu0 0
    %496 = vmatmul.mubr.bf16.gmra.mrb[0].mxu0 %v185
    %v497 = vpop.f32.mrb[0].mxu0
    %v498 = vadd.f32 %v146, %v497
    %v499 = vpop.f32.mrb[0].mxu0
    %v500 = vpop.f32.mrb[0].mxu0
    %v501 = vadd.f32 %v146, %v500
    %v502 = vpop.f32.mrb[0].mxu0
    %503 = vmatprep.mubr.bf16.mxu0 0
    %504 = vmatmul.mubr.bf16.gmra.mrb[0].mxu0 %v186
    %v505 = vpop.f32.mrb[0].mxu0
    %v506 = vadd.f32 %v146, %v505
    %v507 = vpop.f32.mrb[0].mxu0
    %v508 = vpop.f32.mrb[0].mxu0
    %v509 = vadd.f32 %v146, %v508
    %v510 = vpop.f32.mrb[0].mxu0
    %511 = vmatprep.mubr.bf16.mxu0 0
    %512 = vmatmul.mubr.bf16.gmra.mrb[0].mxu0 %v187
    %v513 = vpop.f32.mrb[0].mxu0
    %v514 = vadd.f32 %v146, %v513
    %v515 = vpop.f32.mrb[0].mxu0
    %v516 = vpop.f32.mrb[0].mxu0
    %v517 = vadd.f32 %v146, %v516
    %v518 = vpop.f32.mrb[0].mxu0
    %519 = vmatprep.mubr.bf16.mxu0 0
    %520 = vmatmul.mubr.bf16.gmra.mrb[0].mxu0 %v188
    %v521 = vpop.f32.mrb[0].mxu0
    %v522 = vadd.f32 %v146, %v521
    %v523 = vpop.f32.mrb[0].mxu0
    %v524 = vpop.f32.mrb[0].mxu0
    %v525 = vadd.f32 %v146, %v524
    %v526 = vpop.f32.mrb[0].mxu0
    %527 = vmatprep.mubr.bf16.mxu0 0
    %528 = vmatmul.mubr.bf16.gmra.mrb[0].mxu0 %v189
    %v529 = vpop.f32.mrb[0].mxu0
    %v530 = vadd.f32 %v146, %v529
    %v531 = vpop.f32.mrb[0].mxu0
    %v532 = vpop.f32.mrb[0].mxu0
    %v533 = vadd.f32 %v146, %v532
    %v534 = vpop.f32.mrb[0].mxu0
    %535 = vdwg.mxu0
    %536 = vst [vmem:[#allocation2] sm:$0xff] %v361
    %537 = vst [vmem:[#allocation2 + $0x8] sm:$0xff] %v363
    %538 = vst [vmem:[#allocation2 + $0x10] sm:$0xff] %v474
    %539 = vst [vmem:[#allocation2 + $0x18] sm:$0xff] %v365
    %540 = vst [vmem:[#allocation2 + $0x20] sm:$0xff] %v367
    %541 = vst [vmem:[#allocation2 + $0x28] sm:$0xff] %v477
    %542 = vst [vmem:[#allocation2 + $0x30] sm:$0xff] %v371
    %543 = vst [vmem:[#allocation2 + $0x38] sm:$0xff] %v373
    %544 = vst [vmem:[#allocation2 + $0x40] sm:$0xff] %v482
    %545 = vst [vmem:[#allocation2 + $0x48] sm:$0xff] %v375
    %546 = vst [vmem:[#allocation2 + $0x50] sm:$0xff] %v377
    %547 = vst [vmem:[#allocation2 + $0x58] sm:$0xff] %v485
    %548 = vst [vmem:[#allocation2 + $0x60] sm:$0xff] %v381
    %549 = vst [vmem:[#allocation2 + $0x68] sm:$0xff] %v383
    %550 = vst [vmem:[#allocation2 + $0x70] sm:$0xff] %v490
    %551 = vst [vmem:[#allocation2 + $0x78] sm:$0xff] %v385
    %552 = vst [vmem:[#allocation2 + $0x80] sm:$0xff] %v387
    %553 = vst [vmem:[#allocation2 + $0x88] sm:$0xff] %v493
    %554 = vst [vmem:[#allocation2 + $0x90] sm:$0xff] %v391
    %555 = vst [vmem:[#allocation2 + $0x98] sm:$0xff] %v393
    %556 = vst [vmem:[#allocation2 + $0xa0] sm:$0xff] %v498
    %557 = vst [vmem:[#allocation2 + $0xa8] sm:$0xff] %v395
    %558 = vst [vmem:[#allocation2 + $0xb0] sm:$0xff] %v397
    %559 = vst [vmem:[#allocation2 + $0xb8] sm:$0xff] %v501
    %560 = vst [vmem:[#allocation2 + $0xc0] sm:$0xff] %v401
    %561 = vst [vmem:[#allocation2 + $0xc8] sm:$0xff] %v403
    %562 = vst [vmem:[#allocation2 + $0xd0] sm:$0xff] %v506
    %563 = vst [vmem:[#allocation2 + $0xd8] sm:$0xff] %v405
    %564 = vst [vmem:[#allocation2 + $0xe0] sm:$0xff] %v407
    %565 = vst [vmem:[#allocation2 + $0xe8] sm:$0xff] %v509
    %566 = vst [vmem:[#allocation2 + $0xf0] sm:$0xff] %v411
    %567 = vst [vmem:[#allocation2 + $0xf8] sm:$0xff] %v413
    %568 = vst [vmem:[#allocation2 + $0x100] sm:$0xff] %v514
    %569 = vst [vmem:[#allocation2 + $0x108] sm:$0xff] %v415
    %570 = vst [vmem:[#allocation2 + $0x110] sm:$0xff] %v417
    %571 = vst [vmem:[#allocation2 + $0x118] sm:$0xff] %v517
    %572 = vst [vmem:[#allocation2 + $0x120] sm:$0xff] %v421
    %573 = vst [vmem:[#allocation2 + $0x128] sm:$0xff] %v423
    %574 = vst [vmem:[#allocation2 + $0x130] sm:$0xff] %v522
    %575 = vst [vmem:[#allocation2 + $0x138] sm:$0xff] %v425
    %576 = vst [vmem:[#allocation2 + $0x140] sm:$0xff] %v427
    %577 = vst [vmem:[#allocation2 + $0x148] sm:$0xff] %v525
    %578 = vst [vmem:[#allocation2 + $0x150] sm:$0xff] %v431
    %579 = vst [vmem:[#allocation2 + $0x158] sm:$0xff] %v433
    %580 = vst [vmem:[#allocation2 + $0x160] sm:$0xff] %v530
    %581 = vst [vmem:[#allocation2 + $0x168] sm:$0xff] %v435
    %582 = vst [vmem:[#allocation2 + $0x170] sm:$0xff] %v437
    %583 = vst [vmem:[#allocation2 + $0x178] sm:$0xff] %v533
    %v584 = vld [vmem:[%s5] sm:$0xff]
    %v585 = vld [vmem:[%s5 + $0x8] sm:$0xf]
    %v586 = vld [vmem:[%s5 + $0xc] sm:$0xff]
    %v587 = vld [vmem:[%s5 + $0x14] sm:$0xf]
    %v588 = vld [vmem:[%s5 + $0x18] sm:$0xff]
    %v589 = vld [vmem:[%s5 + $0x20] sm:$0xf]
    %v590 = vld [vmem:[%s5 + $0x24] sm:$0xff]
    %v591 = vld [vmem:[%s5 + $0x2c] sm:$0xf]
    %v592 = vld [vmem:[%s5 + $0x30] sm:$0xff]
    %v593 = vld [vmem:[%s5 + $0x38] sm:$0xf]
    %v594 = vld [vmem:[%s5 + $0x3c] sm:$0xff]
    %v595 = vld [vmem:[%s5 + $0x44] sm:$0xf]
    %v596 = vld [vmem:[%s5 + $0x48] sm:$0xff]
    %v597 = vld [vmem:[%s5 + $0x50] sm:$0xf]
    %v598 = vld [vmem:[%s5 + $0x54] sm:$0xff]
    %v599 = vld [vmem:[%s5 + $0x5c] sm:$0xf]
    %v600 = vld [vmem:[%s5 + $0x60] sm:$0xff]
    %v601 = vld [vmem:[%s5 + $0x68] sm:$0xf]
    %v602 = vld [vmem:[%s5 + $0x6c] sm:$0xff]
    %v603 = vld [vmem:[%s5 + $0x74] sm:$0xf]
    %v604 = vld [vmem:[%s5 + $0x78] sm:$0xff]
    %v605 = vld [vmem:[%s5 + $0x80] sm:$0xf]
    %v606 = vld [vmem:[%s5 + $0x84] sm:$0xff]
    %v607 = vld [vmem:[%s5 + $0x8c] sm:$0xf]
    %v608 = vld [vmem:[%s5 + $0x90] sm:$0xff]
    %v609 = vld [vmem:[%s5 + $0x98] sm:$0xf]
    %v610 = vld [vmem:[%s5 + $0x9c] sm:$0xff]
    %v611 = vld [vmem:[%s5 + $0xa4] sm:$0xf]
    %v612 = vld [vmem:[%s5 + $0xa8] sm:$0xff]
    %v613 = vld [vmem:[%s5 + $0xb0] sm:$0xf]
    %v614 = vld [vmem:[%s5 + $0xb4] sm:$0xff]
    %v615 = vld [vmem:[%s5 + $0xbc] sm:$0xf]
    %v616 = vld [vmem:[#allocation4] sm:$0x1]
    %v617 = vld [vmem:[%s0] sm:$0xff]
    %v618 = vld [vmem:[%s0 + $0x8] sm:$0xff]
    %s619 = smul.u32 0, 8
    %v620 = vld [vmem:[#allocation3] sm:$0xff]
    %v621 = vld [vmem:[#allocation3 + $0x8] sm:$0xff]
    %s622 = smul.u32 0, 3
    %s623 = smul.addr %s622, 8
    %s624 = scalar_lea.vmem [#allocation2], %s623
    %v625 = vld [vmem:[%s624] sm:$0xff]
    %v626 = vld [vmem:[%s624 + $0x8] sm:$0xff]
    %v627 = vld [vmem:[%s624 + $0x10] sm:$0xff]
    %v628 = vld [vmem:[%s624 + $0x18] sm:$0xff]
    %v629 = vld [vmem:[%s624 + $0x20] sm:$0xff]
    %v630 = vld [vmem:[%s624 + $0x28] sm:$0xff]
    %v631 = vpack.c.bf16 %v621, %v620
    %v664 = vunpack.c.l.b16 %v584
    %v665 = vunpack.c.h.b16 %v584
    %v666 = vunpack.c.l.b16 %v585
    %v667 = vunpack.c.l.b16 %v586
    %v668 = vunpack.c.h.b16 %v586
    %v669 = vunpack.c.l.b16 %v587
    %v670 = vunpack.c.l.b16 %v588
    %v671 = vunpack.c.h.b16 %v588
    %v672 = vunpack.c.l.b16 %v589
    %v673 = vunpack.c.l.b16 %v590
    %v674 = vunpack.c.h.b16 %v590
    %v675 = vunpack.c.l.b16 %v591
    %v676 = vunpack.c.l.b16 %v592
    %v677 = vunpack.c.h.b16 %v592
    %v678 = vunpack.c.l.b16 %v593
    %v679 = vunpack.c.l.b16 %v594
    %v680 = vunpack.c.h.b16 %v594
    %v681 = vunpack.c.l.b16 %v595
    %v682 = vunpack.c.l.b16 %v596
    %v683 = vunpack.c.h.b16 %v596
    %v684 = vunpack.c.l.b16 %v597
    %v685 = vunpack.c.l.b16 %v598
    %v686 = vunpack.c.h.b16 %v598
    %v687 = vunpack.c.l.b16 %v599
    %v688 = vunpack.c.l.b16 %v600
    %v689 = vunpack.c.h.b16 %v600
    %v690 = vunpack.c.l.b16 %v601
    %v691 = vunpack.c.l.b16 %v602
    %v692 = vunpack.c.h.b16 %v602
    %v693 = vunpack.c.l.b16 %v603
    %v694 = vunpack.c.l.b16 %v604
    %v695 = vunpack.c.h.b16 %v604
    %v696 = vunpack.c.l.b16 %v605
    %v697 = vunpack.c.l.b16 %v606
    %v698 = vunpack.c.h.b16 %v606
    %v699 = vunpack.c.l.b16 %v607
    %v700 = vunpack.c.l.b16 %v608
    %v701 = vunpack.c.h.b16 %v608
    %v702 = vunpack.c.l.b16 %v609
    %v703 = vunpack.c.l.b16 %v610
    %v704 = vunpack.c.h.b16 %v610
    %v705 = vunpack.c.l.b16 %v611
    %v706 = vunpack.c.l.b16 %v612
    %v707 = vunpack.c.h.b16 %v612
    %v708 = vunpack.c.l.b16 %v613
    %v709 = vunpack.c.l.b16 %v614
    %v710 = vunpack.c.h.b16 %v614
    %v711 = vunpack.c.l.b16 %v615
    %v712 = vpack.c.b16 %v667, %v664
    %v713 = vpack.c.b16 %v668, %v665
    %v714 = vpack.c.b16 %v669, %v666
    %v715 = vpack.c.b16 %v673, %v670
    %v716 = vpack.c.b16 %v674, %v671
    %v717 = vpack.c.b16 %v675, %v672
    %v718 = vpack.c.b16 %v679, %v676
    %v719 = vpack.c.b16 %v680, %v677
    %v720 = vpack.c.b16 %v681, %v678
    %v721 = vpack.c.b16 %v685, %v682
    %v722 = vpack.c.b16 %v686, %v683
    %v723 = vpack.c.b16 %v687, %v684
    %v724 = vpack.c.b16 %v691, %v688
    %v725 = vpack.c.b16 %v692, %v689
    %v726 = vpack.c.b16 %v693, %v690
    %v727 = vpack.c.b16 %v697, %v694
    %v728 = vpack.c.b16 %v698, %v695
    %v729 = vpack.c.b16 %v699, %v696
    %v730 = vpack.c.b16 %v703, %v700
    %v731 = vpack.c.b16 %v704, %v701
    %v732 = vpack.c.b16 %v705, %v702
    %v733 = vpack.c.b16 %v709, %v706
    %v734 = vpack.c.b16 %v710, %v707
    %v735 = vpack.c.b16 %v711, %v708
    %760 = vmatprep.subr.bf16.mxu0 %v713
    %761 = vmatpush1.bf16.msra.mxu0 %v712
    %762 = vmatprep.subr.bf16.mxu0 %v716
    %763 = vmatpush1.bf16.msra.mxu0 %v715
    %764 = vmatprep.subr.bf16.mxu0 %v719
    %765 = vmatpush1.bf16.msra.mxu0 %v718
    %766 = vmatprep.subr.bf16.mxu0 %v722
    %767 = vmatpush1.bf16.msra.mxu0 %v721
    %768 = vmatprep.subr.bf16.mxu0 %v725
    %769 = vmatpush1.bf16.msra.mxu0 %v724
    %770 = vmatprep.subr.bf16.mxu0 %v728
    %771 = vmatpush1.bf16.msra.mxu0 %v727
    %772 = vmatprep.subr.bf16.mxu0 %v731
    %773 = vmatpush1.bf16.msra.mxu0 %v730
    %774 = vmatprep.subr.bf16.mxu0 %v734
    %775 = vmatpush1.bf16.msra.mxu0 %v733
    %776 = vmatprep.subr.bf16.mxu0 0
    %777 = vmatpush1.bf16.msra.mxu0 0
    %778 = vmatprep.subr.bf16.mxu0 0
    %779 = vmatpush1.bf16.msra.mxu0 0
    %780 = vmatprep.subr.bf16.mxu0 0
    %781 = vmatpush1.bf16.msra.mxu0 0
    %782 = vmatprep.subr.bf16.mxu0 0
    %783 = vmatpush1.bf16.msra.mxu0 0
    %784 = vmatprep.subr.bf16.mxu0 0
    %785 = vmatpush1.bf16.msra.mxu0 0
    %786 = vmatprep.subr.bf16.mxu0 0
    %787 = vmatpush1.bf16.msra.mxu0 0
    %788 = vmatprep.subr.bf16.mxu0 0
    %789 = vmatpush1.bf16.msra.mxu0 0
    %790 = vmatprep.subr.bf16.mxu0 0
    %791 = vmatpush1.bf16.msra.mxu0 0
    %792 = vmatprep.mubr.bf16.mxu0 0
    %793 = vmatmul.mubr.bf16.gmra.mrb[0].mxu0 %v631
    %v794 = vpop.f32.mrb[0].mxu0
    %v795 = vadd.f32 0.0, %v794
    %v796 = vpop.f32.mrb[0].mxu0
    %v797 = vadd.f32 0.0, %v796
    %v798 = vpop.f32.mrb[0].mxu0
    %v799 = vadd.f32 0.0, %v798
    %v800 = vpop.f32.mrb[0].mxu0
    %v801 = vadd.f32 0.0, %v800
    %802 = vdwg.mxu0
    %803 = vmatprep.subr.bf16.mxu0 0
    %804 = vmatpush1.bf16.msra.mxu0 %v714
    %805 = vmatprep.subr.bf16.mxu0 0
    %806 = vmatpush1.bf16.msra.mxu0 %v717
    %807 = vmatprep.subr.bf16.mxu0 0
    %808 = vmatpush1.bf16.msra.mxu0 %v720
    %809 = vmatprep.subr.bf16.mxu0 0
    %810 = vmatpush1.bf16.msra.mxu0 %v723
    %811 = vmatprep.subr.bf16.mxu0 0
    %812 = vmatpush1.bf16.msra.mxu0 %v726
    %813 = vmatprep.subr.bf16.mxu0 0
    %814 = vmatpush1.bf16.msra.mxu0 %v729
    %815 = vmatprep.subr.bf16.mxu0 0
    %816 = vmatpush1.bf16.msra.mxu0 %v732
    %817 = vmatprep.subr.bf16.mxu0 0
    %818 = vmatpush1.bf16.msra.mxu0 %v735
    %819 = vmatprep.subr.bf16.mxu0 0
    %820 = vmatpush1.bf16.msra.mxu0 0
    %821 = vmatprep.subr.bf16.mxu0 0
    %822 = vmatpush1.bf16.msra.mxu0 0
    %823 = vmatprep.subr.bf16.mxu0 0
    %824 = vmatpush1.bf16.msra.mxu0 0
    %825 = vmatprep.subr.bf16.mxu0 0
    %826 = vmatpush1.bf16.msra.mxu0 0
    %827 = vmatprep.subr.bf16.mxu0 0
    %828 = vmatpush1.bf16.msra.mxu0 0
    %829 = vmatprep.subr.bf16.mxu0 0
    %830 = vmatpush1.bf16.msra.mxu0 0
    %831 = vmatprep.subr.bf16.mxu0 0
    %832 = vmatpush1.bf16.msra.mxu0 0
    %833 = vmatprep.subr.bf16.mxu0 0
    %834 = vmatpush1.bf16.msra.mxu0 0
    %835 = vmatprep.mubr.bf16.mxu0 0
    %836 = vmatmul.mubr.bf16.gmra.mrb[0].mxu0 %v631
    %v837 = vpop.f32.mrb[0].mxu0
    %v838 = vadd.f32 0.0, %v837
    %v839 = vpop.f32.mrb[0].mxu0
    %v840 = vpop.f32.mrb[0].mxu0
    %v841 = vadd.f32 0.0, %v840
    %v842 = vpop.f32.mrb[0].mxu0
    %843 = vdwg.mxu0
    %v844 = vadd.f32 %v625, %v795
    %v845 = vadd.f32 %v628, %v799
    %v846 = vxor.u32 %v844, 2147483648
    %v847 = vxor.u32 %v845, 2147483648
    %v848 = vmul.f32 %v846, 1.442695
    %v849 = vpow.pop %v848
    %v850 = vmul.f32 %v847, 1.442695
    %v851 = vpow.pop %v850
    %v852 = vadd.f32 %v849, 1.0
    %v853 = vadd.f32 %v851, 1.0
    %v854 = vrcp.pop %v852
    %v855 = vmul.f32 1.0, %v854
    %v856 = vrcp.pop %v853
    %v857 = vmul.f32 1.0, %v856
    %v858 = vadd.f32 %v626, %v797
    %v859 = vadd.f32 %v629, %v801
    %v860 = vxor.u32 %v858, 2147483648
    %v861 = vxor.u32 %v859, 2147483648
    %v862 = vmul.f32 %v860, 1.442695
    %v863 = vpow.pop %v862
    %v864 = vmul.f32 %v861, 1.442695
    %v865 = vpow.pop %v864
    %v866 = vadd.f32 %v863, 1.0
    %v867 = vadd.f32 %v865, 1.0
    %v868 = vrcp.pop %v866
    %v869 = vmul.f32 1.0, %v868
    %v870 = vrcp.pop %v867
    %v871 = vmul.f32 1.0, %v870
    %v873 = vlaneseq
    %v874 = vshrl.u32 %v873, 7
    %v875 = vsub.s32 0, %v874
    %v876 = vrot.slane %v616, %v875
    %v878 = vadd.f32 %v838, %v876
    %v879 = vadd.f32 %v841, %v876
    %v880 = vmul.f32 %v855, %v878
    %v881 = vmul.f32 %v857, %v879
    %v882 = vadd.f32 %v627, %v880
    %v883 = vadd.f32 %v630, %v881
    %v884 = vtanh.pop %v882
    %v885 = vtanh.pop %v883
    %v886 = vsub.f32 %v620, %v884
    %v887 = vsub.f32 %v621, %v885
    %v888 = vmul.f32 %v869, %v886
    %v889 = vmul.f32 %v871, %v887
    %v890 = vadd.f32 %v884, %v888
    %v891 = vadd.f32 %v885, %v889
    %v892 = vstv %s619
    %vm893 = vcmp.lt.s32.totalorder %v892, %v617
    %vm894 = vcmp.lt.s32.totalorder %v892, %v618
    %v895 = vsel %vm893, 1, 0
    %v896 = vsel %vm894, 1, 0
    %897 = vset.pattern.permute.xlu0 0
    %898 = vperm.xlu0 %897, %v895
    %v899 = vpop.permute.xlu0 %898
    %900 = vset.pattern.permute.xlu0 0
    %901 = vperm.xlu0 %900, %v896
    %v902 = vpop.permute.xlu0 %901
    %vm903 = vcmp.eq.s32.totalorder %v899, 1
    %vm904 = vcmp.eq.s32.totalorder %v902, 1
    %v905 = vsel %vm903, %v890, %v620
    %v906 = vsel %vm904, %v891, %v621
    %v907 = vsel %vm903, %v890, 0.0
    %v908 = vsel %vm904, %v891, 0.0
    %909 = vst [vmem:[%s73] sm:$0xff] %v907
    %910 = vst [vmem:[%s73 + $0x8] sm:$0xff] %v908
    %s911 = smul.u32 2, 3
    %s912 = smul.addr %s911, 8
    %s913 = scalar_lea.vmem [#allocation2], %s912
    %v914 = vld [vmem:[%s913] sm:$0xff]
    %v915 = vld [vmem:[%s913 + $0x8] sm:$0xff]
    %v916 = vld [vmem:[%s913 + $0x10] sm:$0xff]
    %v917 = vld [vmem:[%s913 + $0x18] sm:$0xff]
    %v918 = vld [vmem:[%s913 + $0x20] sm:$0xff]
    %v919 = vld [vmem:[%s913 + $0x28] sm:$0xff]
    %v920 = vpack.c.bf16 %v906, %v905
    %921 = vmatprep.subr.bf16.mxu0 %v713
    %922 = vmatpush1.bf16.msra.mxu0 %v712
    %923 = vmatprep.subr.bf16.mxu0 %v716
    %924 = vmatpush1.bf16.msra.mxu0 %v715
    %925 = vmatprep.subr.bf16.mxu0 %v719
    %926 = vmatpush1.bf16.msra.mxu0 %v718
    %927 = vmatprep.subr.bf16.mxu0 %v722
    %928 = vmatpush1.bf16.msra.mxu0 %v721
    %929 = vmatprep.subr.bf16.mxu0 %v725
    %930 = vmatpush1.bf16.msra.mxu0 %v724
    %931 = vmatprep.subr.bf16.mxu0 %v728
    %932 = vmatpush1.bf16.msra.mxu0 %v727
    %933 = vmatprep.subr.bf16.mxu0 %v731
    %934 = vmatpush1.bf16.msra.mxu0 %v730
    %935 = vmatprep.subr.bf16.mxu0 %v734
    %936 = vmatpush1.bf16.msra.mxu0 %v733
    %937 = vmatprep.subr.bf16.mxu0 0
    %938 = vmatpush1.bf16.msra.mxu0 0
    %939 = vmatprep.subr.bf16.mxu0 0
    %940 = vmatpush1.bf16.msra.mxu0 0
    %941 = vmatprep.subr.bf16.mxu0 0
    %942 = vmatpush1.bf16.msra.mxu0 0
    %943 = vmatprep.subr.bf16.mxu0 0
    %944 = vmatpush1.bf16.msra.mxu0 0
    %945 = vmatprep.subr.bf16.mxu0 0
    %946 = vmatpush1.bf16.msra.mxu0 0
    %947 = vmatprep.subr.bf16.mxu0 0
    %948 = vmatpush1.bf16.msra.mxu0 0
    %949 = vmatprep.subr.bf16.mxu0 0
    %950 = vmatpush1.bf16.msra.mxu0 0
    %951 = vmatprep.subr.bf16.mxu0 0
    %952 = vmatpush1.bf16.msra.mxu0 0
    %953 = vmatprep.mubr.bf16.mxu0 0
    %954 = vmatmul.mubr.bf16.gmra.mrb[0].mxu0 %v920
    %v955 = vpop.f32.mrb[0].mxu0
    %v956 = vadd.f32 0.0, %v955
    %v957 = vpop.f32.mrb[0].mxu0
    %v958 = vadd.f32 0.0, %v957
    %v959 = vpop.f32.mrb[0].mxu0
    %v960 = vadd.f32 0.0, %v959
    %v961 = vpop.f32.mrb[0].mxu0
    %v962 = vadd.f32 0.0, %v961
    %963 = vdwg.mxu0
    %964 = vmatprep.subr.bf16.mxu0 0
    %965 = vmatpush1.bf16.msra.mxu0 %v714
    %966 = vmatprep.subr.bf16.mxu0 0
    %967 = vmatpush1.bf16.msra.mxu0 %v717
    %968 = vmatprep.subr.bf16.mxu0 0
    %969 = vmatpush1.bf16.msra.mxu0 %v720
    %970 = vmatprep.subr.bf16.mxu0 0
    %971 = vmatpush1.bf16.msra.mxu0 %v723
    %972 = vmatprep.subr.bf16.mxu0 0
    %973 = vmatpush1.bf16.msra.mxu0 %v726
    %974 = vmatprep.subr.bf16.mxu0 0
    %975 = vmatpush1.bf16.msra.mxu0 %v729
    %976 = vmatprep.subr.bf16.mxu0 0
    %977 = vmatpush1.bf16.msra.mxu0 %v732
    %978 = vmatprep.subr.bf16.mxu0 0
    %979 = vmatpush1.bf16.msra.mxu0 %v735
    %980 = vmatprep.subr.bf16.mxu0 0
    %981 = vmatpush1.bf16.msra.mxu0 0
    %982 = vmatprep.subr.bf16.mxu0 0
    %983 = vmatpush1.bf16.msra.mxu0 0
    %984 = vmatprep.subr.bf16.mxu0 0
    %985 = vmatpush1.bf16.msra.mxu0 0
    %986 = vmatprep.subr.bf16.mxu0 0
    %987 = vmatpush1.bf16.msra.mxu0 0
    %988 = vmatprep.subr.bf16.mxu0 0
    %989 = vmatpush1.bf16.msra.mxu0 0
    %990 = vmatprep.subr.bf16.mxu0 0
    %991 = vmatpush1.bf16.msra.mxu0 0
    %992 = vmatprep.subr.bf16.mxu0 0
    %993 = vmatpush1.bf16.msra.mxu0 0
    %994 = vmatprep.subr.bf16.mxu0 0
    %995 = vmatpush1.bf16.msra.mxu0 0
    %996 = vmatprep.mubr.bf16.mxu0 0
    %997 = vmatmul.mubr.bf16.gmra.mrb[0].mxu0 %v920
    %v998 = vpop.f32.mrb[0].mxu0
    %v999 = vadd.f32 0.0, %v998
    %v1000 = vpop.f32.mrb[0].mxu0
    %v1001 = vpop.f32.mrb[0].mxu0
    %v1002 = vadd.f32 0.0, %v1001
    %v1003 = vpop.f32.mrb[0].mxu0
    %1004 = vdwg.mxu0
    %v1005 = vadd.f32 %v914, %v956
    %v1006 = vadd.f32 %v917, %v960
    %v1007 = vxor.u32 %v1005, 2147483648
    %v1008 = vxor.u32 %v1006, 2147483648
    %v1009 = vmul.f32 %v1007, 1.442695
    %v1010 = vpow.pop %v1009
    %v1011 = vmul.f32 %v1008, 1.442695
    %v1012 = vpow.pop %v1011
    %v1013 = vadd.f32 %v1010, 1.0
    %v1014 = vadd.f32 %v1012, 1.0
    %v1015 = vrcp.pop %v1013
    %v1016 = vmul.f32 1.0, %v1015
    %v1017 = vrcp.pop %v1014
    %v1018 = vmul.f32 1.0, %v1017
    %v1019 = vadd.f32 %v915, %v958
    %v1020 = vadd.f32 %v918, %v962
    %v1021 = vxor.u32 %v1019, 2147483648
    %v1022 = vxor.u32 %v1020, 2147483648
    %v1023 = vmul.f32 %v1021, 1.442695
    %v1024 = vpow.pop %v1023
    %v1025 = vmul.f32 %v1022, 1.442695
    %v1026 = vpow.pop %v1025
    %v1027 = vadd.f32 %v1024, 1.0
    %v1028 = vadd.f32 %v1026, 1.0
    %v1029 = vrcp.pop %v1027
    %v1030 = vmul.f32 1.0, %v1029
    %v1031 = vrcp.pop %v1028
    %v1032 = vmul.f32 1.0, %v1031
    %v1033 = vadd.f32 %v999, %v876
    %v1034 = vadd.f32 %v1002, %v876
    %v1035 = vmul.f32 %v1016, %v1033
    %v1036 = vmul.f32 %v1018, %v1034
    %v1037 = vadd.f32 %v916, %v1035
    %v1038 = vadd.f32 %v919, %v1036
    %v1039 = vtanh.pop %v1037
    %v1040 = vtanh.pop %v1038
    %v1041 = vsub.f32 %v905, %v1039
    %v1042 = vsub.f32 %v906, %v1040
    %v1043 = vmul.f32 %v1030, %v1041
    %v1044 = vmul.f32 %v1032, %v1042
    %v1045 = vadd.f32 %v1039, %v1043
    %v1046 = vadd.f32 %v1040, %v1044
    %s1047 = sadd.s32 %s619, 1
    %v1048 = vstv %s1047
    %vm1049 = vcmp.lt.s32.totalorder %v1048, %v617
    %vm1050 = vcmp.lt.s32.totalorder %v1048, %v618
    %v1051 = vsel %vm1049, 1, 0
    %v1052 = vsel %vm1050, 1, 0
    %1053 = vset.pattern.permute.xlu0 0
    %1054 = vperm.xlu0 %1053, %v1051
    %v1055 = vpop.permute.xlu0 %1054
    %1056 = vset.pattern.permute.xlu0 0
    %1057 = vperm.xlu0 %1056, %v1052
    %v1058 = vpop.permute.xlu0 %1057
    %vm1059 = vcmp.eq.s32.totalorder %v1055, 1
    %vm1060 = vcmp.eq.s32.totalorder %v1058, 1
    %v1061 = vsel %vm1059, %v1045, %v905
    %v1062 = vsel %vm1060, %v1046, %v906
    %v1063 = vsel %vm1059, %v1045, 0.0
    %v1064 = vsel %vm1060, %v1046, 0.0
    %s1065 = scalar_lea.vmem %s73, 16
    %1066 = vst [vmem:[%s1065] sm:$0xff] %v1063
    %1067 = vst [vmem:[%s1065 + $0x8] sm:$0xff] %v1064
    %s1068 = smul.u32 4, 3
    %s1069 = smul.addr %s1068, 8
    %s1070 = scalar_lea.vmem [#allocation2], %s1069
    %v1071 = vld [vmem:[%s1070] sm:$0xff]
    %v1072 = vld [vmem:[%s1070 + $0x8] sm:$0xff]
    %v1073 = vld [vmem:[%s1070 + $0x10] sm:$0xff]
    %v1074 = vld [vmem:[%s1070 + $0x18] sm:$0xff]
    %v1075 = vld [vmem:[%s1070 + $0x20] sm:$0xff]
    %v1076 = vld [vmem:[%s1070 + $0x28] sm:$0xff]
    %v1077 = vpack.c.bf16 %v1062, %v1061
    %1078 = vmatprep.subr.bf16.mxu0 %v713
    %1079 = vmatpush1.bf16.msra.mxu0 %v712
    %1080 = vmatprep.subr.bf16.mxu0 %v716
    %1081 = vmatpush1.bf16.msra.mxu0 %v715
    %1082 = vmatprep.subr.bf16.mxu0 %v719
    %1083 = vmatpush1.bf16.msra.mxu0 %v718
    %1084 = vmatprep.subr.bf16.mxu0 %v722
    %1085 = vmatpush1.bf16.msra.mxu0 %v721
    %1086 = vmatprep.subr.bf16.mxu0 %v725
    %1087 = vmatpush1.bf16.msra.mxu0 %v724
    %1088 = vmatprep.subr.bf16.mxu0 %v728
    %1089 = vmatpush1.bf16.msra.mxu0 %v727
    %1090 = vmatprep.subr.bf16.mxu0 %v731
    %1091 = vmatpush1.bf16.msra.mxu0 %v730
    %1092 = vmatprep.subr.bf16.mxu0 %v734
    %1093 = vmatpush1.bf16.msra.mxu0 %v733
    %1094 = vmatprep.subr.bf16.mxu0 0
    %1095 = vmatpush1.bf16.msra.mxu0 0
    %1096 = vmatprep.subr.bf16.mxu0 0
    %1097 = vmatpush1.bf16.msra.mxu0 0
    %1098 = vmatprep.subr.bf16.mxu0 0
    %1099 = vmatpush1.bf16.msra.mxu0 0
    %1100 = vmatprep.subr.bf16.mxu0 0
    %1101 = vmatpush1.bf16.msra.mxu0 0
    %1102 = vmatprep.subr.bf16.mxu0 0
    %1103 = vmatpush1.bf16.msra.mxu0 0
    %1104 = vmatprep.subr.bf16.mxu0 0
    %1105 = vmatpush1.bf16.msra.mxu0 0
    %1106 = vmatprep.subr.bf16.mxu0 0
    %1107 = vmatpush1.bf16.msra.mxu0 0
    %1108 = vmatprep.subr.bf16.mxu0 0
    %1109 = vmatpush1.bf16.msra.mxu0 0
    %1110 = vmatprep.mubr.bf16.mxu0 0
    %1111 = vmatmul.mubr.bf16.gmra.mrb[0].mxu0 %v1077
    %v1112 = vpop.f32.mrb[0].mxu0
    %v1113 = vadd.f32 0.0, %v1112
    %v1114 = vpop.f32.mrb[0].mxu0
    %v1115 = vadd.f32 0.0, %v1114
    %v1116 = vpop.f32.mrb[0].mxu0
    %v1117 = vadd.f32 0.0, %v1116
    %v1118 = vpop.f32.mrb[0].mxu0
    %v1119 = vadd.f32 0.0, %v1118
    %1120 = vdwg.mxu0
    %1121 = vmatprep.subr.bf16.mxu0 0
    %1122 = vmatpush1.bf16.msra.mxu0 %v714
    %1123 = vmatprep.subr.bf16.mxu0 0
    %1124 = vmatpush1.bf16.msra.mxu0 %v717
    %1125 = vmatprep.subr.bf16.mxu0 0
    %1126 = vmatpush1.bf16.msra.mxu0 %v720
    %1127 = vmatprep.subr.bf16.mxu0 0
    %1128 = vmatpush1.bf16.msra.mxu0 %v723
    %1129 = vmatprep.subr.bf16.mxu0 0
    %1130 = vmatpush1.bf16.msra.mxu0 %v726
    %1131 = vmatprep.subr.bf16.mxu0 0
    %1132 = vmatpush1.bf16.msra.mxu0 %v729
    %1133 = vmatprep.subr.bf16.mxu0 0
    %1134 = vmatpush1.bf16.msra.mxu0 %v732
    %1135 = vmatprep.subr.bf16.mxu0 0
    %1136 = vmatpush1.bf16.msra.mxu0 %v735
    %1137 = vmatprep.subr.bf16.mxu0 0
    %1138 = vmatpush1.bf16.msra.mxu0 0
    %1139 = vmatprep.subr.bf16.mxu0 0
    %1140 = vmatpush1.bf16.msra.mxu0 0
    %1141 = vmatprep.subr.bf16.mxu0 0
    %1142 = vmatpush1.bf16.msra.mxu0 0
    %1143 = vmatprep.subr.bf16.mxu0 0
    %1144 = vmatpush1.bf16.msra.mxu0 0
    %1145 = vmatprep.subr.bf16.mxu0 0
    %1146 = vmatpush1.bf16.msra.mxu0 0
    %1147 = vmatprep.subr.bf16.mxu0 0
    %1148 = vmatpush1.bf16.msra.mxu0 0
    %1149 = vmatprep.subr.bf16.mxu0 0
    %1150 = vmatpush1.bf16.msra.mxu0 0
    %1151 = vmatprep.subr.bf16.mxu0 0
    %1152 = vmatpush1.bf16.msra.mxu0 0
    %1153 = vmatprep.mubr.bf16.mxu0 0
    %1154 = vmatmul.mubr.bf16.gmra.mrb[0].mxu0 %v1077
    %v1155 = vpop.f32.mrb[0].mxu0
    %v1156 = vadd.f32 0.0, %v1155
    %v1157 = vpop.f32.mrb[0].mxu0
    %v1158 = vpop.f32.mrb[0].mxu0
    %v1159 = vadd.f32 0.0, %v1158
    %v1160 = vpop.f32.mrb[0].mxu0
    %1161 = vdwg.mxu0
    %v1162 = vadd.f32 %v1071, %v1113
    %v1163 = vadd.f32 %v1074, %v1117
    %v1164 = vxor.u32 %v1162, 2147483648
    %v1165 = vxor.u32 %v1163, 2147483648
    %v1166 = vmul.f32 %v1164, 1.442695
    %v1167 = vpow.pop %v1166
    %v1168 = vmul.f32 %v1165, 1.442695
    %v1169 = vpow.pop %v1168
    %v1170 = vadd.f32 %v1167, 1.0
    %v1171 = vadd.f32 %v1169, 1.0
    %v1172 = vrcp.pop %v1170
    %v1173 = vmul.f32 1.0, %v1172
    %v1174 = vrcp.pop %v1171
    %v1175 = vmul.f32 1.0, %v1174
    %v1176 = vadd.f32 %v1072, %v1115
    %v1177 = vadd.f32 %v1075, %v1119
    %v1178 = vxor.u32 %v1176, 2147483648
    %v1179 = vxor.u32 %v1177, 2147483648
    %v1180 = vmul.f32 %v1178, 1.442695
    %v1181 = vpow.pop %v1180
    %v1182 = vmul.f32 %v1179, 1.442695
    %v1183 = vpow.pop %v1182
    %v1184 = vadd.f32 %v1181, 1.0
    %v1185 = vadd.f32 %v1183, 1.0
    %v1186 = vrcp.pop %v1184
    %v1187 = vmul.f32 1.0, %v1186
    %v1188 = vrcp.pop %v1185
    %v1189 = vmul.f32 1.0, %v1188
    %v1190 = vadd.f32 %v1156, %v876
    %v1191 = vadd.f32 %v1159, %v876
    %v1192 = vmul.f32 %v1173, %v1190
    %v1193 = vmul.f32 %v1175, %v1191
    %v1194 = vadd.f32 %v1073, %v1192
    %v1195 = vadd.f32 %v1076, %v1193
    %v1196 = vtanh.pop %v1194
    %v1197 = vtanh.pop %v1195
    %v1198 = vsub.f32 %v1061, %v1196
    %v1199 = vsub.f32 %v1062, %v1197
    %v1200 = vmul.f32 %v1187, %v1198
    %v1201 = vmul.f32 %v1189, %v1199
    %v1202 = vadd.f32 %v1196, %v1200
    %v1203 = vadd.f32 %v1197, %v1201
    %s1204 = sadd.s32 %s619, 2
    %v1205 = vstv %s1204
    %vm1206 = vcmp.lt.s32.totalorder %v1205, %v617
    %vm1207 = vcmp.lt.s32.totalorder %v1205, %v618
    %v1208 = vsel %vm1206, 1, 0
    %v1209 = vsel %vm1207, 1, 0
    %1210 = vset.pattern.permute.xlu0 0
    %1211 = vperm.xlu0 %1210, %v1208
    %v1212 = vpop.permute.xlu0 %1211
    %1213 = vset.pattern.permute.xlu0 0
    %1214 = vperm.xlu0 %1213, %v1209
    %v1215 = vpop.permute.xlu0 %1214
    %vm1216 = vcmp.eq.s32.totalorder %v1212, 1
    %vm1217 = vcmp.eq.s32.totalorder %v1215, 1
    %v1218 = vsel %vm1216, %v1202, %v1061
    %v1219 = vsel %vm1217, %v1203, %v1062
    %v1220 = vsel %vm1216, %v1202, 0.0
    %v1221 = vsel %vm1217, %v1203, 0.0
    %s1222 = scalar_lea.vmem %s73, 32
    %1223 = vst [vmem:[%s1222] sm:$0xff] %v1220
    %1224 = vst [vmem:[%s1222 + $0x8] sm:$0xff] %v1221
    %s1225 = smul.u32 6, 3
    %s1226 = smul.addr %s1225, 8
    %s1227 = scalar_lea.vmem [#allocation2], %s1226
    %v1228 = vld [vmem:[%s1227] sm:$0xff]
    %v1229 = vld [vmem:[%s1227 + $0x8] sm:$0xff]
    %v1230 = vld [vmem:[%s1227 + $0x10] sm:$0xff]
    %v1231 = vld [vmem:[%s1227 + $0x18] sm:$0xff]
    %v1232 = vld [vmem:[%s1227 + $0x20] sm:$0xff]
    %v1233 = vld [vmem:[%s1227 + $0x28] sm:$0xff]
    %v1234 = vpack.c.bf16 %v1219, %v1218
    %1235 = vmatprep.subr.bf16.mxu0 %v713
    %1236 = vmatpush1.bf16.msra.mxu0 %v712
    %1237 = vmatprep.subr.bf16.mxu0 %v716
    %1238 = vmatpush1.bf16.msra.mxu0 %v715
    %1239 = vmatprep.subr.bf16.mxu0 %v719
    %1240 = vmatpush1.bf16.msra.mxu0 %v718
    %1241 = vmatprep.subr.bf16.mxu0 %v722
    %1242 = vmatpush1.bf16.msra.mxu0 %v721
    %1243 = vmatprep.subr.bf16.mxu0 %v725
    %1244 = vmatpush1.bf16.msra.mxu0 %v724
    %1245 = vmatprep.subr.bf16.mxu0 %v728
    %1246 = vmatpush1.bf16.msra.mxu0 %v727
    %1247 = vmatprep.subr.bf16.mxu0 %v731
    %1248 = vmatpush1.bf16.msra.mxu0 %v730
    %1249 = vmatprep.subr.bf16.mxu0 %v734
    %1250 = vmatpush1.bf16.msra.mxu0 %v733
    %1251 = vmatprep.subr.bf16.mxu0 0
    %1252 = vmatpush1.bf16.msra.mxu0 0
    %1253 = vmatprep.subr.bf16.mxu0 0
    %1254 = vmatpush1.bf16.msra.mxu0 0
    %1255 = vmatprep.subr.bf16.mxu0 0
    %1256 = vmatpush1.bf16.msra.mxu0 0
    %1257 = vmatprep.subr.bf16.mxu0 0
    %1258 = vmatpush1.bf16.msra.mxu0 0
    %1259 = vmatprep.subr.bf16.mxu0 0
    %1260 = vmatpush1.bf16.msra.mxu0 0
    %1261 = vmatprep.subr.bf16.mxu0 0
    %1262 = vmatpush1.bf16.msra.mxu0 0
    %1263 = vmatprep.subr.bf16.mxu0 0
    %1264 = vmatpush1.bf16.msra.mxu0 0
    %1265 = vmatprep.subr.bf16.mxu0 0
    %1266 = vmatpush1.bf16.msra.mxu0 0
    %1267 = vmatprep.mubr.bf16.mxu0 0
    %1268 = vmatmul.mubr.bf16.gmra.mrb[0].mxu0 %v1234
    %v1269 = vpop.f32.mrb[0].mxu0
    %v1270 = vadd.f32 0.0, %v1269
    %v1271 = vpop.f32.mrb[0].mxu0
    %v1272 = vadd.f32 0.0, %v1271
    %v1273 = vpop.f32.mrb[0].mxu0
    %v1274 = vadd.f32 0.0, %v1273
    %v1275 = vpop.f32.mrb[0].mxu0
    %v1276 = vadd.f32 0.0, %v1275
    %1277 = vdwg.mxu0
    %1278 = vmatprep.subr.bf16.mxu0 0
    %1279 = vmatpush1.bf16.msra.mxu0 %v714
    %1280 = vmatprep.subr.bf16.mxu0 0
    %1281 = vmatpush1.bf16.msra.mxu0 %v717
    %1282 = vmatprep.subr.bf16.mxu0 0
    %1283 = vmatpush1.bf16.msra.mxu0 %v720
    %1284 = vmatprep.subr.bf16.mxu0 0
    %1285 = vmatpush1.bf16.msra.mxu0 %v723
    %1286 = vmatprep.subr.bf16.mxu0 0
    %1287 = vmatpush1.bf16.msra.mxu0 %v726
    %1288 = vmatprep.subr.bf16.mxu0 0
    %1289 = vmatpush1.bf16.msra.mxu0 %v729
    %1290 = vmatprep.subr.bf16.mxu0 0
    %1291 = vmatpush1.bf16.msra.mxu0 %v732
    %1292 = vmatprep.subr.bf16.mxu0 0
    %1293 = vmatpush1.bf16.msra.mxu0 %v735
    %1294 = vmatprep.subr.bf16.mxu0 0
    %1295 = vmatpush1.bf16.msra.mxu0 0
    %1296 = vmatprep.subr.bf16.mxu0 0
    %1297 = vmatpush1.bf16.msra.mxu0 0
    %1298 = vmatprep.subr.bf16.mxu0 0
    %1299 = vmatpush1.bf16.msra.mxu0 0
    %1300 = vmatprep.subr.bf16.mxu0 0
    %1301 = vmatpush1.bf16.msra.mxu0 0
    %1302 = vmatprep.subr.bf16.mxu0 0
    %1303 = vmatpush1.bf16.msra.mxu0 0
    %1304 = vmatprep.subr.bf16.mxu0 0
    %1305 = vmatpush1.bf16.msra.mxu0 0
    %1306 = vmatprep.subr.bf16.mxu0 0
    %1307 = vmatpush1.bf16.msra.mxu0 0
    %1308 = vmatprep.subr.bf16.mxu0 0
    %1309 = vmatpush1.bf16.msra.mxu0 0
    %1310 = vmatprep.mubr.bf16.mxu0 0
    %1311 = vmatmul.mubr.bf16.gmra.mrb[0].mxu0 %v1234
    %v1312 = vpop.f32.mrb[0].mxu0
    %v1313 = vadd.f32 0.0, %v1312
    %v1314 = vpop.f32.mrb[0].mxu0
    %v1315 = vpop.f32.mrb[0].mxu0
    %v1316 = vadd.f32 0.0, %v1315
    %v1317 = vpop.f32.mrb[0].mxu0
    %1318 = vdwg.mxu0
    %v1319 = vadd.f32 %v1228, %v1270
    %v1320 = vadd.f32 %v1231, %v1274
    %v1321 = vxor.u32 %v1319, 2147483648
    %v1322 = vxor.u32 %v1320, 2147483648
    %v1323 = vmul.f32 %v1321, 1.442695
    %v1324 = vpow.pop %v1323
    %v1325 = vmul.f32 %v1322, 1.442695
    %v1326 = vpow.pop %v1325
    %v1327 = vadd.f32 %v1324, 1.0
    %v1328 = vadd.f32 %v1326, 1.0
    %v1329 = vrcp.pop %v1327
    %v1330 = vmul.f32 1.0, %v1329
    %v1331 = vrcp.pop %v1328
    %v1332 = vmul.f32 1.0, %v1331
    %v1333 = vadd.f32 %v1229, %v1272
    %v1334 = vadd.f32 %v1232, %v1276
    %v1335 = vxor.u32 %v1333, 2147483648
    %v1336 = vxor.u32 %v1334, 2147483648
    %v1337 = vmul.f32 %v1335, 1.442695
    %v1338 = vpow.pop %v1337
    %v1339 = vmul.f32 %v1336, 1.442695
    %v1340 = vpow.pop %v1339
    %v1341 = vadd.f32 %v1338, 1.0
    %v1342 = vadd.f32 %v1340, 1.0
    %v1343 = vrcp.pop %v1341
    %v1344 = vmul.f32 1.0, %v1343
    %v1345 = vrcp.pop %v1342
    %v1346 = vmul.f32 1.0, %v1345
    %v1347 = vadd.f32 %v1313, %v876
    %v1348 = vadd.f32 %v1316, %v876
    %v1349 = vmul.f32 %v1330, %v1347
    %v1350 = vmul.f32 %v1332, %v1348
    %v1351 = vadd.f32 %v1230, %v1349
    %v1352 = vadd.f32 %v1233, %v1350
    %v1353 = vtanh.pop %v1351
    %v1354 = vtanh.pop %v1352
    %v1355 = vsub.f32 %v1218, %v1353
    %v1356 = vsub.f32 %v1219, %v1354
    %v1357 = vmul.f32 %v1344, %v1355
    %v1358 = vmul.f32 %v1346, %v1356
    %v1359 = vadd.f32 %v1353, %v1357
    %v1360 = vadd.f32 %v1354, %v1358
    %s1361 = sadd.s32 %s619, 3
    %v1362 = vstv %s1361
    %vm1363 = vcmp.lt.s32.totalorder %v1362, %v617
    %vm1364 = vcmp.lt.s32.totalorder %v1362, %v618
    %v1365 = vsel %vm1363, 1, 0
    %v1366 = vsel %vm1364, 1, 0
    %1367 = vset.pattern.permute.xlu0 0
    %1368 = vperm.xlu0 %1367, %v1365
    %v1369 = vpop.permute.xlu0 %1368
    %1370 = vset.pattern.permute.xlu0 0
    %1371 = vperm.xlu0 %1370, %v1366
    %v1372 = vpop.permute.xlu0 %1371
    %vm1373 = vcmp.eq.s32.totalorder %v1369, 1
    %vm1374 = vcmp.eq.s32.totalorder %v1372, 1
    %v1375 = vsel %vm1373, %v1359, %v1218
    %v1376 = vsel %vm1374, %v1360, %v1219
    %v1377 = vsel %vm1373, %v1359, 0.0
    %v1378 = vsel %vm1374, %v1360, 0.0
    %s1379 = scalar_lea.vmem %s73, 48
    %1380 = vst [vmem:[%s1379] sm:$0xff] %v1377
    %1381 = vst [vmem:[%s1379 + $0x8] sm:$0xff] %v1378
    %s1382 = smul.u32 8, 3
    %s1383 = smul.addr %s1382, 8
    %s1384 = scalar_lea.vmem [#allocation2], %s1383
    %v1385 = vld [vmem:[%s1384] sm:$0xff]
    %v1386 = vld [vmem:[%s1384 + $0x8] sm:$0xff]
    %v1387 = vld [vmem:[%s1384 + $0x10] sm:$0xff]
    %v1388 = vld [vmem:[%s1384 + $0x18] sm:$0xff]
    %v1389 = vld [vmem:[%s1384 + $0x20] sm:$0xff]
    %v1390 = vld [vmem:[%s1384 + $0x28] sm:$0xff]
    %v1391 = vpack.c.bf16 %v1376, %v1375
    %1392 = vmatprep.subr.bf16.mxu0 %v713
    %1393 = vmatpush1.bf16.msra.mxu0 %v712
    %1394 = vmatprep.subr.bf16.mxu0 %v716
    %1395 = vmatpush1.bf16.msra.mxu0 %v715
    %1396 = vmatprep.subr.bf16.mxu0 %v719
    %1397 = vmatpush1.bf16.msra.mxu0 %v718
    %1398 = vmatprep.subr.bf16.mxu0 %v722
    %1399 = vmatpush1.bf16.msra.mxu0 %v721
    %1400 = vmatprep.subr.bf16.mxu0 %v725
    %1401 = vmatpush1.bf16.msra.mxu0 %v724
    %1402 = vmatprep.subr.bf16.mxu0 %v728
    %1403 = vmatpush1.bf16.msra.mxu0 %v727
    %1404 = vmatprep.subr.bf16.mxu0 %v731
    %1405 = vmatpush1.bf16.msra.mxu0 %v730
    %1406 = vmatprep.subr.bf16.mxu0 %v734
    %1407 = vmatpush1.bf16.msra.mxu0 %v733
    %1408 = vmatprep.subr.bf16.mxu0 0
    %1409 = vmatpush1.bf16.msra.mxu0 0
    %1410 = vmatprep.subr.bf16.mxu0 0
    %1411 = vmatpush1.bf16.msra.mxu0 0
    %1412 = vmatprep.subr.bf16.mxu0 0
    %1413 = vmatpush1.bf16.msra.mxu0 0
    %1414 = vmatprep.subr.bf16.mxu0 0
    %1415 = vmatpush1.bf16.msra.mxu0 0
    %1416 = vmatprep.subr.bf16.mxu0 0
    %1417 = vmatpush1.bf16.msra.mxu0 0
    %1418 = vmatprep.subr.bf16.mxu0 0
    %1419 = vmatpush1.bf16.msra.mxu0 0
    %1420 = vmatprep.subr.bf16.mxu0 0
    %1421 = vmatpush1.bf16.msra.mxu0 0
    %1422 = vmatprep.subr.bf16.mxu0 0
    %1423 = vmatpush1.bf16.msra.mxu0 0
    %1424 = vmatprep.mubr.bf16.mxu0 0
    %1425 = vmatmul.mubr.bf16.gmra.mrb[0].mxu0 %v1391
    %v1426 = vpop.f32.mrb[0].mxu0
    %v1427 = vadd.f32 0.0, %v1426
    %v1428 = vpop.f32.mrb[0].mxu0
    %v1429 = vadd.f32 0.0, %v1428
    %v1430 = vpop.f32.mrb[0].mxu0
    %v1431 = vadd.f32 0.0, %v1430
    %v1432 = vpop.f32.mrb[0].mxu0
    %v1433 = vadd.f32 0.0, %v1432
    %1434 = vdwg.mxu0
    %1435 = vmatprep.subr.bf16.mxu0 0
    %1436 = vmatpush1.bf16.msra.mxu0 %v714
    %1437 = vmatprep.subr.bf16.mxu0 0
    %1438 = vmatpush1.bf16.msra.mxu0 %v717
    %1439 = vmatprep.subr.bf16.mxu0 0
    %1440 = vmatpush1.bf16.msra.mxu0 %v720
    %1441 = vmatprep.subr.bf16.mxu0 0
    %1442 = vmatpush1.bf16.msra.mxu0 %v723
    %1443 = vmatprep.subr.bf16.mxu0 0
    %1444 = vmatpush1.bf16.msra.mxu0 %v726
    %1445 = vmatprep.subr.bf16.mxu0 0
    %1446 = vmatpush1.bf16.msra.mxu0 %v729
    %1447 = vmatprep.subr.bf16.mxu0 0
    %1448 = vmatpush1.bf16.msra.mxu0 %v732
    %1449 = vmatprep.subr.bf16.mxu0 0
    %1450 = vmatpush1.bf16.msra.mxu0 %v735
    %1451 = vmatprep.subr.bf16.mxu0 0
    %1452 = vmatpush1.bf16.msra.mxu0 0
    %1453 = vmatprep.subr.bf16.mxu0 0
    %1454 = vmatpush1.bf16.msra.mxu0 0
    %1455 = vmatprep.subr.bf16.mxu0 0
    %1456 = vmatpush1.bf16.msra.mxu0 0
    %1457 = vmatprep.subr.bf16.mxu0 0
    %1458 = vmatpush1.bf16.msra.mxu0 0
    %1459 = vmatprep.subr.bf16.mxu0 0
    %1460 = vmatpush1.bf16.msra.mxu0 0
    %1461 = vmatprep.subr.bf16.mxu0 0
    %1462 = vmatpush1.bf16.msra.mxu0 0
    %1463 = vmatprep.subr.bf16.mxu0 0
    %1464 = vmatpush1.bf16.msra.mxu0 0
    %1465 = vmatprep.subr.bf16.mxu0 0
    %1466 = vmatpush1.bf16.msra.mxu0 0
    %1467 = vmatprep.mubr.bf16.mxu0 0
    %1468 = vmatmul.mubr.bf16.gmra.mrb[0].mxu0 %v1391
    %v1469 = vpop.f32.mrb[0].mxu0
    %v1470 = vadd.f32 0.0, %v1469
    %v1471 = vpop.f32.mrb[0].mxu0
    %v1472 = vpop.f32.mrb[0].mxu0
    %v1473 = vadd.f32 0.0, %v1472
    %v1474 = vpop.f32.mrb[0].mxu0
    %1475 = vdwg.mxu0
    %v1476 = vadd.f32 %v1385, %v1427
    %v1477 = vadd.f32 %v1388, %v1431
    %v1478 = vxor.u32 %v1476, 2147483648
    %v1479 = vxor.u32 %v1477, 2147483648
    %v1480 = vmul.f32 %v1478, 1.442695
    %v1481 = vpow.pop %v1480
    %v1482 = vmul.f32 %v1479, 1.442695
    %v1483 = vpow.pop %v1482
    %v1484 = vadd.f32 %v1481, 1.0
    %v1485 = vadd.f32 %v1483, 1.0
    %v1486 = vrcp.pop %v1484
    %v1487 = vmul.f32 1.0, %v1486
    %v1488 = vrcp.pop %v1485
    %v1489 = vmul.f32 1.0, %v1488
    %v1490 = vadd.f32 %v1386, %v1429
    %v1491 = vadd.f32 %v1389, %v1433
    %v1492 = vxor.u32 %v1490, 2147483648
    %v1493 = vxor.u32 %v1491, 2147483648
    %v1494 = vmul.f32 %v1492, 1.442695
    %v1495 = vpow.pop %v1494
    %v1496 = vmul.f32 %v1493, 1.442695
    %v1497 = vpow.pop %v1496
    %v1498 = vadd.f32 %v1495, 1.0
    %v1499 = vadd.f32 %v1497, 1.0
    %v1500 = vrcp.pop %v1498
    %v1501 = vmul.f32 1.0, %v1500
    %v1502 = vrcp.pop %v1499
    %v1503 = vmul.f32 1.0, %v1502
    %v1504 = vadd.f32 %v1470, %v876
    %v1505 = vadd.f32 %v1473, %v876
    %v1506 = vmul.f32 %v1487, %v1504
    %v1507 = vmul.f32 %v1489, %v1505
    %v1508 = vadd.f32 %v1387, %v1506
    %v1509 = vadd.f32 %v1390, %v1507
    %v1510 = vtanh.pop %v1508
    %v1511 = vtanh.pop %v1509
    %v1512 = vsub.f32 %v1375, %v1510
    %v1513 = vsub.f32 %v1376, %v1511
    %v1514 = vmul.f32 %v1501, %v1512
    %v1515 = vmul.f32 %v1503, %v1513
    %v1516 = vadd.f32 %v1510, %v1514
    %v1517 = vadd.f32 %v1511, %v1515
    %s1518 = sadd.s32 %s619, 4
    %v1519 = vstv %s1518
    %vm1520 = vcmp.lt.s32.totalorder %v1519, %v617
    %vm1521 = vcmp.lt.s32.totalorder %v1519, %v618
    %v1522 = vsel %vm1520, 1, 0
    %v1523 = vsel %vm1521, 1, 0
    %1524 = vset.pattern.permute.xlu0 0
    %1525 = vperm.xlu0 %1524, %v1522
    %v1526 = vpop.permute.xlu0 %1525
    %1527 = vset.pattern.permute.xlu0 0
    %1528 = vperm.xlu0 %1527, %v1523
    %v1529 = vpop.permute.xlu0 %1528
    %vm1530 = vcmp.eq.s32.totalorder %v1526, 1
    %vm1531 = vcmp.eq.s32.totalorder %v1529, 1
    %v1532 = vsel %vm1530, %v1516, %v1375
    %v1533 = vsel %vm1531, %v1517, %v1376
    %v1534 = vsel %vm1530, %v1516, 0.0
    %v1535 = vsel %vm1531, %v1517, 0.0
    %s1536 = scalar_lea.vmem %s73, 64
    %1537 = vst [vmem:[%s1536] sm:$0xff] %v1534
    %1538 = vst [vmem:[%s1536 + $0x8] sm:$0xff] %v1535
    %s1539 = smul.u32 10, 3
    %s1540 = smul.addr %s1539, 8
    %s1541 = scalar_lea.vmem [#allocation2], %s1540
    %v1542 = vld [vmem:[%s1541] sm:$0xff]
    %v1543 = vld [vmem:[%s1541 + $0x8] sm:$0xff]
    %v1544 = vld [vmem:[%s1541 + $0x10] sm:$0xff]
    %v1545 = vld [vmem:[%s1541 + $0x18] sm:$0xff]
    %v1546 = vld [vmem:[%s1541 + $0x20] sm:$0xff]
    %v1547 = vld [vmem:[%s1541 + $0x28] sm:$0xff]
    %v1548 = vpack.c.bf16 %v1533, %v1532
    %1549 = vmatprep.subr.bf16.mxu0 %v713
    %1550 = vmatpush1.bf16.msra.mxu0 %v712
    %1551 = vmatprep.subr.bf16.mxu0 %v716
    %1552 = vmatpush1.bf16.msra.mxu0 %v715
    %1553 = vmatprep.subr.bf16.mxu0 %v719
    %1554 = vmatpush1.bf16.msra.mxu0 %v718
    %1555 = vmatprep.subr.bf16.mxu0 %v722
    %1556 = vmatpush1.bf16.msra.mxu0 %v721
    %1557 = vmatprep.subr.bf16.mxu0 %v725
    %1558 = vmatpush1.bf16.msra.mxu0 %v724
    %1559 = vmatprep.subr.bf16.mxu0 %v728
    %1560 = vmatpush1.bf16.msra.mxu0 %v727
    %1561 = vmatprep.subr.bf16.mxu0 %v731
    %1562 = vmatpush1.bf16.msra.mxu0 %v730
    %1563 = vmatprep.subr.bf16.mxu0 %v734
    %1564 = vmatpush1.bf16.msra.mxu0 %v733
    %1565 = vmatprep.subr.bf16.mxu0 0
    %1566 = vmatpush1.bf16.msra.mxu0 0
    %1567 = vmatprep.subr.bf16.mxu0 0
    %1568 = vmatpush1.bf16.msra.mxu0 0
    %1569 = vmatprep.subr.bf16.mxu0 0
    %1570 = vmatpush1.bf16.msra.mxu0 0
    %1571 = vmatprep.subr.bf16.mxu0 0
    %1572 = vmatpush1.bf16.msra.mxu0 0
    %1573 = vmatprep.subr.bf16.mxu0 0
    %1574 = vmatpush1.bf16.msra.mxu0 0
    %1575 = vmatprep.subr.bf16.mxu0 0
    %1576 = vmatpush1.bf16.msra.mxu0 0
    %1577 = vmatprep.subr.bf16.mxu0 0
    %1578 = vmatpush1.bf16.msra.mxu0 0
    %1579 = vmatprep.subr.bf16.mxu0 0
    %1580 = vmatpush1.bf16.msra.mxu0 0
    %1581 = vmatprep.mubr.bf16.mxu0 0
    %1582 = vmatmul.mubr.bf16.gmra.mrb[0].mxu0 %v1548
    %v1583 = vpop.f32.mrb[0].mxu0
    %v1584 = vadd.f32 0.0, %v1583
    %v1585 = vpop.f32.mrb[0].mxu0
    %v1586 = vadd.f32 0.0, %v1585
    %v1587 = vpop.f32.mrb[0].mxu0
    %v1588 = vadd.f32 0.0, %v1587
    %v1589 = vpop.f32.mrb[0].mxu0
    %v1590 = vadd.f32 0.0, %v1589
    %1591 = vdwg.mxu0
    %1592 = vmatprep.subr.bf16.mxu0 0
    %1593 = vmatpush1.bf16.msra.mxu0 %v714
    %1594 = vmatprep.subr.bf16.mxu0 0
    %1595 = vmatpush1.bf16.msra.mxu0 %v717
    %1596 = vmatprep.subr.bf16.mxu0 0
    %1597 = vmatpush1.bf16.msra.mxu0 %v720
    %1598 = vmatprep.subr.bf16.mxu0 0
    %1599 = vmatpush1.bf16.msra.mxu0 %v723
    %1600 = vmatprep.subr.bf16.mxu0 0
    %1601 = vmatpush1.bf16.msra.mxu0 %v726
    %1602 = vmatprep.subr.bf16.mxu0 0
    %1603 = vmatpush1.bf16.msra.mxu0 %v729
    %1604 = vmatprep.subr.bf16.mxu0 0
    %1605 = vmatpush1.bf16.msra.mxu0 %v732
    %1606 = vmatprep.subr.bf16.mxu0 0
    %1607 = vmatpush1.bf16.msra.mxu0 %v735
    %1608 = vmatprep.subr.bf16.mxu0 0
    %1609 = vmatpush1.bf16.msra.mxu0 0
    %1610 = vmatprep.subr.bf16.mxu0 0
    %1611 = vmatpush1.bf16.msra.mxu0 0
    %1612 = vmatprep.subr.bf16.mxu0 0
    %1613 = vmatpush1.bf16.msra.mxu0 0
    %1614 = vmatprep.subr.bf16.mxu0 0
    %1615 = vmatpush1.bf16.msra.mxu0 0
    %1616 = vmatprep.subr.bf16.mxu0 0
    %1617 = vmatpush1.bf16.msra.mxu0 0
    %1618 = vmatprep.subr.bf16.mxu0 0
    %1619 = vmatpush1.bf16.msra.mxu0 0
    %1620 = vmatprep.subr.bf16.mxu0 0
    %1621 = vmatpush1.bf16.msra.mxu0 0
    %1622 = vmatprep.subr.bf16.mxu0 0
    %1623 = vmatpush1.bf16.msra.mxu0 0
    %1624 = vmatprep.mubr.bf16.mxu0 0
    %1625 = vmatmul.mubr.bf16.gmra.mrb[0].mxu0 %v1548
    %v1626 = vpop.f32.mrb[0].mxu0
    %v1627 = vadd.f32 0.0, %v1626
    %v1628 = vpop.f32.mrb[0].mxu0
    %v1629 = vpop.f32.mrb[0].mxu0
    %v1630 = vadd.f32 0.0, %v1629
    %v1631 = vpop.f32.mrb[0].mxu0
    %1632 = vdwg.mxu0
    %v1633 = vadd.f32 %v1542, %v1584
    %v1634 = vadd.f32 %v1545, %v1588
    %v1635 = vxor.u32 %v1633, 2147483648
    %v1636 = vxor.u32 %v1634, 2147483648
    %v1637 = vmul.f32 %v1635, 1.442695
    %v1638 = vpow.pop %v1637
    %v1639 = vmul.f32 %v1636, 1.442695
    %v1640 = vpow.pop %v1639
    %v1641 = vadd.f32 %v1638, 1.0
    %v1642 = vadd.f32 %v1640, 1.0
    %v1643 = vrcp.pop %v1641
    %v1644 = vmul.f32 1.0, %v1643
    %v1645 = vrcp.pop %v1642
    %v1646 = vmul.f32 1.0, %v1645
    %v1647 = vadd.f32 %v1543, %v1586
    %v1648 = vadd.f32 %v1546, %v1590
    %v1649 = vxor.u32 %v1647, 2147483648
    %v1650 = vxor.u32 %v1648, 2147483648
    %v1651 = vmul.f32 %v1649, 1.442695
    %v1652 = vpow.pop %v1651
    %v1653 = vmul.f32 %v1650, 1.442695
    %v1654 = vpow.pop %v1653
    %v1655 = vadd.f32 %v1652, 1.0
    %v1656 = vadd.f32 %v1654, 1.0
    %v1657 = vrcp.pop %v1655
    %v1658 = vmul.f32 1.0, %v1657
    %v1659 = vrcp.pop %v1656
    %v1660 = vmul.f32 1.0, %v1659
    %v1661 = vadd.f32 %v1627, %v876
    %v1662 = vadd.f32 %v1630, %v876
    %v1663 = vmul.f32 %v1644, %v1661
    %v1664 = vmul.f32 %v1646, %v1662
    %v1665 = vadd.f32 %v1544, %v1663
    %v1666 = vadd.f32 %v1547, %v1664
    %v1667 = vtanh.pop %v1665
    %v1668 = vtanh.pop %v1666
    %v1669 = vsub.f32 %v1532, %v1667
    %v1670 = vsub.f32 %v1533, %v1668
    %v1671 = vmul.f32 %v1658, %v1669
    %v1672 = vmul.f32 %v1660, %v1670
    %v1673 = vadd.f32 %v1667, %v1671
    %v1674 = vadd.f32 %v1668, %v1672
    %s1675 = sadd.s32 %s619, 5
    %v1676 = vstv %s1675
    %vm1677 = vcmp.lt.s32.totalorder %v1676, %v617
    %vm1678 = vcmp.lt.s32.totalorder %v1676, %v618
    %v1679 = vsel %vm1677, 1, 0
    %v1680 = vsel %vm1678, 1, 0
    %1681 = vset.pattern.permute.xlu0 0
    %1682 = vperm.xlu0 %1681, %v1679
    %v1683 = vpop.permute.xlu0 %1682
    %1684 = vset.pattern.permute.xlu0 0
    %1685 = vperm.xlu0 %1684, %v1680
    %v1686 = vpop.permute.xlu0 %1685
    %vm1687 = vcmp.eq.s32.totalorder %v1683, 1
    %vm1688 = vcmp.eq.s32.totalorder %v1686, 1
    %v1689 = vsel %vm1687, %v1673, %v1532
    %v1690 = vsel %vm1688, %v1674, %v1533
    %v1691 = vsel %vm1687, %v1673, 0.0
    %v1692 = vsel %vm1688, %v1674, 0.0
    %s1693 = scalar_lea.vmem %s73, 80
    %1694 = vst [vmem:[%s1693] sm:$0xff] %v1691
    %1695 = vst [vmem:[%s1693 + $0x8] sm:$0xff] %v1692
    %s1696 = smul.u32 12, 3
    %s1697 = smul.addr %s1696, 8
    %s1698 = scalar_lea.vmem [#allocation2], %s1697
    %v1699 = vld [vmem:[%s1698] sm:$0xff]
    %v1700 = vld [vmem:[%s1698 + $0x8] sm:$0xff]
    %v1701 = vld [vmem:[%s1698 + $0x10] sm:$0xff]
    %v1702 = vld [vmem:[%s1698 + $0x18] sm:$0xff]
    %v1703 = vld [vmem:[%s1698 + $0x20] sm:$0xff]
    %v1704 = vld [vmem:[%s1698 + $0x28] sm:$0xff]
    %v1705 = vpack.c.bf16 %v1690, %v1689
    %1706 = vmatprep.subr.bf16.mxu0 %v713
    %1707 = vmatpush1.bf16.msra.mxu0 %v712
    %1708 = vmatprep.subr.bf16.mxu0 %v716
    %1709 = vmatpush1.bf16.msra.mxu0 %v715
    %1710 = vmatprep.subr.bf16.mxu0 %v719
    %1711 = vmatpush1.bf16.msra.mxu0 %v718
    %1712 = vmatprep.subr.bf16.mxu0 %v722
    %1713 = vmatpush1.bf16.msra.mxu0 %v721
    %1714 = vmatprep.subr.bf16.mxu0 %v725
    %1715 = vmatpush1.bf16.msra.mxu0 %v724
    %1716 = vmatprep.subr.bf16.mxu0 %v728
    %1717 = vmatpush1.bf16.msra.mxu0 %v727
    %1718 = vmatprep.subr.bf16.mxu0 %v731
    %1719 = vmatpush1.bf16.msra.mxu0 %v730
    %1720 = vmatprep.subr.bf16.mxu0 %v734
    %1721 = vmatpush1.bf16.msra.mxu0 %v733
    %1722 = vmatprep.subr.bf16.mxu0 0
    %1723 = vmatpush1.bf16.msra.mxu0 0
    %1724 = vmatprep.subr.bf16.mxu0 0
    %1725 = vmatpush1.bf16.msra.mxu0 0
    %1726 = vmatprep.subr.bf16.mxu0 0
    %1727 = vmatpush1.bf16.msra.mxu0 0
    %1728 = vmatprep.subr.bf16.mxu0 0
    %1729 = vmatpush1.bf16.msra.mxu0 0
    %1730 = vmatprep.subr.bf16.mxu0 0
    %1731 = vmatpush1.bf16.msra.mxu0 0
    %1732 = vmatprep.subr.bf16.mxu0 0
    %1733 = vmatpush1.bf16.msra.mxu0 0
    %1734 = vmatprep.subr.bf16.mxu0 0
    %1735 = vmatpush1.bf16.msra.mxu0 0
    %1736 = vmatprep.subr.bf16.mxu0 0
    %1737 = vmatpush1.bf16.msra.mxu0 0
    %1738 = vmatprep.mubr.bf16.mxu0 0
    %1739 = vmatmul.mubr.bf16.gmra.mrb[0].mxu0 %v1705
    %v1740 = vpop.f32.mrb[0].mxu0
    %v1741 = vadd.f32 0.0, %v1740
    %v1742 = vpop.f32.mrb[0].mxu0
    %v1743 = vadd.f32 0.0, %v1742
    %v1744 = vpop.f32.mrb[0].mxu0
    %v1745 = vadd.f32 0.0, %v1744
    %v1746 = vpop.f32.mrb[0].mxu0
    %v1747 = vadd.f32 0.0, %v1746
    %1748 = vdwg.mxu0
    %1749 = vmatprep.subr.bf16.mxu0 0
    %1750 = vmatpush1.bf16.msra.mxu0 %v714
    %1751 = vmatprep.subr.bf16.mxu0 0
    %1752 = vmatpush1.bf16.msra.mxu0 %v717
    %1753 = vmatprep.subr.bf16.mxu0 0
    %1754 = vmatpush1.bf16.msra.mxu0 %v720
    %1755 = vmatprep.subr.bf16.mxu0 0
    %1756 = vmatpush1.bf16.msra.mxu0 %v723
    %1757 = vmatprep.subr.bf16.mxu0 0
    %1758 = vmatpush1.bf16.msra.mxu0 %v726
    %1759 = vmatprep.subr.bf16.mxu0 0
    %1760 = vmatpush1.bf16.msra.mxu0 %v729
    %1761 = vmatprep.subr.bf16.mxu0 0
    %1762 = vmatpush1.bf16.msra.mxu0 %v732
    %1763 = vmatprep.subr.bf16.mxu0 0
    %1764 = vmatpush1.bf16.msra.mxu0 %v735
    %1765 = vmatprep.subr.bf16.mxu0 0
    %1766 = vmatpush1.bf16.msra.mxu0 0
    %1767 = vmatprep.subr.bf16.mxu0 0
    %1768 = vmatpush1.bf16.msra.mxu0 0
    %1769 = vmatprep.subr.bf16.mxu0 0
    %1770 = vmatpush1.bf16.msra.mxu0 0
    %1771 = vmatprep.subr.bf16.mxu0 0
    %1772 = vmatpush1.bf16.msra.mxu0 0
    %1773 = vmatprep.subr.bf16.mxu0 0
    %1774 = vmatpush1.bf16.msra.mxu0 0
    %1775 = vmatprep.subr.bf16.mxu0 0
    %1776 = vmatpush1.bf16.msra.mxu0 0
    %1777 = vmatprep.subr.bf16.mxu0 0
    %1778 = vmatpush1.bf16.msra.mxu0 0
    %1779 = vmatprep.subr.bf16.mxu0 0
    %1780 = vmatpush1.bf16.msra.mxu0 0
    %1781 = vmatprep.mubr.bf16.mxu0 0
    %1782 = vmatmul.mubr.bf16.gmra.mrb[0].mxu0 %v1705
    %v1783 = vpop.f32.mrb[0].mxu0
    %v1784 = vadd.f32 0.0, %v1783
    %v1785 = vpop.f32.mrb[0].mxu0
    %v1786 = vpop.f32.mrb[0].mxu0
    %v1787 = vadd.f32 0.0, %v1786
    %v1788 = vpop.f32.mrb[0].mxu0
    %1789 = vdwg.mxu0
    %v1790 = vadd.f32 %v1699, %v1741
    %v1791 = vadd.f32 %v1702, %v1745
    %v1792 = vxor.u32 %v1790, 2147483648
    %v1793 = vxor.u32 %v1791, 2147483648
    %v1794 = vmul.f32 %v1792, 1.442695
    %v1795 = vpow.pop %v1794
    %v1796 = vmul.f32 %v1793, 1.442695
    %v1797 = vpow.pop %v1796
    %v1798 = vadd.f32 %v1795, 1.0
    %v1799 = vadd.f32 %v1797, 1.0
    %v1800 = vrcp.pop %v1798
    %v1801 = vmul.f32 1.0, %v1800
    %v1802 = vrcp.pop %v1799
    %v1803 = vmul.f32 1.0, %v1802
    %v1804 = vadd.f32 %v1700, %v1743
    %v1805 = vadd.f32 %v1703, %v1747
    %v1806 = vxor.u32 %v1804, 2147483648
    %v1807 = vxor.u32 %v1805, 2147483648
    %v1808 = vmul.f32 %v1806, 1.442695
    %v1809 = vpow.pop %v1808
    %v1810 = vmul.f32 %v1807, 1.442695
    %v1811 = vpow.pop %v1810
    %v1812 = vadd.f32 %v1809, 1.0
    %v1813 = vadd.f32 %v1811, 1.0
    %v1814 = vrcp.pop %v1812
    %v1815 = vmul.f32 1.0, %v1814
    %v1816 = vrcp.pop %v1813
    %v1817 = vmul.f32 1.0, %v1816
    %v1818 = vadd.f32 %v1784, %v876
    %v1819 = vadd.f32 %v1787, %v876
    %v1820 = vmul.f32 %v1801, %v1818
    %v1821 = vmul.f32 %v1803, %v1819
    %v1822 = vadd.f32 %v1701, %v1820
    %v1823 = vadd.f32 %v1704, %v1821
    %v1824 = vtanh.pop %v1822
    %v1825 = vtanh.pop %v1823
    %v1826 = vsub.f32 %v1689, %v1824
    %v1827 = vsub.f32 %v1690, %v1825
    %v1828 = vmul.f32 %v1815, %v1826
    %v1829 = vmul.f32 %v1817, %v1827
    %v1830 = vadd.f32 %v1824, %v1828
    %v1831 = vadd.f32 %v1825, %v1829
    %s1832 = sadd.s32 %s619, 6
    %v1833 = vstv %s1832
    %vm1834 = vcmp.lt.s32.totalorder %v1833, %v617
    %vm1835 = vcmp.lt.s32.totalorder %v1833, %v618
    %v1836 = vsel %vm1834, 1, 0
    %v1837 = vsel %vm1835, 1, 0
    %1838 = vset.pattern.permute.xlu0 0
    %1839 = vperm.xlu0 %1838, %v1836
    %v1840 = vpop.permute.xlu0 %1839
    %1841 = vset.pattern.permute.xlu0 0
    %1842 = vperm.xlu0 %1841, %v1837
    %v1843 = vpop.permute.xlu0 %1842
    %vm1844 = vcmp.eq.s32.totalorder %v1840, 1
    %vm1845 = vcmp.eq.s32.totalorder %v1843, 1
    %v1846 = vsel %vm1844, %v1830, %v1689
    %v1847 = vsel %vm1845, %v1831, %v1690
    %v1848 = vsel %vm1844, %v1830, 0.0
    %v1849 = vsel %vm1845, %v1831, 0.0
    %s1850 = scalar_lea.vmem %s73, 96
    %1851 = vst [vmem:[%s1850] sm:$0xff] %v1848
    %1852 = vst [vmem:[%s1850 + $0x8] sm:$0xff] %v1849
    %s1853 = smul.u32 14, 3
    %s1854 = smul.addr %s1853, 8
    %s1855 = scalar_lea.vmem [#allocation2], %s1854
    %v1856 = vld [vmem:[%s1855] sm:$0xff]
    %v1857 = vld [vmem:[%s1855 + $0x8] sm:$0xff]
    %v1858 = vld [vmem:[%s1855 + $0x10] sm:$0xff]
    %v1859 = vld [vmem:[%s1855 + $0x18] sm:$0xff]
    %v1860 = vld [vmem:[%s1855 + $0x20] sm:$0xff]
    %v1861 = vld [vmem:[%s1855 + $0x28] sm:$0xff]
    %v1862 = vpack.c.bf16 %v1847, %v1846
    %1863 = vmatprep.subr.bf16.mxu0 %v713
    %1864 = vmatpush1.bf16.msra.mxu0 %v712
    %1865 = vmatprep.subr.bf16.mxu0 %v716
    %1866 = vmatpush1.bf16.msra.mxu0 %v715
    %1867 = vmatprep.subr.bf16.mxu0 %v719
    %1868 = vmatpush1.bf16.msra.mxu0 %v718
    %1869 = vmatprep.subr.bf16.mxu0 %v722
    %1870 = vmatpush1.bf16.msra.mxu0 %v721
    %1871 = vmatprep.subr.bf16.mxu0 %v725
    %1872 = vmatpush1.bf16.msra.mxu0 %v724
    %1873 = vmatprep.subr.bf16.mxu0 %v728
    %1874 = vmatpush1.bf16.msra.mxu0 %v727
    %1875 = vmatprep.subr.bf16.mxu0 %v731
    %1876 = vmatpush1.bf16.msra.mxu0 %v730
    %1877 = vmatprep.subr.bf16.mxu0 %v734
    %1878 = vmatpush1.bf16.msra.mxu0 %v733
    %1879 = vmatprep.subr.bf16.mxu0 0
    %1880 = vmatpush1.bf16.msra.mxu0 0
    %1881 = vmatprep.subr.bf16.mxu0 0
    %1882 = vmatpush1.bf16.msra.mxu0 0
    %1883 = vmatprep.subr.bf16.mxu0 0
    %1884 = vmatpush1.bf16.msra.mxu0 0
    %1885 = vmatprep.subr.bf16.mxu0 0
    %1886 = vmatpush1.bf16.msra.mxu0 0
    %1887 = vmatprep.subr.bf16.mxu0 0
    %1888 = vmatpush1.bf16.msra.mxu0 0
    %1889 = vmatprep.subr.bf16.mxu0 0
    %1890 = vmatpush1.bf16.msra.mxu0 0
    %1891 = vmatprep.subr.bf16.mxu0 0
    %1892 = vmatpush1.bf16.msra.mxu0 0
    %1893 = vmatprep.subr.bf16.mxu0 0
    %1894 = vmatpush1.bf16.msra.mxu0 0
    %1895 = vmatprep.mubr.bf16.mxu0 0
    %1896 = vmatmul.mubr.bf16.gmra.mrb[0].mxu0 %v1862
    %v1897 = vpop.f32.mrb[0].mxu0
    %v1898 = vadd.f32 0.0, %v1897
    %v1899 = vpop.f32.mrb[0].mxu0
    %v1900 = vadd.f32 0.0, %v1899
    %v1901 = vpop.f32.mrb[0].mxu0
    %v1902 = vadd.f32 0.0, %v1901
    %v1903 = vpop.f32.mrb[0].mxu0
    %v1904 = vadd.f32 0.0, %v1903
    %1905 = vdwg.mxu0
    %1906 = vmatprep.subr.bf16.mxu0 0
    %1907 = vmatpush1.bf16.msra.mxu0 %v714
    %1908 = vmatprep.subr.bf16.mxu0 0
    %1909 = vmatpush1.bf16.msra.mxu0 %v717
    %1910 = vmatprep.subr.bf16.mxu0 0
    %1911 = vmatpush1.bf16.msra.mxu0 %v720
    %1912 = vmatprep.subr.bf16.mxu0 0
    %1913 = vmatpush1.bf16.msra.mxu0 %v723
    %1914 = vmatprep.subr.bf16.mxu0 0
    %1915 = vmatpush1.bf16.msra.mxu0 %v726
    %1916 = vmatprep.subr.bf16.mxu0 0
    %1917 = vmatpush1.bf16.msra.mxu0 %v729
    %1918 = vmatprep.subr.bf16.mxu0 0
    %1919 = vmatpush1.bf16.msra.mxu0 %v732
    %1920 = vmatprep.subr.bf16.mxu0 0
    %1921 = vmatpush1.bf16.msra.mxu0 %v735
    %1922 = vmatprep.subr.bf16.mxu0 0
    %1923 = vmatpush1.bf16.msra.mxu0 0
    %1924 = vmatprep.subr.bf16.mxu0 0
    %1925 = vmatpush1.bf16.msra.mxu0 0
    %1926 = vmatprep.subr.bf16.mxu0 0
    %1927 = vmatpush1.bf16.msra.mxu0 0
    %1928 = vmatprep.subr.bf16.mxu0 0
    %1929 = vmatpush1.bf16.msra.mxu0 0
    %1930 = vmatprep.subr.bf16.mxu0 0
    %1931 = vmatpush1.bf16.msra.mxu0 0
    %1932 = vmatprep.subr.bf16.mxu0 0
    %1933 = vmatpush1.bf16.msra.mxu0 0
    %1934 = vmatprep.subr.bf16.mxu0 0
    %1935 = vmatpush1.bf16.msra.mxu0 0
    %1936 = vmatprep.subr.bf16.mxu0 0
    %1937 = vmatpush1.bf16.msra.mxu0 0
    %1938 = vmatprep.mubr.bf16.mxu0 0
    %1939 = vmatmul.mubr.bf16.gmra.mrb[0].mxu0 %v1862
    %v1940 = vpop.f32.mrb[0].mxu0
    %v1941 = vadd.f32 0.0, %v1940
    %v1942 = vpop.f32.mrb[0].mxu0
    %v1943 = vpop.f32.mrb[0].mxu0
    %v1944 = vadd.f32 0.0, %v1943
    %v1945 = vpop.f32.mrb[0].mxu0
    %1946 = vdwg.mxu0
    %v1947 = vadd.f32 %v1856, %v1898
    %v1948 = vadd.f32 %v1859, %v1902
    %v1949 = vxor.u32 %v1947, 2147483648
    %v1950 = vxor.u32 %v1948, 2147483648
    %v1951 = vmul.f32 %v1949, 1.442695
    %v1952 = vpow.pop %v1951
    %v1953 = vmul.f32 %v1950, 1.442695
    %v1954 = vpow.pop %v1953
    %v1955 = vadd.f32 %v1952, 1.0
    %v1956 = vadd.f32 %v1954, 1.0
    %v1957 = vrcp.pop %v1955
    %v1958 = vmul.f32 1.0, %v1957
    %v1959 = vrcp.pop %v1956
    %v1960 = vmul.f32 1.0, %v1959
    %v1961 = vadd.f32 %v1857, %v1900
    %v1962 = vadd.f32 %v1860, %v1904
    %v1963 = vxor.u32 %v1961, 2147483648
    %v1964 = vxor.u32 %v1962, 2147483648
    %v1965 = vmul.f32 %v1963, 1.442695
    %v1966 = vpow.pop %v1965
    %v1967 = vmul.f32 %v1964, 1.442695
    %v1968 = vpow.pop %v1967
    %v1969 = vadd.f32 %v1966, 1.0
    %v1970 = vadd.f32 %v1968, 1.0
    %v1971 = vrcp.pop %v1969
    %v1972 = vmul.f32 1.0, %v1971
    %v1973 = vrcp.pop %v1970
    %v1974 = vmul.f32 1.0, %v1973
    %v1975 = vadd.f32 %v1941, %v876
    %v1976 = vadd.f32 %v1944, %v876
    %v1977 = vmul.f32 %v1958, %v1975
    %v1978 = vmul.f32 %v1960, %v1976
    %v1979 = vadd.f32 %v1858, %v1977
    %v1980 = vadd.f32 %v1861, %v1978
    %v1981 = vtanh.pop %v1979
    %v1982 = vtanh.pop %v1980
    %v1983 = vsub.f32 %v1846, %v1981
    %v1984 = vsub.f32 %v1847, %v1982
    %v1985 = vmul.f32 %v1972, %v1983
    %v1986 = vmul.f32 %v1974, %v1984
    %v1987 = vadd.f32 %v1981, %v1985
    %v1988 = vadd.f32 %v1982, %v1986
    %s1989 = sadd.s32 %s619, 7
    %v1990 = vstv %s1989
    %vm1991 = vcmp.lt.s32.totalorder %v1990, %v617
    %vm1992 = vcmp.lt.s32.totalorder %v1990, %v618
    %v1993 = vsel %vm1991, 1, 0
    %v1994 = vsel %vm1992, 1, 0
    %1995 = vset.pattern.permute.xlu0 0
    %1996 = vperm.xlu0 %1995, %v1993
    %v1997 = vpop.permute.xlu0 %1996
    %1998 = vset.pattern.permute.xlu0 0
    %1999 = vperm.xlu0 %1998, %v1994
    %v2000 = vpop.permute.xlu0 %1999
    %vm2001 = vcmp.eq.s32.totalorder %v1997, 1
    %vm2002 = vcmp.eq.s32.totalorder %v2000, 1
    %v2003 = vsel %vm2001, %v1987, %v1846
    %v2004 = vsel %vm2002, %v1988, %v1847
    %v2005 = vsel %vm2001, %v1987, 0.0
    %v2006 = vsel %vm2002, %v1988, 0.0
    %s2007 = scalar_lea.vmem %s73, 112
    %2008 = vst [vmem:[%s2007] sm:$0xff] %v2005
    %2009 = vst [vmem:[%s2007 + $0x8] sm:$0xff] %v2006
    %2010 = vst [vmem:[#allocation3] sm:$0xff] %v2003
    %2011 = vst [vmem:[#allocation3 + $0x8] sm:$0xff] %v2004
    // Predicated region
    $region38: #{encoder_rnn_forward.3} parent=1 // pred_check
      %p2012 = pneg %p77
    $region39: #{encoder_rnn_forward.3} parent=1 // pred_check_branch
      %2014 = sbr.rel (%p2012) target = $region41
    $region40: #{encoder_rnn_forward.3} parent=1 // pred_region
      %2015 = vst [vmem:[%s8] sm:$0xff] %v2003
      %2016 = vst [vmem:[%s8 + $0x8] sm:$0xff] %v2004
    $region41: #{encoder_rnn_forward.3} parent=1 // pred_fallthru
      _
    %s2017 = sadd.s32 0, 0
    %s2018 = smul.u32 16, %s2017
    %p2019 = scmp.lt.s32.totalorder %s2018, 15
    %s2020 = scalar_select %p2019, %s2018, 15
    %s2021 = smul.addr %s2020, 8
    %s2022 = scalar_lea.vmem %s7, %s2021
    // Predicated region
    $region42: #{encoder_rnn_forward.3} parent=1 // pred_check
      _
    $region43: #{encoder_rnn_forward.3} parent=1 // pred_check_branch
      %2024 = sbr.rel (0) target = $region45
    $region44: #{encoder_rnn_forward.3} parent=1 // pred_region
      %s2025 = sadd.s32 0, 0
      %s2026 = smul.u32 16, %s2025
    $region45: #{encoder_rnn_forward.3} parent=1 // pred_fallthru
      _
    // Predicated region
    $region46: #{encoder_rnn_forward.3} parent=1 // pred_check
      _
    $region47: #{encoder_rnn_forward.3} parent=1 // pred_check_branch
      %2028 = sbr.rel (0) target = $region49
    $region48: #{encoder_rnn_forward.3} parent=1 // pred_region
      _
    $region49: #{encoder_rnn_forward.3} parent=1 // pred_fallthru
      _
    // Predicated region
    $region50: #{encoder_rnn_forward.3} parent=1 // pred_check
      _
    $region51: #{encoder_rnn_forward.3} parent=1 // pred_check_branch
      %2030 = sbr.rel (0) target = $region53
    $region52: #{encoder_rnn_forward.3} parent=1 // pred_region
      %s2031 = sadd.s32 0, 0
      %s2032 = smul.u32 16, %s2031
      %p2033 = scmp.lt.s32.totalorder %s2032, 15
      %s2034 = scalar_select %p2033, %s2032, 15
      %s2035 = smul.addr %s2034, 8
      %s2036 = scalar_lea.vmem %s7, %s2035
    $region53: #{encoder_rnn_forward.3} parent=1 // pred_fallthru
      _
    // Predicated region
    $region54: #{encoder_rnn_forward.3} parent=1 // pred_check
      _
    $region55: #{encoder_rnn_forward.3} parent=1 // pred_check_branch
      %2038 = sbr.rel (0) target = $region57
    $region56: #{encoder_rnn_forward.3} parent=1 // pred_region
      _
    $region57: #{encoder_rnn_forward.3} parent=1 // pred_fallthru
      _
    %2039 = vsyncpa [#allocation5], 1

// kernel: encoder_rnn_forward.2
$region0: #{encoder_rnn_forward.2}
  #allocation0 [shape = 'u32[]', space=smem, size = 0x4, offset = 0x4, fixed_abs, tag = 'smem constant byte address 0x4 - core index']
  #allocation1 [shape = 'u32[144,128]{1,0:T(1,128)}', space=vmem, size = 0x12000, scoped, tag = 'internal scratch']
  #allocation2 [shape = 'f32[128,384]{1,0:T(8,128)}', space=vmem, size = 0x30000, scoped, tag = 'scratch operand']
  #allocation3 [shape = 'f32[16,128]{1,0:T(8,128)}', space=vmem, size = 0x2000, scoped, tag = 'scratch operand']
  %s0 = inlined_call_operand.vmem [shape: s32[16,1], index: 0, kind: input, shape index: {}]
  %s1 = inlined_call_operand.vmem [shape: bf16[128,16], index: 1, kind: input, shape index: {}]
  %s2 = inlined_call_operand.vmem [shape: f32[16,128], index: 2, kind: input, shape index: {}]
  %s3 = inlined_call_operand.vmem [shape: bf16[16,384], index: 3, kind: input, shape index: {}]
  %s4 = inlined_call_operand.vmem [shape: f32[1,384], index: 4, kind: input, shape index: {}]
  %s5 = inlined_call_operand.vmem [shape: bf16[128,384], index: 5, kind: input, shape index: {}]
  %s6 = inlined_call_operand.vmem [shape: f32[1,128], index: 6, kind: input, shape index: {}]
  %s7 = inlined_call_operand.vmem [shape: bf16[128,128], index: 7, kind: output, shape index: {0}]
  %s8 = inlined_call_operand.vmem [shape: f32[16,128], index: 8, kind: output, shape index: {1}]
  %9 = xla_tuple %s7, %s8
  %s10 = sld [smem:[#allocation0]]
  $region54: #{encoder_rnn_forward.2} parent=0
    _
  %s12 = ssub.s32 1, %s10
  %s13 = scalar_select 0, %s12, %s10
  // Predicated region
  $region2: #{encoder_rnn_forward.2} parent=0 // pred_check
    _
  $region3: #{encoder_rnn_forward.2} parent=0 // pred_check_branch
    %15 = sbr.rel (0) target = $region5
  $region4: #{encoder_rnn_forward.2} parent=0 // pred_region
    _
  $region5: #{encoder_rnn_forward.2} parent=0 // pred_fallthru
    _
  // Predicated region
  $region6: #{encoder_rnn_forward.2} parent=0 // pred_check
    _
  $region7: #{encoder_rnn_forward.2} parent=0 // pred_check_branch
    %17 = sbr.rel (0) target = $region9
  $region8: #{encoder_rnn_forward.2} parent=0 // pred_region
    %s18 = sadd.s32 0, 0
    %s19 = smul.u32 16, %s18
    %p20 = scmp.lt.s32.totalorder %s19, 15
    %s21 = scalar_select %p20, %s19, 15
    %s22 = smul.addr %s21, 4
    %s23 = scalar_lea.vmem %s1, %s22
    %s24 = sadd.s32 0, 0
    %s25 = smul.u32 16, %s24
  $region9: #{encoder_rnn_forward.2} parent=0 // pred_fallthru
    _
  // Predicated region
  $region10: #{encoder_rnn_forward.2} parent=0 // pred_check
    _
  $region11: #{encoder_rnn_forward.2} parent=0 // pred_check_branch
    %27 = sbr.rel (0) target = $region13
  $region12: #{encoder_rnn_forward.2} parent=0 // pred_region
    _
  $region13: #{encoder_rnn_forward.2} parent=0 // pred_fallthru
    _
  // Predicated region
  $region14: #{encoder_rnn_forward.2} parent=0 // pred_check
    _
  $region15: #{encoder_rnn_forward.2} parent=0 // pred_check_branch
    %29 = sbr.rel (0) target = $region17
  $region16: #{encoder_rnn_forward.2} parent=0 // pred_region
    _
  $region17: #{encoder_rnn_forward.2} parent=0 // pred_fallthru
    _
  // Predicated region
  $region18: #{encoder_rnn_forward.2} parent=0 // pred_check
    _
  $region19: #{encoder_rnn_forward.2} parent=0 // pred_check_branch
    %31 = sbr.rel (0) target = $region21
  $region20: #{encoder_rnn_forward.2} parent=0 // pred_region
    _
  $region21: #{encoder_rnn_forward.2} parent=0 // pred_fallthru
    _
  // Predicated region
  $region22: #{encoder_rnn_forward.2} parent=0 // pred_check
    _
  $region23: #{encoder_rnn_forward.2} parent=0 // pred_check_branch
    %33 = sbr.rel (0) target = $region25
  $region24: #{encoder_rnn_forward.2} parent=0 // pred_region
    _
  $region25: #{encoder_rnn_forward.2} parent=0 // pred_fallthru
    _
  // Predicated region
  $region26: #{encoder_rnn_forward.2} parent=0 // pred_check
    _
  $region27: #{encoder_rnn_forward.2} parent=0 // pred_check_branch
    %35 = sbr.rel (0) target = $region29
  $region28: #{encoder_rnn_forward.2} parent=0 // pred_region
    _
  $region29: #{encoder_rnn_forward.2} parent=0 // pred_fallthru
    _
  %s36 = sadd.s32 0, 0
  %s37 = smul.u32 16, %s36
  %p38 = scmp.lt.s32.totalorder %s37, 15
  %s39 = scalar_select %p38, %s37, 15
  %s40 = smul.addr %s39, 4
  %s41 = scalar_lea.vmem %s1, %s40
  %s42 = sadd.s32 0, 0
  %s43 = smul.u32 16, %s42
  %p44 = scmp.lt.s32.totalorder %s43, 15
  %s45 = scalar_select %p44, %s43, 15
  %s46 = smul.addr %s45, 4
  %s47 = scalar_lea.vmem %s7, %s46
  %s48 = sadd.s32 0, 0
  %s49 = smul.u32 16, %s48
  %p50 = scmp.lt.s32.totalorder %s49, 15
  %s51 = scalar_select %p50, %s49, 15
  %s52 = smul.addr %s51, 4
  %s53 = scalar_lea.vmem %s1, %s52
  %s54 = sadd.s32 0, 0
  %s55 = smul.u32 16, %s54
  %s56 = sadd.s32 0, 0
  %s57 = smul.u32 16, %s56
  %p58 = scmp.lt.s32.totalorder %s57, 15
  %s59 = scalar_select %p58, %s57, 15
  %s60 = smul.addr %s59, 4
  %s61 = scalar_lea.vmem %s7, %s60
  %s62 = sadd.s32 0, 0
  %s63 = smul.u32 16, %s62
  %p65 = scmp.eq.s32.totalorder 0, 0
  // Predicated region
  $region30: #{encoder_rnn_forward.2} parent=0 // pred_check
    %p66 = pneg %p65
  $region31: #{encoder_rnn_forward.2} parent=0 // pred_check_branch
    %68 = sbr.rel (%p66) target = $region33
  $region32: #{encoder_rnn_forward.2} parent=0 // pred_region
    %v69 = vld [vmem:[%s2] sm:$0xff]
    %v70 = vld [vmem:[%s2 + $0x8] sm:$0xff]
    %71 = vst [vmem:[#allocation3] sm:$0xff] %v69
    %72 = vst [vmem:[#allocation3 + $0x8] sm:$0xff] %v70
  $region33: #{encoder_rnn_forward.2} parent=0 // pred_fallthru
    _
  %v73 = vld [vmem:[%s53] sm:$0xf]
  %v74 = vld [vmem:[%s53 + $0x4] sm:$0xf]
  %v75 = vld [vmem:[%s53 + $0x8] sm:$0xf]
  %v76 = vld [vmem:[%s53 + $0xc] sm:$0xf]
  %v77 = vld [vmem:[%s53 + $0x10] sm:$0xf]
  %v78 = vld [vmem:[%s53 + $0x14] sm:$0xf]
  %v79 = vld [vmem:[%s53 + $0x18] sm:$0xf]
  %v80 = vld [vmem:[%s53 + $0x1c] sm:$0xf]
  %v81 = vld [vmem:[%s53 + $0x20] sm:$0xf]
  %v82 = vld [vmem:[%s53 + $0x24] sm:$0xf]
  %v83 = vld [vmem:[%s53 + $0x28] sm:$0xf]
  %v84 = vld [vmem:[%s53 + $0x2c] sm:$0xf]
  %v85 = vld [vmem:[%s53 + $0x30] sm:$0xf]
  %v86 = vld [vmem:[%s53 + $0x34] sm:$0xf]
  %v87 = vld [vmem:[%s53 + $0x38] sm:$0xf]
  %v88 = vld [vmem:[%s53 + $0x3c] sm:$0xf]
  %v89 = vld [vmem:[%s3] sm:$0xff]
  %v90 = vld [vmem:[%s3 + $0x8] sm:$0xf]
  %v91 = vld [vmem:[%s3 + $0xc] sm:$0xff]
  %v92 = vld [vmem:[%s3 + $0x14] sm:$0xf]
  %v93 = vld [vmem:[%s4] sm:$0x7]
  %v95 = vlaneseq
  %v96 = vshrl.u32 %v95, 7
  %v97 = vsub.s32 0, %v96
  %v98 = vrot.slane %v93, %v97
  %v99 = vlaneseq
  %v100 = vshrl.u32 %v99, 7
  %v101 = vsub.s32 1, %v100
  %v102 = vrot.slane %v93, %v101
  %v103 = vlaneseq
  %v104 = vshrl.u32 %v103, 7
  %v105 = vsub.s32 2, %v104
  %v106 = vrot.slane %v93, %v105
  %v126 = vunpack.c.l.b16 %v73
  %v127 = vunpack.c.l.b16 %v74
  %v128 = vunpack.c.l.b16 %v75
  %v129 = vunpack.c.l.b16 %v76
  %v130 = vunpack.c.l.b16 %v77
  %v131 = vunpack.c.l.b16 %v78
  %v132 = vunpack.c.l.b16 %v79
  %v133 = vunpack.c.l.b16 %v80
  %v134 = vunpack.c.l.b16 %v81
  %v135 = vunpack.c.l.b16 %v82
  %v136 = vunpack.c.l.b16 %v83
  %v137 = vunpack.c.l.b16 %v84
  %v138 = vunpack.c.l.b16 %v85
  %v139 = vunpack.c.l.b16 %v86
  %v140 = vunpack.c.l.b16 %v87
  %v141 = vunpack.c.l.b16 %v88
  %v142 = vpack.c.b16 %v127, %v126
  %v143 = vpack.c.b16 %v129, %v128
  %v144 = vpack.c.b16 %v131, %v130
  %v145 = vpack.c.b16 %v133, %v132
  %v146 = vpack.c.b16 %v135, %v134
  %v147 = vpack.c.b16 %v137, %v136
  %v148 = vpack.c.b16 %v139, %v138
  %v149 = vpack.c.b16 %v141, %v140
  %v154 = vunpack.c.l.b16 %v89
  %v155 = vunpack.c.h.b16 %v89
  %v156 = vunpack.c.l.b16 %v90
  %v157 = vunpack.c.l.b16 %v91
  %v158 = vunpack.c.h.b16 %v91
  %v159 = vunpack.c.l.b16 %v92
  %v160 = vpack.c.b16 %v157, %v154
  %v161 = vpack.c.b16 %v158, %v155
  %v162 = vpack.c.b16 %v159, %v156
  %vm166 = vcmask 130048
  %v168 = vsel %vm166, %v142, 0
  %v171 = vsel %vm166, %v143, 0
  %v174 = vsel %vm166, %v144, 0
  %v177 = vsel %vm166, %v145, 0
  %v180 = vsel %vm166, %v146, 0
  %v183 = vsel %vm166, %v147, 0
  %v186 = vsel %vm166, %v148, 0
  %v189 = vsel %vm166, %v149, 0
  %191 = vmatprep.subr.bf16.mxu0 %v161
  %192 = vmatpush1.bf16.msra.mxu0 %v160
  %193 = vmatprep.subr.bf16.mxu0 0
  %194 = vmatpush1.bf16.msra.mxu0 0
  %195 = vmatprep.subr.bf16.mxu0 0
  %196 = vmatpush1.bf16.msra.mxu0 0
  %197 = vmatprep.subr.bf16.mxu0 0
  %198 = vmatpush1.bf16.msra.mxu0 0
  %199 = vmatprep.subr.bf16.mxu0 0
  %200 = vmatpush1.bf16.msra.mxu0 0
  %201 = vmatprep.subr.bf16.mxu0 0
  %202 = vmatpush1.bf16.msra.mxu0 0
  %203 = vmatprep.subr.bf16.mxu0 0
  %204 = vmatpush1.bf16.msra.mxu0 0
  %205 = vmatprep.subr.bf16.mxu0 0
  %206 = vmatpush1.bf16.msra.mxu0 0
  %207 = vmatprep.subr.bf16.mxu0 0
  %208 = vmatpush1.bf16.msra.mxu0 0
  %209 = vmatprep.subr.bf16.mxu0 0
  %210 = vmatpush1.bf16.msra.mxu0 0
  %211 = vmatprep.subr.bf16.mxu0 0
  %212 = vmatpush1.bf16.msra.mxu0 0
  %213 = vmatprep.subr.bf16.mxu0 0
  %214 = vmatpush1.bf16.msra.mxu0 0
  %215 = vmatprep.subr.bf16.mxu0 0
  %216 = vmatpush1.bf16.msra.mxu0 0
  %217 = vmatprep.subr.bf16.mxu0 0
  %218 = vmatpush1.bf16.msra.mxu0 0
  %219 = vmatprep.subr.bf16.mxu0 0
  %220 = vmatpush1.bf16.msra.mxu0 0
  %221 = vmatprep.subr.bf16.mxu0 0
  %222 = vmatpush1.bf16.msra.mxu0 0
  %223 = vmatprep.mubr.bf16.mxu0 0
  %224 = vmatmul.mubr.bf16.gmra.mrb[0].mxu0 %v168
  %v225 = vpop.f32.mrb[0].mxu0
  %v226 = vadd.f32 %v98, %v225
  %v227 = vpop.f32.mrb[0].mxu0
  %v228 = vadd.f32 %v102, %v227
  %v229 = vpop.f32.mrb[0].mxu0
  %v230 = vadd.f32 %v98, %v229
  %v231 = vpop.f32.mrb[0].mxu0
  %v232 = vadd.f32 %v102, %v231
  %233 = vmatprep.mubr.bf16.mxu0 0
  %234 = vmatmul.mubr.bf16.gmra.mrb[0].mxu0 %v171
  %v235 = vpop.f32.mrb[0].mxu0
  %v236 = vadd.f32 %v98, %v235
  %v237 = vpop.f32.mrb[0].mxu0
  %v238 = vadd.f32 %v102, %v237
  %v239 = vpop.f32.mrb[0].mxu0
  %v240 = vadd.f32 %v98, %v239
  %v241 = vpop.f32.mrb[0].mxu0
  %v242 = vadd.f32 %v102, %v241
  %243 = vmatprep.mubr.bf16.mxu0 0
  %244 = vmatmul.mubr.bf16.gmra.mrb[0].mxu0 %v174
  %v245 = vpop.f32.mrb[0].mxu0
  %v246 = vadd.f32 %v98, %v245
  %v247 = vpop.f32.mrb[0].mxu0
  %v248 = vadd.f32 %v102, %v247
  %v249 = vpop.f32.mrb[0].mxu0
  %v250 = vadd.f32 %v98, %v249
  %v251 = vpop.f32.mrb[0].mxu0
  %v252 = vadd.f32 %v102, %v251
  %253 = vmatprep.mubr.bf16.mxu0 0
  %254 = vmatmul.mubr.bf16.gmra.mrb[0].mxu0 %v177
  %v255 = vpop.f32.mrb[0].mxu0
  %v256 = vadd.f32 %v98, %v255
  %v257 = vpop.f32.mrb[0].mxu0
  %v258 = vadd.f32 %v102, %v257
  %v259 = vpop.f32.mrb[0].mxu0
  %v260 = vadd.f32 %v98, %v259
  %v261 = vpop.f32.mrb[0].mxu0
  %v262 = vadd.f32 %v102, %v261
  %263 = vmatprep.mubr.bf16.mxu0 0
  %264 = vmatmul.mubr.bf16.gmra.mrb[0].mxu0 %v180
  %v265 = vpop.f32.mrb[0].mxu0
  %v266 = vadd.f32 %v98, %v265
  %v267 = vpop.f32.mrb[0].mxu0
  %v268 = vadd.f32 %v102, %v267
  %v269 = vpop.f32.mrb[0].mxu0
  %v270 = vadd.f32 %v98, %v269
  %v271 = vpop.f32.mrb[0].mxu0
  %v272 = vadd.f32 %v102, %v271
  %273 = vmatprep.mubr.bf16.mxu0 0
  %274 = vmatmul.mubr.bf16.gmra.mrb[0].mxu0 %v183
  %v275 = vpop.f32.mrb[0].mxu0
  %v276 = vadd.f32 %v98, %v275
  %v277 = vpop.f32.mrb[0].mxu0
  %v278 = vadd.f32 %v102, %v277
  %v279 = vpop.f32.mrb[0].mxu0
  %v280 = vadd.f32 %v98, %v279
  %v281 = vpop.f32.mrb[0].mxu0
  %v282 = vadd.f32 %v102, %v281
  %283 = vmatprep.mubr.bf16.mxu0 0
  %284 = vmatmul.mubr.bf16.gmra.mrb[0].mxu0 %v186
  %v285 = vpop.f32.mrb[0].mxu0
  %v286 = vadd.f32 %v98, %v285
  %v287 = vpop.f32.mrb[0].mxu0
  %v288 = vadd.f32 %v102, %v287
  %v289 = vpop.f32.mrb[0].mxu0
  %v290 = vadd.f32 %v98, %v289
  %v291 = vpop.f32.mrb[0].mxu0
  %v292 = vadd.f32 %v102, %v291
  %293 = vmatprep.mubr.bf16.mxu0 0
  %294 = vmatmul.mubr.bf16.gmra.mrb[0].mxu0 %v189
  %v295 = vpop.f32.mrb[0].mxu0
  %v296 = vadd.f32 %v98, %v295
  %v297 = vpop.f32.mrb[0].mxu0
  %v298 = vadd.f32 %v102, %v297
  %v299 = vpop.f32.mrb[0].mxu0
  %v300 = vadd.f32 %v98, %v299
  %v301 = vpop.f32.mrb[0].mxu0
  %v302 = vadd.f32 %v102, %v301
  %303 = vdwg.mxu0
  %304 = vmatprep.subr.bf16.mxu0 0
  %305 = vmatpush1.bf16.msra.mxu0 %v162
  %306 = vmatprep.subr.bf16.mxu0 0
  %307 = vmatpush1.bf16.msra.mxu0 0
  %308 = vmatprep.subr.bf16.mxu0 0
  %309 = vmatpush1.bf16.msra.mxu0 0
  %310 = vmatprep.subr.bf16.mxu0 0
  %311 = vmatpush1.bf16.msra.mxu0 0
  %312 = vmatprep.subr.bf16.mxu0 0
  %313 = vmatpush1.bf16.msra.mxu0 0
  %314 = vmatprep.subr.bf16.mxu0 0
  %315 = vmatpush1.bf16.msra.mxu0 0
  %316 = vmatprep.subr.bf16.mxu0 0
  %317 = vmatpush1.bf16.msra.mxu0 0
  %318 = vmatprep.subr.bf16.mxu0 0
  %319 = vmatpush1.bf16.msra.mxu0 0
  %320 = vmatprep.subr.bf16.mxu0 0
  %321 = vmatpush1.bf16.msra.mxu0 0
  %322 = vmatprep.subr.bf16.mxu0 0
  %323 = vmatpush1.bf16.msra.mxu0 0
  %324 = vmatprep.subr.bf16.mxu0 0
  %325 = vmatpush1.bf16.msra.mxu0 0
  %326 = vmatprep.subr.bf16.mxu0 0
  %327 = vmatpush1.bf16.msra.mxu0 0
  %328 = vmatprep.subr.bf16.mxu0 0
  %329 = vmatpush1.bf16.msra.mxu0 0
  %330 = vmatprep.subr.bf16.mxu0 0
  %331 = vmatpush1.bf16.msra.mxu0 0
  %332 = vmatprep.subr.bf16.mxu0 0
  %333 = vmatpush1.bf16.msra.mxu0 0
  %334 = vmatprep.subr.bf16.mxu0 0
  %335 = vmatpush1.bf16.msra.mxu0 0
  %336 = vmatprep.mubr.bf16.mxu0 0
  %337 = vmatmul.mubr.bf16.gmra.mrb[0].mxu0 %v168
  %v338 = vpop.f32.mrb[0].mxu0
  %v339 = vadd.f32 %v106, %v338
  %v340 = vpop.f32.mrb[0].mxu0
  %v341 = vpop.f32.mrb[0].mxu0
  %v342 = vadd.f32 %v106, %v341
  %v343 = vpop.f32.mrb[0].mxu0
  %344 = vmatprep.mubr.bf16.mxu0 0
  %345 = vmatmul.mubr.bf16.gmra.mrb[0].mxu0 %v171
  %v346 = vpop.f32.mrb[0].mxu0
  %v347 = vadd.f32 %v106, %v346
  %v348 = vpop.f32.mrb[0].mxu0
  %v349 = vpop.f32.mrb[0].mxu0
  %v350 = vadd.f32 %v106, %v349
  %v351 = vpop.f32.mrb[0].mxu0
  %352 = vmatprep.mubr.bf16.mxu0 0
  %353 = vmatmul.mubr.bf16.gmra.mrb[0].mxu0 %v174
  %v354 = vpop.f32.mrb[0].mxu0
  %v355 = vadd.f32 %v106, %v354
  %v356 = vpop.f32.mrb[0].mxu0
  %v357 = vpop.f32.mrb[0].mxu0
  %v358 = vadd.f32 %v106, %v357
  %v359 = vpop.f32.mrb[0].mxu0
  %360 = vmatprep.mubr.bf16.mxu0 0
  %361 = vmatmul.mubr.bf16.gmra.mrb[0].mxu0 %v177
  %v362 = vpop.f32.mrb[0].mxu0
  %v363 = vadd.f32 %v106, %v362
  %v364 = vpop.f32.mrb[0].mxu0
  %v365 = vpop.f32.mrb[0].mxu0
  %v366 = vadd.f32 %v106, %v365
  %v367 = vpop.f32.mrb[0].mxu0
  %368 = vmatprep.mubr.bf16.mxu0 0
  %369 = vmatmul.mubr.bf16.gmra.mrb[0].mxu0 %v180
  %v370 = vpop.f32.mrb[0].mxu0
  %v371 = vadd.f32 %v106, %v370
  %v372 = vpop.f32.mrb[0].mxu0
  %v373 = vpop.f32.mrb[0].mxu0
  %v374 = vadd.f32 %v106, %v373
  %v375 = vpop.f32.mrb[0].mxu0
  %376 = vmatprep.mubr.bf16.mxu0 0
  %377 = vmatmul.mubr.bf16.gmra.mrb[0].mxu0 %v183
  %v378 = vpop.f32.mrb[0].mxu0
  %v379 = vadd.f32 %v106, %v378
  %v380 = vpop.f32.mrb[0].mxu0
  %v381 = vpop.f32.mrb[0].mxu0
  %v382 = vadd.f32 %v106, %v381
  %v383 = vpop.f32.mrb[0].mxu0
  %384 = vmatprep.mubr.bf16.mxu0 0
  %385 = vmatmul.mubr.bf16.gmra.mrb[0].mxu0 %v186
  %v386 = vpop.f32.mrb[0].mxu0
  %v387 = vadd.f32 %v106, %v386
  %v388 = vpop.f32.mrb[0].mxu0
  %v389 = vpop.f32.mrb[0].mxu0
  %v390 = vadd.f32 %v106, %v389
  %v391 = vpop.f32.mrb[0].mxu0
  %392 = vmatprep.mubr.bf16.mxu0 0
  %393 = vmatmul.mubr.bf16.gmra.mrb[0].mxu0 %v189
  %v394 = vpop.f32.mrb[0].mxu0
  %v395 = vadd.f32 %v106, %v394
  %v396 = vpop.f32.mrb[0].mxu0
  %v397 = vpop.f32.mrb[0].mxu0
  %v398 = vadd.f32 %v106, %v397
  %v399 = vpop.f32.mrb[0].mxu0
  %400 = vdwg.mxu0
  %401 = vst [vmem:[#allocation2] sm:$0xff] %v226
  %402 = vst [vmem:[#allocation2 + $0x8] sm:$0xff] %v228
  %403 = vst [vmem:[#allocation2 + $0x10] sm:$0xff] %v339
  %404 = vst [vmem:[#allocation2 + $0x18] sm:$0xff] %v230
  %405 = vst [vmem:[#allocation2 + $0x20] sm:$0xff] %v232
  %406 = vst [vmem:[#allocation2 + $0x28] sm:$0xff] %v342
  %407 = vst [vmem:[#allocation2 + $0x30] sm:$0xff] %v236
  %408 = vst [vmem:[#allocation2 + $0x38] sm:$0xff] %v238
  %409 = vst [vmem:[#allocation2 + $0x40] sm:$0xff] %v347
  %410 = vst [vmem:[#allocation2 + $0x48] sm:$0xff] %v240
  %411 = vst [vmem:[#allocation2 + $0x50] sm:$0xff] %v242
  %412 = vst [vmem:[#allocation2 + $0x58] sm:$0xff] %v350
  %413 = vst [vmem:[#allocation2 + $0x60] sm:$0xff] %v246
  %414 = vst [vmem:[#allocation2 + $0x68] sm:$0xff] %v248
  %415 = vst [vmem:[#allocation2 + $0x70] sm:$0xff] %v355
  %416 = vst [vmem:[#allocation2 + $0x78] sm:$0xff] %v250
  %417 = vst [vmem:[#allocation2 + $0x80] sm:$0xff] %v252
  %418 = vst [vmem:[#allocation2 + $0x88] sm:$0xff] %v358
  %419 = vst [vmem:[#allocation2 + $0x90] sm:$0xff] %v256
  %420 = vst [vmem:[#allocation2 + $0x98] sm:$0xff] %v258
  %421 = vst [vmem:[#allocation2 + $0xa0] sm:$0xff] %v363
  %422 = vst [vmem:[#allocation2 + $0xa8] sm:$0xff] %v260
  %423 = vst [vmem:[#allocation2 + $0xb0] sm:$0xff] %v262
  %424 = vst [vmem:[#allocation2 + $0xb8] sm:$0xff] %v366
  %425 = vst [vmem:[#allocation2 + $0xc0] sm:$0xff] %v266
  %426 = vst [vmem:[#allocation2 + $0xc8] sm:$0xff] %v268
  %427 = vst [vmem:[#allocation2 + $0xd0] sm:$0xff] %v371
  %428 = vst [vmem:[#allocation2 + $0xd8] sm:$0xff] %v270
  %429 = vst [vmem:[#allocation2 + $0xe0] sm:$0xff] %v272
  %430 = vst [vmem:[#allocation2 + $0xe8] sm:$0xff] %v374
  %431 = vst [vmem:[#allocation2 + $0xf0] sm:$0xff] %v276
  %432 = vst [vmem:[#allocation2 + $0xf8] sm:$0xff] %v278
  %433 = vst [vmem:[#allocation2 + $0x100] sm:$0xff] %v379
  %434 = vst [vmem:[#allocation2 + $0x108] sm:$0xff] %v280
  %435 = vst [vmem:[#allocation2 + $0x110] sm:$0xff] %v282
  %436 = vst [vmem:[#allocation2 + $0x118] sm:$0xff] %v382
  %437 = vst [vmem:[#allocation2 + $0x120] sm:$0xff] %v286
  %438 = vst [vmem:[#allocation2 + $0x128] sm:$0xff] %v288
  %439 = vst [vmem:[#allocation2 + $0x130] sm:$0xff] %v387
  %440 = vst [vmem:[#allocation2 + $0x138] sm:$0xff] %v290
  %441 = vst [vmem:[#allocation2 + $0x140] sm:$0xff] %v292
  %442 = vst [vmem:[#allocation2 + $0x148] sm:$0xff] %v390
  %443 = vst [vmem:[#allocation2 + $0x150] sm:$0xff] %v296
  %444 = vst [vmem:[#allocation2 + $0x158] sm:$0xff] %v298
  %445 = vst [vmem:[#allocation2 + $0x160] sm:$0xff] %v395
  %446 = vst [vmem:[#allocation2 + $0x168] sm:$0xff] %v300
  %447 = vst [vmem:[#allocation2 + $0x170] sm:$0xff] %v302
  %448 = vst [vmem:[#allocation2 + $0x178] sm:$0xff] %v398
  %v449 = vld [vmem:[%s5] sm:$0xff]
  %v450 = vld [vmem:[%s5 + $0x8] sm:$0xf]
  %v451 = vld [vmem:[%s5 + $0xc] sm:$0xff]
  %v452 = vld [vmem:[%s5 + $0x14] sm:$0xf]
  %v453 = vld [vmem:[%s5 + $0x18] sm:$0xff]
  %v454 = vld [vmem:[%s5 + $0x20] sm:$0xf]
  %v455 = vld [vmem:[%s5 + $0x24] sm:$0xff]
  %v456 = vld [vmem:[%s5 + $0x2c] sm:$0xf]
  %v457 = vld [vmem:[%s5 + $0x30] sm:$0xff]
  %v458 = vld [vmem:[%s5 + $0x38] sm:$0xf]
  %v459 = vld [vmem:[%s5 + $0x3c] sm:$0xff]
  %v460 = vld [vmem:[%s5 + $0x44] sm:$0xf]
  %v461 = vld [vmem:[%s5 + $0x48] sm:$0xff]
  %v462 = vld [vmem:[%s5 + $0x50] sm:$0xf]
  %v463 = vld [vmem:[%s5 + $0x54] sm:$0xff]
  %v464 = vld [vmem:[%s5 + $0x5c] sm:$0xf]
  %v465 = vld [vmem:[%s5 + $0x60] sm:$0xff]
  %v466 = vld [vmem:[%s5 + $0x68] sm:$0xf]
  %v467 = vld [vmem:[%s5 + $0x6c] sm:$0xff]
  %v468 = vld [vmem:[%s5 + $0x74] sm:$0xf]
  %v469 = vld [vmem:[%s5 + $0x78] sm:$0xff]
  %v470 = vld [vmem:[%s5 + $0x80] sm:$0xf]
  %v471 = vld [vmem:[%s5 + $0x84] sm:$0xff]
  %v472 = vld [vmem:[%s5 + $0x8c] sm:$0xf]
  %v473 = vld [vmem:[%s5 + $0x90] sm:$0xff]
  %v474 = vld [vmem:[%s5 + $0x98] sm:$0xf]
  %v475 = vld [vmem:[%s5 + $0x9c] sm:$0xff]
  %v476 = vld [vmem:[%s5 + $0xa4] sm:$0xf]
  %v477 = vld [vmem:[%s5 + $0xa8] sm:$0xff]
  %v478 = vld [vmem:[%s5 + $0xb0] sm:$0xf]
  %v479 = vld [vmem:[%s5 + $0xb4] sm:$0xff]
  %v480 = vld [vmem:[%s5 + $0xbc] sm:$0xf]
  %v481 = vld [vmem:[%s6] sm:$0x1]
  %v482 = vld [vmem:[%s0] sm:$0xff]
  %v483 = vld [vmem:[%s0 + $0x8] sm:$0xff]
  %s484 = smul.u32 0, 8
  %v485 = vld [vmem:[#allocation3] sm:$0xff]
  %v486 = vld [vmem:[#allocation3 + $0x8] sm:$0xff]
  %s487 = smul.u32 0, 3
  %s488 = smul.addr %s487, 8
  %s489 = scalar_lea.vmem [#allocation2], %s488
  %v490 = vld [vmem:[%s489] sm:$0xff]
  %v491 = vld [vmem:[%s489 + $0x8] sm:$0xff]
  %v492 = vld [vmem:[%s489 + $0x10] sm:$0xff]
  %v493 = vld [vmem:[%s489 + $0x18] sm:$0xff]
  %v494 = vld [vmem:[%s489 + $0x20] sm:$0xff]
  %v495 = vld [vmem:[%s489 + $0x28] sm:$0xff]
  %v496 = vpack.c.bf16 %v486, %v485
  %v529 = vunpack.c.l.b16 %v449
  %v530 = vunpack.c.h.b16 %v449
  %v531 = vunpack.c.l.b16 %v450
  %v532 = vunpack.c.l.b16 %v451
  %v533 = vunpack.c.h.b16 %v451
  %v534 = vunpack.c.l.b16 %v452
  %v535 = vunpack.c.l.b16 %v453
  %v536 = vunpack.c.h.b16 %v453
  %v537 = vunpack.c.l.b16 %v454
  %v538 = vunpack.c.l.b16 %v455
  %v539 = vunpack.c.h.b16 %v455
  %v540 = vunpack.c.l.b16 %v456
  %v541 = vunpack.c.l.b16 %v457
  %v542 = vunpack.c.h.b16 %v457
  %v543 = vunpack.c.l.b16 %v458
  %v544 = vunpack.c.l.b16 %v459
  %v545 = vunpack.c.h.b16 %v459
  %v546 = vunpack.c.l.b16 %v460
  %v547 = vunpack.c.l.b16 %v461
  %v548 = vunpack.c.h.b16 %v461
  %v549 = vunpack.c.l.b16 %v462
  %v550 = vunpack.c.l.b16 %v463
  %v551 = vunpack.c.h.b16 %v463
  %v552 = vunpack.c.l.b16 %v464
  %v553 = vunpack.c.l.b16 %v465
  %v554 = vunpack.c.h.b16 %v465
  %v555 = vunpack.c.l.b16 %v466
  %v556 = vunpack.c.l.b16 %v467
  %v557 = vunpack.c.h.b16 %v467
  %v558 = vunpack.c.l.b16 %v468
  %v559 = vunpack.c.l.b16 %v469
  %v560 = vunpack.c.h.b16 %v469
  %v561 = vunpack.c.l.b16 %v470
  %v562 = vunpack.c.l.b16 %v471
  %v563 = vunpack.c.h.b16 %v471
  %v564 = vunpack.c.l.b16 %v472
  %v565 = vunpack.c.l.b16 %v473
  %v566 = vunpack.c.h.b16 %v473
  %v567 = vunpack.c.l.b16 %v474
  %v568 = vunpack.c.l.b16 %v475
  %v569 = vunpack.c.h.b16 %v475
  %v570 = vunpack.c.l.b16 %v476
  %v571 = vunpack.c.l.b16 %v477
  %v572 = vunpack.c.h.b16 %v477
  %v573 = vunpack.c.l.b16 %v478
  %v574 = vunpack.c.l.b16 %v479
  %v575 = vunpack.c.h.b16 %v479
  %v576 = vunpack.c.l.b16 %v480
  %v577 = vpack.c.b16 %v532, %v529
  %v578 = vpack.c.b16 %v533, %v530
  %v579 = vpack.c.b16 %v534, %v531
  %v580 = vpack.c.b16 %v538, %v535
  %v581 = vpack.c.b16 %v539, %v536
  %v582 = vpack.c.b16 %v540, %v537
  %v583 = vpack.c.b16 %v544, %v541
  %v584 = vpack.c.b16 %v545, %v542
  %v585 = vpack.c.b16 %v546, %v543
  %v586 = vpack.c.b16 %v550, %v547
  %v587 = vpack.c.b16 %v551, %v548
  %v588 = vpack.c.b16 %v552, %v549
  %v589 = vpack.c.b16 %v556, %v553
  %v590 = vpack.c.b16 %v557, %v554
  %v591 = vpack.c.b16 %v558, %v555
  %v592 = vpack.c.b16 %v562, %v559
  %v593 = vpack.c.b16 %v563, %v560
  %v594 = vpack.c.b16 %v564, %v561
  %v595 = vpack.c.b16 %v568, %v565
  %v596 = vpack.c.b16 %v569, %v566
  %v597 = vpack.c.b16 %v570, %v567
  %v598 = vpack.c.b16 %v574, %v571
  %v599 = vpack.c.b16 %v575, %v572
  %v600 = vpack.c.b16 %v576, %v573
  %625 = vmatprep.subr.bf16.mxu0 %v578
  %626 = vmatpush1.bf16.msra.mxu0 %v577
  %627 = vmatprep.subr.bf16.mxu0 %v581
  %628 = vmatpush1.bf16.msra.mxu0 %v580
  %629 = vmatprep.subr.bf16.mxu0 %v584
  %630 = vmatpush1.bf16.msra.mxu0 %v583
  %631 = vmatprep.subr.bf16.mxu0 %v587
  %632 = vmatpush1.bf16.msra.mxu0 %v586
  %633 = vmatprep.subr.bf16.mxu0 %v590
  %634 = vmatpush1.bf16.msra.mxu0 %v589
  %635 = vmatprep.subr.bf16.mxu0 %v593
  %636 = vmatpush1.bf16.msra.mxu0 %v592
  %637 = vmatprep.subr.bf16.mxu0 %v596
  %638 = vmatpush1.bf16.msra.mxu0 %v595
  %639 = vmatprep.subr.bf16.mxu0 %v599
  %640 = vmatpush1.bf16.msra.mxu0 %v598
  %641 = vmatprep.subr.bf16.mxu0 0
  %642 = vmatpush1.bf16.msra.mxu0 0
  %643 = vmatprep.subr.bf16.mxu0 0
  %644 = vmatpush1.bf16.msra.mxu0 0
  %645 = vmatprep.subr.bf16.mxu0 0
  %646 = vmatpush1.bf16.msra.mxu0 0
  %647 = vmatprep.subr.bf16.mxu0 0
  %648 = vmatpush1.bf16.msra.mxu0 0
  %649 = vmatprep.subr.bf16.mxu0 0
  %650 = vmatpush1.bf16.msra.mxu0 0
  %651 = vmatprep.subr.bf16.mxu0 0
  %652 = vmatpush1.bf16.msra.mxu0 0
  %653 = vmatprep.subr.bf16.mxu0 0
  %654 = vmatpush1.bf16.msra.mxu0 0
  %655 = vmatprep.subr.bf16.mxu0 0
  %656 = vmatpush1.bf16.msra.mxu0 0
  %657 = vmatprep.mubr.bf16.mxu0 0
  %658 = vmatmul.mubr.bf16.gmra.mrb[0].mxu0 %v496
  %v659 = vpop.f32.mrb[0].mxu0
  %v660 = vadd.f32 0.0, %v659
  %v661 = vpop.f32.mrb[0].mxu0
  %v662 = vadd.f32 0.0, %v661
  %v663 = vpop.f32.mrb[0].mxu0
  %v664 = vadd.f32 0.0, %v663
  %v665 = vpop.f32.mrb[0].mxu0
  %v666 = vadd.f32 0.0, %v665
  %667 = vdwg.mxu0
  %668 = vmatprep.subr.bf16.mxu0 0
  %669 = vmatpush1.bf16.msra.mxu0 %v579
  %670 = vmatprep.subr.bf16.mxu0 0
  %671 = vmatpush1.bf16.msra.mxu0 %v582
  %672 = vmatprep.subr.bf16.mxu0 0
  %673 = vmatpush1.bf16.msra.mxu0 %v585
  %674 = vmatprep.subr.bf16.mxu0 0
  %675 = vmatpush1.bf16.msra.mxu0 %v588
  %676 = vmatprep.subr.bf16.mxu0 0
  %677 = vmatpush1.bf16.msra.mxu0 %v591
  %678 = vmatprep.subr.bf16.mxu0 0
  %679 = vmatpush1.bf16.msra.mxu0 %v594
  %680 = vmatprep.subr.bf16.mxu0 0
  %681 = vmatpush1.bf16.msra.mxu0 %v597
  %682 = vmatprep.subr.bf16.mxu0 0
  %683 = vmatpush1.bf16.msra.mxu0 %v600
  %684 = vmatprep.subr.bf16.mxu0 0
  %685 = vmatpush1.bf16.msra.mxu0 0
  %686 = vmatprep.subr.bf16.mxu0 0
  %687 = vmatpush1.bf16.msra.mxu0 0
  %688 = vmatprep.subr.bf16.mxu0 0
  %689 = vmatpush1.bf16.msra.mxu0 0
  %690 = vmatprep.subr.bf16.mxu0 0
  %691 = vmatpush1.bf16.msra.mxu0 0
  %692 = vmatprep.subr.bf16.mxu0 0
  %693 = vmatpush1.bf16.msra.mxu0 0
  %694 = vmatprep.subr.bf16.mxu0 0
  %695 = vmatpush1.bf16.msra.mxu0 0
  %696 = vmatprep.subr.bf16.mxu0 0
  %697 = vmatpush1.bf16.msra.mxu0 0
  %698 = vmatprep.subr.bf16.mxu0 0
  %699 = vmatpush1.bf16.msra.mxu0 0
  %700 = vmatprep.mubr.bf16.mxu0 0
  %701 = vmatmul.mubr.bf16.gmra.mrb[0].mxu0 %v496
  %v702 = vpop.f32.mrb[0].mxu0
  %v703 = vadd.f32 0.0, %v702
  %v704 = vpop.f32.mrb[0].mxu0
  %v705 = vpop.f32.mrb[0].mxu0
  %v706 = vadd.f32 0.0, %v705
  %v707 = vpop.f32.mrb[0].mxu0
  %708 = vdwg.mxu0
  %v709 = vadd.f32 %v490, %v660
  %v710 = vadd.f32 %v493, %v664
  %v711 = vxor.u32 %v709, 2147483648
  %v712 = vxor.u32 %v710, 2147483648
  %v713 = vmul.f32 %v711, 1.442695
  %v714 = vpow.pop %v713
  %v715 = vmul.f32 %v712, 1.442695
  %v716 = vpow.pop %v715
  %v717 = vadd.f32 %v714, 1.0
  %v718 = vadd.f32 %v716, 1.0
  %v719 = vrcp.pop %v717
  %v720 = vmul.f32 1.0, %v719
  %v721 = vrcp.pop %v718
  %v722 = vmul.f32 1.0, %v721
  %v723 = vadd.f32 %v491, %v662
  %v724 = vadd.f32 %v494, %v666
  %v725 = vxor.u32 %v723, 2147483648
  %v726 = vxor.u32 %v724, 2147483648
  %v727 = vmul.f32 %v725, 1.442695
  %v728 = vpow.pop %v727
  %v729 = vmul.f32 %v726, 1.442695
  %v730 = vpow.pop %v729
  %v731 = vadd.f32 %v728, 1.0
  %v732 = vadd.f32 %v730, 1.0
  %v733 = vrcp.pop %v731
  %v734 = vmul.f32 1.0, %v733
  %v735 = vrcp.pop %v732
  %v736 = vmul.f32 1.0, %v735
  %v738 = vlaneseq
  %v739 = vshrl.u32 %v738, 7
  %v740 = vsub.s32 0, %v739
  %v741 = vrot.slane %v481, %v740
  %v743 = vadd.f32 %v703, %v741
  %v744 = vadd.f32 %v706, %v741
  %v745 = vmul.f32 %v720, %v743
  %v746 = vmul.f32 %v722, %v744
  %v747 = vadd.f32 %v492, %v745
  %v748 = vadd.f32 %v495, %v746
  %v749 = vtanh.pop %v747
  %v750 = vtanh.pop %v748
  %v751 = vsub.f32 %v485, %v749
  %v752 = vsub.f32 %v486, %v750
  %v753 = vmul.f32 %v734, %v751
  %v754 = vmul.f32 %v736, %v752
  %v755 = vadd.f32 %v749, %v753
  %v756 = vadd.f32 %v750, %v754
  %v757 = vstv %s484
  %vm758 = vcmp.lt.s32.totalorder %v757, %v482
  %vm759 = vcmp.lt.s32.totalorder %v757, %v483
  %v760 = vsel %vm758, 1, 0
  %v761 = vsel %vm759, 1, 0
  %762 = vset.pattern.permute.xlu0 0
  %763 = vperm.xlu0 %762, %v760
  %v764 = vpop.permute.xlu0 %763
  %765 = vset.pattern.permute.xlu0 0
  %766 = vperm.xlu0 %765, %v761
  %v767 = vpop.permute.xlu0 %766
  %vm768 = vcmp.eq.s32.totalorder %v764, 1
  %vm769 = vcmp.eq.s32.totalorder %v767, 1
  %v770 = vsel %vm768, %v755, %v485
  %v771 = vsel %vm769, %v756, %v486
  %v772 = vsel %vm768, %v755, 0.0
  %v773 = vsel %vm769, %v756, 0.0
  %v774 = vpack.c.bf16 %v773, %v772
  %v776 = vunpack.c.l.b16 %v774
  %v777 = vunpack.c.h.b16 %v774
  %v778 = vpack.c.b16 %v776, %v776
  %v779 = vpack.c.b16 %v777, %v777
  %782 = vst [vmem:[%s61] sm:$0xf] %v778
  %783 = vst [vmem:[%s61 + $0x4] sm:$0xf] %v779
  %s784 = smul.u32 2, 3
  %s785 = smul.addr %s784, 8
  %s786 = scalar_lea.vmem [#allocation2], %s785
  %v787 = vld [vmem:[%s786] sm:$0xff]
  %v788 = vld [vmem:[%s786 + $0x8] sm:$0xff]
  %v789 = vld [vmem:[%s786 + $0x10] sm:$0xff]
  %v790 = vld [vmem:[%s786 + $0x18] sm:$0xff]
  %v791 = vld [vmem:[%s786 + $0x20] sm:$0xff]
  %v792 = vld [vmem:[%s786 + $0x28] sm:$0xff]
  %v793 = vpack.c.bf16 %v771, %v770
  %794 = vmatprep.subr.bf16.mxu0 %v578
  %795 = vmatpush1.bf16.msra.mxu0 %v577
  %796 = vmatprep.subr.bf16.mxu0 %v581
  %797 = vmatpush1.bf16.msra.mxu0 %v580
  %798 = vmatprep.subr.bf16.mxu0 %v584
  %799 = vmatpush1.bf16.msra.mxu0 %v583
  %800 = vmatprep.subr.bf16.mxu0 %v587
  %801 = vmatpush1.bf16.msra.mxu0 %v586
  %802 = vmatprep.subr.bf16.mxu0 %v590
  %803 = vmatpush1.bf16.msra.mxu0 %v589
  %804 = vmatprep.subr.bf16.mxu0 %v593
  %805 = vmatpush1.bf16.msra.mxu0 %v592
  %806 = vmatprep.subr.bf16.mxu0 %v596
  %807 = vmatpush1.bf16.msra.mxu0 %v595
  %808 = vmatprep.subr.bf16.mxu0 %v599
  %809 = vmatpush1.bf16.msra.mxu0 %v598
  %810 = vmatprep.subr.bf16.mxu0 0
  %811 = vmatpush1.bf16.msra.mxu0 0
  %812 = vmatprep.subr.bf16.mxu0 0
  %813 = vmatpush1.bf16.msra.mxu0 0
  %814 = vmatprep.subr.bf16.mxu0 0
  %815 = vmatpush1.bf16.msra.mxu0 0
  %816 = vmatprep.subr.bf16.mxu0 0
  %817 = vmatpush1.bf16.msra.mxu0 0
  %818 = vmatprep.subr.bf16.mxu0 0
  %819 = vmatpush1.bf16.msra.mxu0 0
  %820 = vmatprep.subr.bf16.mxu0 0
  %821 = vmatpush1.bf16.msra.mxu0 0
  %822 = vmatprep.subr.bf16.mxu0 0
  %823 = vmatpush1.bf16.msra.mxu0 0
  %824 = vmatprep.subr.bf16.mxu0 0
  %825 = vmatpush1.bf16.msra.mxu0 0
  %826 = vmatprep.mubr.bf16.mxu0 0
  %827 = vmatmul.mubr.bf16.gmra.mrb[0].mxu0 %v793
  %v828 = vpop.f32.mrb[0].mxu0
  %v829 = vadd.f32 0.0, %v828
  %v830 = vpop.f32.mrb[0].mxu0
  %v831 = vadd.f32 0.0, %v830
  %v832 = vpop.f32.mrb[0].mxu0
  %v833 = vadd.f32 0.0, %v832
  %v834 = vpop.f32.mrb[0].mxu0
  %v835 = vadd.f32 0.0, %v834
  %836 = vdwg.mxu0
  %837 = vmatprep.subr.bf16.mxu0 0
  %838 = vmatpush1.bf16.msra.mxu0 %v579
  %839 = vmatprep.subr.bf16.mxu0 0
  %840 = vmatpush1.bf16.msra.mxu0 %v582
  %841 = vmatprep.subr.bf16.mxu0 0
  %842 = vmatpush1.bf16.msra.mxu0 %v585
  %843 = vmatprep.subr.bf16.mxu0 0
  %844 = vmatpush1.bf16.msra.mxu0 %v588
  %845 = vmatprep.subr.bf16.mxu0 0
  %846 = vmatpush1.bf16.msra.mxu0 %v591
  %847 = vmatprep.subr.bf16.mxu0 0
  %848 = vmatpush1.bf16.msra.mxu0 %v594
  %849 = vmatprep.subr.bf16.mxu0 0
  %850 = vmatpush1.bf16.msra.mxu0 %v597
  %851 = vmatprep.subr.bf16.mxu0 0
  %852 = vmatpush1.bf16.msra.mxu0 %v600
  %853 = vmatprep.subr.bf16.mxu0 0
  %854 = vmatpush1.bf16.msra.mxu0 0
  %855 = vmatprep.subr.bf16.mxu0 0
  %856 = vmatpush1.bf16.msra.mxu0 0
  %857 = vmatprep.subr.bf16.mxu0 0
  %858 = vmatpush1.bf16.msra.mxu0 0
  %859 = vmatprep.subr.bf16.mxu0 0
  %860 = vmatpush1.bf16.msra.mxu0 0
  %861 = vmatprep.subr.bf16.mxu0 0
  %862 = vmatpush1.bf16.msra.mxu0 0
  %863 = vmatprep.subr.bf16.mxu0 0
  %864 = vmatpush1.bf16.msra.mxu0 0
  %865 = vmatprep.subr.bf16.mxu0 0
  %866 = vmatpush1.bf16.msra.mxu0 0
  %867 = vmatprep.subr.bf16.mxu0 0
  %868 = vmatpush1.bf16.msra.mxu0 0
  %869 = vmatprep.mubr.bf16.mxu0 0
  %870 = vmatmul.mubr.bf16.gmra.mrb[0].mxu0 %v793
  %v871 = vpop.f32.mrb[0].mxu0
  %v872 = vadd.f32 0.0, %v871
  %v873 = vpop.f32.mrb[0].mxu0
  %v874 = vpop.f32.mrb[0].mxu0
  %v875 = vadd.f32 0.0, %v874
  %v876 = vpop.f32.mrb[0].mxu0
  %877 = vdwg.mxu0
  %v878 = vadd.f32 %v787, %v829
  %v879 = vadd.f32 %v790, %v833
  %v880 = vxor.u32 %v878, 2147483648
  %v881 = vxor.u32 %v879, 2147483648
  %v882 = vmul.f32 %v880, 1.442695
  %v883 = vpow.pop %v882
  %v884 = vmul.f32 %v881, 1.442695
  %v885 = vpow.pop %v884
  %v886 = vadd.f32 %v883, 1.0
  %v887 = vadd.f32 %v885, 1.0
  %v888 = vrcp.pop %v886
  %v889 = vmul.f32 1.0, %v888
  %v890 = vrcp.pop %v887
  %v891 = vmul.f32 1.0, %v890
  %v892 = vadd.f32 %v788, %v831
  %v893 = vadd.f32 %v791, %v835
  %v894 = vxor.u32 %v892, 2147483648
  %v895 = vxor.u32 %v893, 2147483648
  %v896 = vmul.f32 %v894, 1.442695
  %v897 = vpow.pop %v896
  %v898 = vmul.f32 %v895, 1.442695
  %v899 = vpow.pop %v898
  %v900 = vadd.f32 %v897, 1.0
  %v901 = vadd.f32 %v899, 1.0
  %v902 = vrcp.pop %v900
  %v903 = vmul.f32 1.0, %v902
  %v904 = vrcp.pop %v901
  %v905 = vmul.f32 1.0, %v904
  %v906 = vadd.f32 %v872, %v741
  %v907 = vadd.f32 %v875, %v741
  %v908 = vmul.f32 %v889, %v906
  %v909 = vmul.f32 %v891, %v907
  %v910 = vadd.f32 %v789, %v908
  %v911 = vadd.f32 %v792, %v909
  %v912 = vtanh.pop %v910
  %v913 = vtanh.pop %v911
  %v914 = vsub.f32 %v770, %v912
  %v915 = vsub.f32 %v771, %v913
  %v916 = vmul.f32 %v903, %v914
  %v917 = vmul.f32 %v905, %v915
  %v918 = vadd.f32 %v912, %v916
  %v919 = vadd.f32 %v913, %v917
  %s920 = sadd.s32 %s484, 1
  %v921 = vstv %s920
  %vm922 = vcmp.lt.s32.totalorder %v921, %v482
  %vm923 = vcmp.lt.s32.totalorder %v921, %v483
  %v924 = vsel %vm922, 1, 0
  %v925 = vsel %vm923, 1, 0
  %926 = vset.pattern.permute.xlu0 0
  %927 = vperm.xlu0 %926, %v924
  %v928 = vpop.permute.xlu0 %927
  %929 = vset.pattern.permute.xlu0 0
  %930 = vperm.xlu0 %929, %v925
  %v931 = vpop.permute.xlu0 %930
  %vm932 = vcmp.eq.s32.totalorder %v928, 1
  %vm933 = vcmp.eq.s32.totalorder %v931, 1
  %v934 = vsel %vm932, %v918, %v770
  %v935 = vsel %vm933, %v919, %v771
  %v936 = vsel %vm932, %v918, 0.0
  %v937 = vsel %vm933, %v919, 0.0
  %v938 = vpack.c.bf16 %v937, %v936
  %v940 = vunpack.c.l.b16 %v938
  %v941 = vunpack.c.h.b16 %v938
  %v942 = vpack.c.b16 %v940, %v940
  %v943 = vpack.c.b16 %v941, %v941
  %s946 = scalar_lea.vmem %s61, 8
  %947 = vst [vmem:[%s946] sm:$0xf] %v942
  %948 = vst [vmem:[%s946 + $0x4] sm:$0xf] %v943
  %s949 = smul.u32 4, 3
  %s950 = smul.addr %s949, 8
  %s951 = scalar_lea.vmem [#allocation2], %s950
  %v952 = vld [vmem:[%s951] sm:$0xff]
  %v953 = vld [vmem:[%s951 + $0x8] sm:$0xff]
  %v954 = vld [vmem:[%s951 + $0x10] sm:$0xff]
  %v955 = vld [vmem:[%s951 + $0x18] sm:$0xff]
  %v956 = vld [vmem:[%s951 + $0x20] sm:$0xff]
  %v957 = vld [vmem:[%s951 + $0x28] sm:$0xff]
  %v958 = vpack.c.bf16 %v935, %v934
  %959 = vmatprep.subr.bf16.mxu0 %v578
  %960 = vmatpush1.bf16.msra.mxu0 %v577
  %961 = vmatprep.subr.bf16.mxu0 %v581
  %962 = vmatpush1.bf16.msra.mxu0 %v580
  %963 = vmatprep.subr.bf16.mxu0 %v584
  %964 = vmatpush1.bf16.msra.mxu0 %v583
  %965 = vmatprep.subr.bf16.mxu0 %v587
  %966 = vmatpush1.bf16.msra.mxu0 %v586
  %967 = vmatprep.subr.bf16.mxu0 %v590
  %968 = vmatpush1.bf16.msra.mxu0 %v589
  %969 = vmatprep.subr.bf16.mxu0 %v593
  %970 = vmatpush1.bf16.msra.mxu0 %v592
  %971 = vmatprep.subr.bf16.mxu0 %v596
  %972 = vmatpush1.bf16.msra.mxu0 %v595
  %973 = vmatprep.subr.bf16.mxu0 %v599
  %974 = vmatpush1.bf16.msra.mxu0 %v598
  %975 = vmatprep.subr.bf16.mxu0 0
  %976 = vmatpush1.bf16.msra.mxu0 0
  %977 = vmatprep.subr.bf16.mxu0 0
  %978 = vmatpush1.bf16.msra.mxu0 0
  %979 = vmatprep.subr.bf16.mxu0 0
  %980 = vmatpush1.bf16.msra.mxu0 0
  %981 = vmatprep.subr.bf16.mxu0 0
  %982 = vmatpush1.bf16.msra.mxu0 0
  %983 = vmatprep.subr.bf16.mxu0 0
  %984 = vmatpush1.bf16.msra.mxu0 0
  %985 = vmatprep.subr.bf16.mxu0 0
  %986 = vmatpush1.bf16.msra.mxu0 0
  %987 = vmatprep.subr.bf16.mxu0 0
  %988 = vmatpush1.bf16.msra.mxu0 0
  %989 = vmatprep.subr.bf16.mxu0 0
  %990 = vmatpush1.bf16.msra.mxu0 0
  %991 = vmatprep.mubr.bf16.mxu0 0
  %992 = vmatmul.mubr.bf16.gmra.mrb[0].mxu0 %v958
  %v993 = vpop.f32.mrb[0].mxu0
  %v994 = vadd.f32 0.0, %v993
  %v995 = vpop.f32.mrb[0].mxu0
  %v996 = vadd.f32 0.0, %v995
  %v997 = vpop.f32.mrb[0].mxu0
  %v998 = vadd.f32 0.0, %v997
  %v999 = vpop.f32.mrb[0].mxu0
  %v1000 = vadd.f32 0.0, %v999
  %1001 = vdwg.mxu0
  %1002 = vmatprep.subr.bf16.mxu0 0
  %1003 = vmatpush1.bf16.msra.mxu0 %v579
  %1004 = vmatprep.subr.bf16.mxu0 0
  %1005 = vmatpush1.bf16.msra.mxu0 %v582
  %1006 = vmatprep.subr.bf16.mxu0 0
  %1007 = vmatpush1.bf16.msra.mxu0 %v585
  %1008 = vmatprep.subr.bf16.mxu0 0
  %1009 = vmatpush1.bf16.msra.mxu0 %v588
  %1010 = vmatprep.subr.bf16.mxu0 0
  %1011 = vmatpush1.bf16.msra.mxu0 %v591
  %1012 = vmatprep.subr.bf16.mxu0 0
  %1013 = vmatpush1.bf16.msra.mxu0 %v594
  %1014 = vmatprep.subr.bf16.mxu0 0
  %1015 = vmatpush1.bf16.msra.mxu0 %v597
  %1016 = vmatprep.subr.bf16.mxu0 0
  %1017 = vmatpush1.bf16.msra.mxu0 %v600
  %1018 = vmatprep.subr.bf16.mxu0 0
  %1019 = vmatpush1.bf16.msra.mxu0 0
  %1020 = vmatprep.subr.bf16.mxu0 0
  %1021 = vmatpush1.bf16.msra.mxu0 0
  %1022 = vmatprep.subr.bf16.mxu0 0
  %1023 = vmatpush1.bf16.msra.mxu0 0
  %1024 = vmatprep.subr.bf16.mxu0 0
  %1025 = vmatpush1.bf16.msra.mxu0 0
  %1026 = vmatprep.subr.bf16.mxu0 0
  %1027 = vmatpush1.bf16.msra.mxu0 0
  %1028 = vmatprep.subr.bf16.mxu0 0
  %1029 = vmatpush1.bf16.msra.mxu0 0
  %1030 = vmatprep.subr.bf16.mxu0 0
  %1031 = vmatpush1.bf16.msra.mxu0 0
  %1032 = vmatprep.subr.bf16.mxu0 0
  %1033 = vmatpush1.bf16.msra.mxu0 0
  %1034 = vmatprep.mubr.bf16.mxu0 0
  %1035 = vmatmul.mubr.bf16.gmra.mrb[0].mxu0 %v958
  %v1036 = vpop.f32.mrb[0].mxu0
  %v1037 = vadd.f32 0.0, %v1036
  %v1038 = vpop.f32.mrb[0].mxu0
  %v1039 = vpop.f32.mrb[0].mxu0
  %v1040 = vadd.f32 0.0, %v1039
  %v1041 = vpop.f32.mrb[0].mxu0
  %1042 = vdwg.mxu0
  %v1043 = vadd.f32 %v952, %v994
  %v1044 = vadd.f32 %v955, %v998
  %v1045 = vxor.u32 %v1043, 2147483648
  %v1046 = vxor.u32 %v1044, 2147483648
  %v1047 = vmul.f32 %v1045, 1.442695
  %v1048 = vpow.pop %v1047
  %v1049 = vmul.f32 %v1046, 1.442695
  %v1050 = vpow.pop %v1049
  %v1051 = vadd.f32 %v1048, 1.0
  %v1052 = vadd.f32 %v1050, 1.0
  %v1053 = vrcp.pop %v1051
  %v1054 = vmul.f32 1.0, %v1053
  %v1055 = vrcp.pop %v1052
  %v1056 = vmul.f32 1.0, %v1055
  %v1057 = vadd.f32 %v953, %v996
  %v1058 = vadd.f32 %v956, %v1000
  %v1059 = vxor.u32 %v1057, 2147483648
  %v1060 = vxor.u32 %v1058, 2147483648
  %v1061 = vmul.f32 %v1059, 1.442695
  %v1062 = vpow.pop %v1061
  %v1063 = vmul.f32 %v1060, 1.442695
  %v1064 = vpow.pop %v1063
  %v1065 = vadd.f32 %v1062, 1.0
  %v1066 = vadd.f32 %v1064, 1.0
  %v1067 = vrcp.pop %v1065
  %v1068 = vmul.f32 1.0, %v1067
  %v1069 = vrcp.pop %v1066
  %v1070 = vmul.f32 1.0, %v1069
  %v1071 = vadd.f32 %v1037, %v741
  %v1072 = vadd.f32 %v1040, %v741
  %v1073 = vmul.f32 %v1054, %v1071
  %v1074 = vmul.f32 %v1056, %v1072
  %v1075 = vadd.f32 %v954, %v1073
  %v1076 = vadd.f32 %v957, %v1074
  %v1077 = vtanh.pop %v1075
  %v1078 = vtanh.pop %v1076
  %v1079 = vsub.f32 %v934, %v1077
  %v1080 = vsub.f32 %v935, %v1078
  %v1081 = vmul.f32 %v1068, %v1079
  %v1082 = vmul.f32 %v1070, %v1080
  %v1083 = vadd.f32 %v1077, %v1081
  %v1084 = vadd.f32 %v1078, %v1082
  %s1085 = sadd.s32 %s484, 2
  %v1086 = vstv %s1085
  %vm1087 = vcmp.lt.s32.totalorder %v1086, %v482
  %vm1088 = vcmp.lt.s32.totalorder %v1086, %v483
  %v1089 = vsel %vm1087, 1, 0
  %v1090 = vsel %vm1088, 1, 0
  %1091 = vset.pattern.permute.xlu0 0
  %1092 = vperm.xlu0 %1091, %v1089
  %v1093 = vpop.permute.xlu0 %1092
  %1094 = vset.pattern.permute.xlu0 0
  %1095 = vperm.xlu0 %1094, %v1090
  %v1096 = vpop.permute.xlu0 %1095
  %vm1097 = vcmp.eq.s32.totalorder %v1093, 1
  %vm1098 = vcmp.eq.s32.totalorder %v1096, 1
  %v1099 = vsel %vm1097, %v1083, %v934
  %v1100 = vsel %vm1098, %v1084, %v935
  %v1101 = vsel %vm1097, %v1083, 0.0
  %v1102 = vsel %vm1098, %v1084, 0.0
  %v1103 = vpack.c.bf16 %v1102, %v1101
  %v1105 = vunpack.c.l.b16 %v1103
  %v1106 = vunpack.c.h.b16 %v1103
  %v1107 = vpack.c.b16 %v1105, %v1105
  %v1108 = vpack.c.b16 %v1106, %v1106
  %s1111 = scalar_lea.vmem %s61, 16
  %1112 = vst [vmem:[%s1111] sm:$0xf] %v1107
  %1113 = vst [vmem:[%s1111 + $0x4] sm:$0xf] %v1108
  %s1114 = smul.u32 6, 3
  %s1115 = smul.addr %s1114, 8
  %s1116 = scalar_lea.vmem [#allocation2], %s1115
  %v1117 = vld [vmem:[%s1116] sm:$0xff]
  %v1118 = vld [vmem:[%s1116 + $0x8] sm:$0xff]
  %v1119 = vld [vmem:[%s1116 + $0x10] sm:$0xff]
  %v1120 = vld [vmem:[%s1116 + $0x18] sm:$0xff]
  %v1121 = vld [vmem:[%s1116 + $0x20] sm:$0xff]
  %v1122 = vld [vmem:[%s1116 + $0x28] sm:$0xff]
  %v1123 = vpack.c.bf16 %v1100, %v1099
  %1124 = vmatprep.subr.bf16.mxu0 %v578
  %1125 = vmatpush1.bf16.msra.mxu0 %v577
  %1126 = vmatprep.subr.bf16.mxu0 %v581
  %1127 = vmatpush1.bf16.msra.mxu0 %v580
  %1128 = vmatprep.subr.bf16.mxu0 %v584
  %1129 = vmatpush1.bf16.msra.mxu0 %v583
  %1130 = vmatprep.subr.bf16.mxu0 %v587
  %1131 = vmatpush1.bf16.msra.mxu0 %v586
  %1132 = vmatprep.subr.bf16.mxu0 %v590
  %1133 = vmatpush1.bf16.msra.mxu0 %v589
  %1134 = vmatprep.subr.bf16.mxu0 %v593
  %1135 = vmatpush1.bf16.msra.mxu0 %v592
  %1136 = vmatprep.subr.bf16.mxu0 %v596
  %1137 = vmatpush1.bf16.msra.mxu0 %v595
  %1138 = vmatprep.subr.bf16.mxu0 %v599
  %1139 = vmatpush1.bf16.msra.mxu0 %v598
  %1140 = vmatprep.subr.bf16.mxu0 0
  %1141 = vmatpush1.bf16.msra.mxu0 0
  %1142 = vmatprep.subr.bf16.mxu0 0
  %1143 = vmatpush1.bf16.msra.mxu0 0
  %1144 = vmatprep.subr.bf16.mxu0 0
  %1145 = vmatpush1.bf16.msra.mxu0 0
  %1146 = vmatprep.subr.bf16.mxu0 0
  %1147 = vmatpush1.bf16.msra.mxu0 0
  %1148 = vmatprep.subr.bf16.mxu0 0
  %1149 = vmatpush1.bf16.msra.mxu0 0
  %1150 = vmatprep.subr.bf16.mxu0 0
  %1151 = vmatpush1.bf16.msra.mxu0 0
  %1152 = vmatprep.subr.bf16.mxu0 0
  %1153 = vmatpush1.bf16.msra.mxu0 0
  %1154 = vmatprep.subr.bf16.mxu0 0
  %1155 = vmatpush1.bf16.msra.mxu0 0
  %1156 = vmatprep.mubr.bf16.mxu0 0
  %1157 = vmatmul.mubr.bf16.gmra.mrb[0].mxu0 %v1123
  %v1158 = vpop.f32.mrb[0].mxu0
  %v1159 = vadd.f32 0.0, %v1158
  %v1160 = vpop.f32.mrb[0].mxu0
  %v1161 = vadd.f32 0.0, %v1160
  %v1162 = vpop.f32.mrb[0].mxu0
  %v1163 = vadd.f32 0.0, %v1162
  %v1164 = vpop.f32.mrb[0].mxu0
  %v1165 = vadd.f32 0.0, %v1164
  %1166 = vdwg.mxu0
  %1167 = vmatprep.subr.bf16.mxu0 0
  %1168 = vmatpush1.bf16.msra.mxu0 %v579
  %1169 = vmatprep.subr.bf16.mxu0 0
  %1170 = vmatpush1.bf16.msra.mxu0 %v582
  %1171 = vmatprep.subr.bf16.mxu0 0
  %1172 = vmatpush1.bf16.msra.mxu0 %v585
  %1173 = vmatprep.subr.bf16.mxu0 0
  %1174 = vmatpush1.bf16.msra.mxu0 %v588
  %1175 = vmatprep.subr.bf16.mxu0 0
  %1176 = vmatpush1.bf16.msra.mxu0 %v591
  %1177 = vmatprep.subr.bf16.mxu0 0
  %1178 = vmatpush1.bf16.msra.mxu0 %v594
  %1179 = vmatprep.subr.bf16.mxu0 0
  %1180 = vmatpush1.bf16.msra.mxu0 %v597
  %1181 = vmatprep.subr.bf16.mxu0 0
  %1182 = vmatpush1.bf16.msra.mxu0 %v600
  %1183 = vmatprep.subr.bf16.mxu0 0
  %1184 = vmatpush1.bf16.msra.mxu0 0
  %1185 = vmatprep.subr.bf16.mxu0 0
  %1186 = vmatpush1.bf16.msra.mxu0 0
  %1187 = vmatprep.subr.bf16.mxu0 0
  %1188 = vmatpush1.bf16.msra.mxu0 0
  %1189 = vmatprep.subr.bf16.mxu0 0
  %1190 = vmatpush1.bf16.msra.mxu0 0
  %1191 = vmatprep.subr.bf16.mxu0 0
  %1192 = vmatpush1.bf16.msra.mxu0 0
  %1193 = vmatprep.subr.bf16.mxu0 0
  %1194 = vmatpush1.bf16.msra.mxu0 0
  %1195 = vmatprep.subr.bf16.mxu0 0
  %1196 = vmatpush1.bf16.msra.mxu0 0
  %1197 = vmatprep.subr.bf16.mxu0 0
  %1198 = vmatpush1.bf16.msra.mxu0 0
  %1199 = vmatprep.mubr.bf16.mxu0 0
  %1200 = vmatmul.mubr.bf16.gmra.mrb[0].mxu0 %v1123
  %v1201 = vpop.f32.mrb[0].mxu0
  %v1202 = vadd.f32 0.0, %v1201
  %v1203 = vpop.f32.mrb[0].mxu0
  %v1204 = vpop.f32.mrb[0].mxu0
  %v1205 = vadd.f32 0.0, %v1204
  %v1206 = vpop.f32.mrb[0].mxu0
  %1207 = vdwg.mxu0
  %v1208 = vadd.f32 %v1117, %v1159
  %v1209 = vadd.f32 %v1120, %v1163
  %v1210 = vxor.u32 %v1208, 2147483648
  %v1211 = vxor.u32 %v1209, 2147483648
  %v1212 = vmul.f32 %v1210, 1.442695
  %v1213 = vpow.pop %v1212
  %v1214 = vmul.f32 %v1211, 1.442695
  %v1215 = vpow.pop %v1214
  %v1216 = vadd.f32 %v1213, 1.0
  %v1217 = vadd.f32 %v1215, 1.0
  %v1218 = vrcp.pop %v1216
  %v1219 = vmul.f32 1.0, %v1218
  %v1220 = vrcp.pop %v1217
  %v1221 = vmul.f32 1.0, %v1220
  %v1222 = vadd.f32 %v1118, %v1161
  %v1223 = vadd.f32 %v1121, %v1165
  %v1224 = vxor.u32 %v1222, 2147483648
  %v1225 = vxor.u32 %v1223, 2147483648
  %v1226 = vmul.f32 %v1224, 1.442695
  %v1227 = vpow.pop %v1226
  %v1228 = vmul.f32 %v1225, 1.442695
  %v1229 = vpow.pop %v1228
  %v1230 = vadd.f32 %v1227, 1.0
  %v1231 = vadd.f32 %v1229, 1.0
  %v1232 = vrcp.pop %v1230
  %v1233 = vmul.f32 1.0, %v1232
  %v1234 = vrcp.pop %v1231
  %v1235 = vmul.f32 1.0, %v1234
  %v1236 = vadd.f32 %v1202, %v741
  %v1237 = vadd.f32 %v1205, %v741
  %v1238 = vmul.f32 %v1219, %v1236
  %v1239 = vmul.f32 %v1221, %v1237
  %v1240 = vadd.f32 %v1119, %v1238
  %v1241 = vadd.f32 %v1122, %v1239
  %v1242 = vtanh.pop %v1240
  %v1243 = vtanh.pop %v1241
  %v1244 = vsub.f32 %v1099, %v1242
  %v1245 = vsub.f32 %v1100, %v1243
  %v1246 = vmul.f32 %v1233, %v1244
  %v1247 = vmul.f32 %v1235, %v1245
  %v1248 = vadd.f32 %v1242, %v1246
  %v1249 = vadd.f32 %v1243, %v1247
  %s1250 = sadd.s32 %s484, 3
  %v1251 = vstv %s1250
  %vm1252 = vcmp.lt.s32.totalorder %v1251, %v482
  %vm1253 = vcmp.lt.s32.totalorder %v1251, %v483
  %v1254 = vsel %vm1252, 1, 0
  %v1255 = vsel %vm1253, 1, 0
  %1256 = vset.pattern.permute.xlu0 0
  %1257 = vperm.xlu0 %1256, %v1254
  %v1258 = vpop.permute.xlu0 %1257
  %1259 = vset.pattern.permute.xlu0 0
  %1260 = vperm.xlu0 %1259, %v1255
  %v1261 = vpop.permute.xlu0 %1260
  %vm1262 = vcmp.eq.s32.totalorder %v1258, 1
  %vm1263 = vcmp.eq.s32.totalorder %v1261, 1
  %v1264 = vsel %vm1262, %v1248, %v1099
  %v1265 = vsel %vm1263, %v1249, %v1100
  %v1266 = vsel %vm1262, %v1248, 0.0
  %v1267 = vsel %vm1263, %v1249, 0.0
  %v1268 = vpack.c.bf16 %v1267, %v1266
  %v1270 = vunpack.c.l.b16 %v1268
  %v1271 = vunpack.c.h.b16 %v1268
  %v1272 = vpack.c.b16 %v1270, %v1270
  %v1273 = vpack.c.b16 %v1271, %v1271
  %s1276 = scalar_lea.vmem %s61, 24
  %1277 = vst [vmem:[%s1276] sm:$0xf] %v1272
  %1278 = vst [vmem:[%s1276 + $0x4] sm:$0xf] %v1273
  %s1279 = smul.u32 8, 3
  %s1280 = smul.addr %s1279, 8
  %s1281 = scalar_lea.vmem [#allocation2], %s1280
  %v1282 = vld [vmem:[%s1281] sm:$0xff]
  %v1283 = vld [vmem:[%s1281 + $0x8] sm:$0xff]
  %v1284 = vld [vmem:[%s1281 + $0x10] sm:$0xff]
  %v1285 = vld [vmem:[%s1281 + $0x18] sm:$0xff]
  %v1286 = vld [vmem:[%s1281 + $0x20] sm:$0xff]
  %v1287 = vld [vmem:[%s1281 + $0x28] sm:$0xff]
  %v1288 = vpack.c.bf16 %v1265, %v1264
  %1289 = vmatprep.subr.bf16.mxu0 %v578
  %1290 = vmatpush1.bf16.msra.mxu0 %v577
  %1291 = vmatprep.subr.bf16.mxu0 %v581
  %1292 = vmatpush1.bf16.msra.mxu0 %v580
  %1293 = vmatprep.subr.bf16.mxu0 %v584
  %1294 = vmatpush1.bf16.msra.mxu0 %v583
  %1295 = vmatprep.subr.bf16.mxu0 %v587
  %1296 = vmatpush1.bf16.msra.mxu0 %v586
  %1297 = vmatprep.subr.bf16.mxu0 %v590
  %1298 = vmatpush1.bf16.msra.mxu0 %v589
  %1299 = vmatprep.subr.bf16.mxu0 %v593
  %1300 = vmatpush1.bf16.msra.mxu0 %v592
  %1301 = vmatprep.subr.bf16.mxu0 %v596
  %1302 = vmatpush1.bf16.msra.mxu0 %v595
  %1303 = vmatprep.subr.bf16.mxu0 %v599
  %1304 = vmatpush1.bf16.msra.mxu0 %v598
  %1305 = vmatprep.subr.bf16.mxu0 0
  %1306 = vmatpush1.bf16.msra.mxu0 0
  %1307 = vmatprep.subr.bf16.mxu0 0
  %1308 = vmatpush1.bf16.msra.mxu0 0
  %1309 = vmatprep.subr.bf16.mxu0 0
  %1310 = vmatpush1.bf16.msra.mxu0 0
  %1311 = vmatprep.subr.bf16.mxu0 0
  %1312 = vmatpush1.bf16.msra.mxu0 0
  %1313 = vmatprep.subr.bf16.mxu0 0
  %1314 = vmatpush1.bf16.msra.mxu0 0
  %1315 = vmatprep.subr.bf16.mxu0 0
  %1316 = vmatpush1.bf16.msra.mxu0 0
  %1317 = vmatprep.subr.bf16.mxu0 0
  %1318 = vmatpush1.bf16.msra.mxu0 0
  %1319 = vmatprep.subr.bf16.mxu0 0
  %1320 = vmatpush1.bf16.msra.mxu0 0
  %1321 = vmatprep.mubr.bf16.mxu0 0
  %1322 = vmatmul.mubr.bf16.gmra.mrb[0].mxu0 %v1288
  %v1323 = vpop.f32.mrb[0].mxu0
  %v1324 = vadd.f32 0.0, %v1323
  %v1325 = vpop.f32.mrb[0].mxu0
  %v1326 = vadd.f32 0.0, %v1325
  %v1327 = vpop.f32.mrb[0].mxu0
  %v1328 = vadd.f32 0.0, %v1327
  %v1329 = vpop.f32.mrb[0].mxu0
  %v1330 = vadd.f32 0.0, %v1329
  %1331 = vdwg.mxu0
  %1332 = vmatprep.subr.bf16.mxu0 0
  %1333 = vmatpush1.bf16.msra.mxu0 %v579
  %1334 = vmatprep.subr.bf16.mxu0 0
  %1335 = vmatpush1.bf16.msra.mxu0 %v582
  %1336 = vmatprep.subr.bf16.mxu0 0
  %1337 = vmatpush1.bf16.msra.mxu0 %v585
  %1338 = vmatprep.subr.bf16.mxu0 0
  %1339 = vmatpush1.bf16.msra.mxu0 %v588
  %1340 = vmatprep.subr.bf16.mxu0 0
  %1341 = vmatpush1.bf16.msra.mxu0 %v591
  %1342 = vmatprep.subr.bf16.mxu0 0
  %1343 = vmatpush1.bf16.msra.mxu0 %v594
  %1344 = vmatprep.subr.bf16.mxu0 0
  %1345 = vmatpush1.bf16.msra.mxu0 %v597
  %1346 = vmatprep.subr.bf16.mxu0 0
  %1347 = vmatpush1.bf16.msra.mxu0 %v600
  %1348 = vmatprep.subr.bf16.mxu0 0
  %1349 = vmatpush1.bf16.msra.mxu0 0
  %1350 = vmatprep.subr.bf16.mxu0 0
  %1351 = vmatpush1.bf16.msra.mxu0 0
  %1352 = vmatprep.subr.bf16.mxu0 0
  %1353 = vmatpush1.bf16.msra.mxu0 0
  %1354 = vmatprep.subr.bf16.mxu0 0
  %1355 = vmatpush1.bf16.msra.mxu0 0
  %1356 = vmatprep.subr.bf16.mxu0 0
  %1357 = vmatpush1.bf16.msra.mxu0 0
  %1358 = vmatprep.subr.bf16.mxu0 0
  %1359 = vmatpush1.bf16.msra.mxu0 0
  %1360 = vmatprep.subr.bf16.mxu0 0
  %1361 = vmatpush1.bf16.msra.mxu0 0
  %1362 = vmatprep.subr.bf16.mxu0 0
  %1363 = vmatpush1.bf16.msra.mxu0 0
  %1364 = vmatprep.mubr.bf16.mxu0 0
  %1365 = vmatmul.mubr.bf16.gmra.mrb[0].mxu0 %v1288
  %v1366 = vpop.f32.mrb[0].mxu0
  %v1367 = vadd.f32 0.0, %v1366
  %v1368 = vpop.f32.mrb[0].mxu0
  %v1369 = vpop.f32.mrb[0].mxu0
  %v1370 = vadd.f32 0.0, %v1369
  %v1371 = vpop.f32.mrb[0].mxu0
  %1372 = vdwg.mxu0
  %v1373 = vadd.f32 %v1282, %v1324
  %v1374 = vadd.f32 %v1285, %v1328
  %v1375 = vxor.u32 %v1373, 2147483648
  %v1376 = vxor.u32 %v1374, 2147483648
  %v1377 = vmul.f32 %v1375, 1.442695
  %v1378 = vpow.pop %v1377
  %v1379 = vmul.f32 %v1376, 1.442695
  %v1380 = vpow.pop %v1379
  %v1381 = vadd.f32 %v1378, 1.0
  %v1382 = vadd.f32 %v1380, 1.0
  %v1383 = vrcp.pop %v1381
  %v1384 = vmul.f32 1.0, %v1383
  %v1385 = vrcp.pop %v1382
  %v1386 = vmul.f32 1.0, %v1385
  %v1387 = vadd.f32 %v1283, %v1326
  %v1388 = vadd.f32 %v1286, %v1330
  %v1389 = vxor.u32 %v1387, 2147483648
  %v1390 = vxor.u32 %v1388, 2147483648
  %v1391 = vmul.f32 %v1389, 1.442695
  %v1392 = vpow.pop %v1391
  %v1393 = vmul.f32 %v1390, 1.442695
  %v1394 = vpow.pop %v1393
  %v1395 = vadd.f32 %v1392, 1.0
  %v1396 = vadd.f32 %v1394, 1.0
  %v1397 = vrcp.pop %v1395
  %v1398 = vmul.f32 1.0, %v1397
  %v1399 = vrcp.pop %v1396
  %v1400 = vmul.f32 1.0, %v1399
  %v1401 = vadd.f32 %v1367, %v741
  %v1402 = vadd.f32 %v1370, %v741
  %v1403 = vmul.f32 %v1384, %v1401
  %v1404 = vmul.f32 %v1386, %v1402
  %v1405 = vadd.f32 %v1284, %v1403
  %v1406 = vadd.f32 %v1287, %v1404
  %v1407 = vtanh.pop %v1405
  %v1408 = vtanh.pop %v1406
  %v1409 = vsub.f32 %v1264, %v1407
  %v1410 = vsub.f32 %v1265, %v1408
  %v1411 = vmul.f32 %v1398, %v1409
  %v1412 = vmul.f32 %v1400, %v1410
  %v1413 = vadd.f32 %v1407, %v1411
  %v1414 = vadd.f32 %v1408, %v1412
  %s1415 = sadd.s32 %s484, 4
  %v1416 = vstv %s1415
  %vm1417 = vcmp.lt.s32.totalorder %v1416, %v482
  %vm1418 = vcmp.lt.s32.totalorder %v1416, %v483
  %v1419 = vsel %vm1417, 1, 0
  %v1420 = vsel %vm1418, 1, 0
  %1421 = vset.pattern.permute.xlu0 0
  %1422 = vperm.xlu0 %1421, %v1419
  %v1423 = vpop.permute.xlu0 %1422
  %1424 = vset.pattern.permute.xlu0 0
  %1425 = vperm.xlu0 %1424, %v1420
  %v1426 = vpop.permute.xlu0 %1425
  %vm1427 = vcmp.eq.s32.totalorder %v1423, 1
  %vm1428 = vcmp.eq.s32.totalorder %v1426, 1
  %v1429 = vsel %vm1427, %v1413, %v1264
  %v1430 = vsel %vm1428, %v1414, %v1265
  %v1431 = vsel %vm1427, %v1413, 0.0
  %v1432 = vsel %vm1428, %v1414, 0.0
  %v1433 = vpack.c.bf16 %v1432, %v1431
  %v1435 = vunpack.c.l.b16 %v1433
  %v1436 = vunpack.c.h.b16 %v1433
  %v1437 = vpack.c.b16 %v1435, %v1435
  %v1438 = vpack.c.b16 %v1436, %v1436
  %s1441 = scalar_lea.vmem %s61, 32
  %1442 = vst [vmem:[%s1441] sm:$0xf] %v1437
  %1443 = vst [vmem:[%s1441 + $0x4] sm:$0xf] %v1438
  %s1444 = smul.u32 10, 3
  %s1445 = smul.addr %s1444, 8
  %s1446 = scalar_lea.vmem [#allocation2], %s1445
  %v1447 = vld [vmem:[%s1446] sm:$0xff]
  %v1448 = vld [vmem:[%s1446 + $0x8] sm:$0xff]
  %v1449 = vld [vmem:[%s1446 + $0x10] sm:$0xff]
  %v1450 = vld [vmem:[%s1446 + $0x18] sm:$0xff]
  %v1451 = vld [vmem:[%s1446 + $0x20] sm:$0xff]
  %v1452 = vld [vmem:[%s1446 + $0x28] sm:$0xff]
  %v1453 = vpack.c.bf16 %v1430, %v1429
  %1454 = vmatprep.subr.bf16.mxu0 %v578
  %1455 = vmatpush1.bf16.msra.mxu0 %v577
  %1456 = vmatprep.subr.bf16.mxu0 %v581
  %1457 = vmatpush1.bf16.msra.mxu0 %v580
  %1458 = vmatprep.subr.bf16.mxu0 %v584
  %1459 = vmatpush1.bf16.msra.mxu0 %v583
  %1460 = vmatprep.subr.bf16.mxu0 %v587
  %1461 = vmatpush1.bf16.msra.mxu0 %v586
  %1462 = vmatprep.subr.bf16.mxu0 %v590
  %1463 = vmatpush1.bf16.msra.mxu0 %v589
  %1464 = vmatprep.subr.bf16.mxu0 %v593
  %1465 = vmatpush1.bf16.msra.mxu0 %v592
  %1466 = vmatprep.subr.bf16.mxu0 %v596
  %1467 = vmatpush1.bf16.msra.mxu0 %v595
  %1468 = vmatprep.subr.bf16.mxu0 %v599
  %1469 = vmatpush1.bf16.msra.mxu0 %v598
  %1470 = vmatprep.subr.bf16.mxu0 0
  %1471 = vmatpush1.bf16.msra.mxu0 0
  %1472 = vmatprep.subr.bf16.mxu0 0
  %1473 = vmatpush1.bf16.msra.mxu0 0
  %1474 = vmatprep.subr.bf16.mxu0 0
  %1475 = vmatpush1.bf16.msra.mxu0 0
  %1476 = vmatprep.subr.bf16.mxu0 0
  %1477 = vmatpush1.bf16.msra.mxu0 0
  %1478 = vmatprep.subr.bf16.mxu0 0
  %1479 = vmatpush1.bf16.msra.mxu0 0
  %1480 = vmatprep.subr.bf16.mxu0 0
  %1481 = vmatpush1.bf16.msra.mxu0 0
  %1482 = vmatprep.subr.bf16.mxu0 0
  %1483 = vmatpush1.bf16.msra.mxu0 0
  %1484 = vmatprep.subr.bf16.mxu0 0
  %1485 = vmatpush1.bf16.msra.mxu0 0
  %1486 = vmatprep.mubr.bf16.mxu0 0
  %1487 = vmatmul.mubr.bf16.gmra.mrb[0].mxu0 %v1453
  %v1488 = vpop.f32.mrb[0].mxu0
  %v1489 = vadd.f32 0.0, %v1488
  %v1490 = vpop.f32.mrb[0].mxu0
  %v1491 = vadd.f32 0.0, %v1490
  %v1492 = vpop.f32.mrb[0].mxu0
  %v1493 = vadd.f32 0.0, %v1492
  %v1494 = vpop.f32.mrb[0].mxu0
  %v1495 = vadd.f32 0.0, %v1494
  %1496 = vdwg.mxu0
  %1497 = vmatprep.subr.bf16.mxu0 0
  %1498 = vmatpush1.bf16.msra.mxu0 %v579
  %1499 = vmatprep.subr.bf16.mxu0 0
  %1500 = vmatpush1.bf16.msra.mxu0 %v582
  %1501 = vmatprep.subr.bf16.mxu0 0
  %1502 = vmatpush1.bf16.msra.mxu0 %v585
  %1503 = vmatprep.subr.bf16.mxu0 0
  %1504 = vmatpush1.bf16.msra.mxu0 %v588
  %1505 = vmatprep.subr.bf16.mxu0 0
  %1506 = vmatpush1.bf16.msra.mxu0 %v591
  %1507 = vmatprep.subr.bf16.mxu0 0
  %1508 = vmatpush1.bf16.msra.mxu0 %v594
  %1509 = vmatprep.subr.bf16.mxu0 0
  %1510 = vmatpush1.bf16.msra.mxu0 %v597
  %1511 = vmatprep.subr.bf16.mxu0 0
  %1512 = vmatpush1.bf16.msra.mxu0 %v600
  %1513 = vmatprep.subr.bf16.mxu0 0
  %1514 = vmatpush1.bf16.msra.mxu0 0
  %1515 = vmatprep.subr.bf16.mxu0 0
  %1516 = vmatpush1.bf16.msra.mxu0 0
  %1517 = vmatprep.subr.bf16.mxu0 0
  %1518 = vmatpush1.bf16.msra.mxu0 0
  %1519 = vmatprep.subr.bf16.mxu0 0
  %1520 = vmatpush1.bf16.msra.mxu0 0
  %1521 = vmatprep.subr.bf16.mxu0 0
  %1522 = vmatpush1.bf16.msra.mxu0 0
  %1523 = vmatprep.subr.bf16.mxu0 0
  %1524 = vmatpush1.bf16.msra.mxu0 0
  %1525 = vmatprep.subr.bf16.mxu0 0
  %1526 = vmatpush1.bf16.msra.mxu0 0
  %1527 = vmatprep.subr.bf16.mxu0 0
  %1528 = vmatpush1.bf16.msra.mxu0 0
  %1529 = vmatprep.mubr.bf16.mxu0 0
  %1530 = vmatmul.mubr.bf16.gmra.mrb[0].mxu0 %v1453
  %v1531 = vpop.f32.mrb[0].mxu0
  %v1532 = vadd.f32 0.0, %v1531
  %v1533 = vpop.f32.mrb[0].mxu0
  %v1534 = vpop.f32.mrb[0].mxu0
  %v1535 = vadd.f32 0.0, %v1534
  %v1536 = vpop.f32.mrb[0].mxu0
  %1537 = vdwg.mxu0
  %v1538 = vadd.f32 %v1447, %v1489
  %v1539 = vadd.f32 %v1450, %v1493
  %v1540 = vxor.u32 %v1538, 2147483648
  %v1541 = vxor.u32 %v1539, 2147483648
  %v1542 = vmul.f32 %v1540, 1.442695
  %v1543 = vpow.pop %v1542
  %v1544 = vmul.f32 %v1541, 1.442695
  %v1545 = vpow.pop %v1544
  %v1546 = vadd.f32 %v1543, 1.0
  %v1547 = vadd.f32 %v1545, 1.0
  %v1548 = vrcp.pop %v1546
  %v1549 = vmul.f32 1.0, %v1548
  %v1550 = vrcp.pop %v1547
  %v1551 = vmul.f32 1.0, %v1550
  %v1552 = vadd.f32 %v1448, %v1491
  %v1553 = vadd.f32 %v1451, %v1495
  %v1554 = vxor.u32 %v1552, 2147483648
  %v1555 = vxor.u32 %v1553, 2147483648
  %v1556 = vmul.f32 %v1554, 1.442695
  %v1557 = vpow.pop %v1556
  %v1558 = vmul.f32 %v1555, 1.442695
  %v1559 = vpow.pop %v1558
  %v1560 = vadd.f32 %v1557, 1.0
  %v1561 = vadd.f32 %v1559, 1.0
  %v1562 = vrcp.pop %v1560
  %v1563 = vmul.f32 1.0, %v1562
  %v1564 = vrcp.pop %v1561
  %v1565 = vmul.f32 1.0, %v1564
  %v1566 = vadd.f32 %v1532, %v741
  %v1567 = vadd.f32 %v1535, %v741
  %v1568 = vmul.f32 %v1549, %v1566
  %v1569 = vmul.f32 %v1551, %v1567
  %v1570 = vadd.f32 %v1449, %v1568
  %v1571 = vadd.f32 %v1452, %v1569
  %v1572 = vtanh.pop %v1570
  %v1573 = vtanh.pop %v1571
  %v1574 = vsub.f32 %v1429, %v1572
  %v1575 = vsub.f32 %v1430, %v1573
  %v1576 = vmul.f32 %v1563, %v1574
  %v1577 = vmul.f32 %v1565, %v1575
  %v1578 = vadd.f32 %v1572, %v1576
  %v1579 = vadd.f32 %v1573, %v1577
  %s1580 = sadd.s32 %s484, 5
  %v1581 = vstv %s1580
  %vm1582 = vcmp.lt.s32.totalorder %v1581, %v482
  %vm1583 = vcmp.lt.s32.totalorder %v1581, %v483
  %v1584 = vsel %vm1582, 1, 0
  %v1585 = vsel %vm1583, 1, 0
  %1586 = vset.pattern.permute.xlu0 0
  %1587 = vperm.xlu0 %1586, %v1584
  %v1588 = vpop.permute.xlu0 %1587
  %1589 = vset.pattern.permute.xlu0 0
  %1590 = vperm.xlu0 %1589, %v1585
  %v1591 = vpop.permute.xlu0 %1590
  %vm1592 = vcmp.eq.s32.totalorder %v1588, 1
  %vm1593 = vcmp.eq.s32.totalorder %v1591, 1
  %v1594 = vsel %vm1592, %v1578, %v1429
  %v1595 = vsel %vm1593, %v1579, %v1430
  %v1596 = vsel %vm1592, %v1578, 0.0
  %v1597 = vsel %vm1593, %v1579, 0.0
  %v1598 = vpack.c.bf16 %v1597, %v1596
  %v1600 = vunpack.c.l.b16 %v1598
  %v1601 = vunpack.c.h.b16 %v1598
  %v1602 = vpack.c.b16 %v1600, %v1600
  %v1603 = vpack.c.b16 %v1601, %v1601
  %s1606 = scalar_lea.vmem %s61, 40
  %1607 = vst [vmem:[%s1606] sm:$0xf] %v1602
  %1608 = vst [vmem:[%s1606 + $0x4] sm:$0xf] %v1603
  %s1609 = smul.u32 12, 3
  %s1610 = smul.addr %s1609, 8
  %s1611 = scalar_lea.vmem [#allocation2], %s1610
  %v1612 = vld [vmem:[%s1611] sm:$0xff]
  %v1613 = vld [vmem:[%s1611 + $0x8] sm:$0xff]
  %v1614 = vld [vmem:[%s1611 + $0x10] sm:$0xff]
  %v1615 = vld [vmem:[%s1611 + $0x18] sm:$0xff]
  %v1616 = vld [vmem:[%s1611 + $0x20] sm:$0xff]
  %v1617 = vld [vmem:[%s1611 + $0x28] sm:$0xff]
  %v1618 = vpack.c.bf16 %v1595, %v1594
  %1619 = vmatprep.subr.bf16.mxu0 %v578
  %1620 = vmatpush1.bf16.msra.mxu0 %v577
  %1621 = vmatprep.subr.bf16.mxu0 %v581
  %1622 = vmatpush1.bf16.msra.mxu0 %v580
  %1623 = vmatprep.subr.bf16.mxu0 %v584
  %1624 = vmatpush1.bf16.msra.mxu0 %v583
  %1625 = vmatprep.subr.bf16.mxu0 %v587
  %1626 = vmatpush1.bf16.msra.mxu0 %v586
  %1627 = vmatprep.subr.bf16.mxu0 %v590
  %1628 = vmatpush1.bf16.msra.mxu0 %v589
  %1629 = vmatprep.subr.bf16.mxu0 %v593
  %1630 = vmatpush1.bf16.msra.mxu0 %v592
  %1631 = vmatprep.subr.bf16.mxu0 %v596
  %1632 = vmatpush1.bf16.msra.mxu0 %v595
  %1633 = vmatprep.subr.bf16.mxu0 %v599
  %1634 = vmatpush1.bf16.msra.mxu0 %v598
  %1635 = vmatprep.subr.bf16.mxu0 0
  %1636 = vmatpush1.bf16.msra.mxu0 0
  %1637 = vmatprep.subr.bf16.mxu0 0
  %1638 = vmatpush1.bf16.msra.mxu0 0
  %1639 = vmatprep.subr.bf16.mxu0 0
  %1640 = vmatpush1.bf16.msra.mxu0 0
  %1641 = vmatprep.subr.bf16.mxu0 0
  %1642 = vmatpush1.bf16.msra.mxu0 0
  %1643 = vmatprep.subr.bf16.mxu0 0
  %1644 = vmatpush1.bf16.msra.mxu0 0
  %1645 = vmatprep.subr.bf16.mxu0 0
  %1646 = vmatpush1.bf16.msra.mxu0 0
  %1647 = vmatprep.subr.bf16.mxu0 0
  %1648 = vmatpush1.bf16.msra.mxu0 0
  %1649 = vmatprep.subr.bf16.mxu0 0
  %1650 = vmatpush1.bf16.msra.mxu0 0
  %1651 = vmatprep.mubr.bf16.mxu0 0
  %1652 = vmatmul.mubr.bf16.gmra.mrb[0].mxu0 %v1618
  %v1653 = vpop.f32.mrb[0].mxu0
  %v1654 = vadd.f32 0.0, %v1653
  %v1655 = vpop.f32.mrb[0].mxu0
  %v1656 = vadd.f32 0.0, %v1655
  %v1657 = vpop.f32.mrb[0].mxu0
  %v1658 = vadd.f32 0.0, %v1657
  %v1659 = vpop.f32.mrb[0].mxu0
  %v1660 = vadd.f32 0.0, %v1659
  %1661 = vdwg.mxu0
  %1662 = vmatprep.subr.bf16.mxu0 0
  %1663 = vmatpush1.bf16.msra.mxu0 %v579
  %1664 = vmatprep.subr.bf16.mxu0 0
  %1665 = vmatpush1.bf16.msra.mxu0 %v582
  %1666 = vmatprep.subr.bf16.mxu0 0
  %1667 = vmatpush1.bf16.msra.mxu0 %v585
  %1668 = vmatprep.subr.bf16.mxu0 0
  %1669 = vmatpush1.bf16.msra.mxu0 %v588
  %1670 = vmatprep.subr.bf16.mxu0 0
  %1671 = vmatpush1.bf16.msra.mxu0 %v591
  %1672 = vmatprep.subr.bf16.mxu0 0
  %1673 = vmatpush1.bf16.msra.mxu0 %v594
  %1674 = vmatprep.subr.bf16.mxu0 0
  %1675 = vmatpush1.bf16.msra.mxu0 %v597
  %1676 = vmatprep.subr.bf16.mxu0 0
  %1677 = vmatpush1.bf16.msra.mxu0 %v600
  %1678 = vmatprep.subr.bf16.mxu0 0
  %1679 = vmatpush1.bf16.msra.mxu0 0
  %1680 = vmatprep.subr.bf16.mxu0 0
  %1681 = vmatpush1.bf16.msra.mxu0 0
  %1682 = vmatprep.subr.bf16.mxu0 0
  %1683 = vmatpush1.bf16.msra.mxu0 0
  %1684 = vmatprep.subr.bf16.mxu0 0
  %1685 = vmatpush1.bf16.msra.mxu0 0
  %1686 = vmatprep.subr.bf16.mxu0 0
  %1687 = vmatpush1.bf16.msra.mxu0 0
  %1688 = vmatprep.subr.bf16.mxu0 0
  %1689 = vmatpush1.bf16.msra.mxu0 0
  %1690 = vmatprep.subr.bf16.mxu0 0
  %1691 = vmatpush1.bf16.msra.mxu0 0
  %1692 = vmatprep.subr.bf16.mxu0 0
  %1693 = vmatpush1.bf16.msra.mxu0 0
  %1694 = vmatprep.mubr.bf16.mxu0 0
  %1695 = vmatmul.mubr.bf16.gmra.mrb[0].mxu0 %v1618
  %v1696 = vpop.f32.mrb[0].mxu0
  %v1697 = vadd.f32 0.0, %v1696
  %v1698 = vpop.f32.mrb[0].mxu0
  %v1699 = vpop.f32.mrb[0].mxu0
  %v1700 = vadd.f32 0.0, %v1699
  %v1701 = vpop.f32.mrb[0].mxu0
  %1702 = vdwg.mxu0
  %v1703 = vadd.f32 %v1612, %v1654
  %v1704 = vadd.f32 %v1615, %v1658
  %v1705 = vxor.u32 %v1703, 2147483648
  %v1706 = vxor.u32 %v1704, 2147483648
  %v1707 = vmul.f32 %v1705, 1.442695
  %v1708 = vpow.pop %v1707
  %v1709 = vmul.f32 %v1706, 1.442695
  %v1710 = vpow.pop %v1709
  %v1711 = vadd.f32 %v1708, 1.0
  %v1712 = vadd.f32 %v1710, 1.0
  %v1713 = vrcp.pop %v1711
  %v1714 = vmul.f32 1.0, %v1713
  %v1715 = vrcp.pop %v1712
  %v1716 = vmul.f32 1.0, %v1715
  %v1717 = vadd.f32 %v1613, %v1656
  %v1718 = vadd.f32 %v1616, %v1660
  %v1719 = vxor.u32 %v1717, 2147483648
  %v1720 = vxor.u32 %v1718, 2147483648
  %v1721 = vmul.f32 %v1719, 1.442695
  %v1722 = vpow.pop %v1721
  %v1723 = vmul.f32 %v1720, 1.442695
  %v1724 = vpow.pop %v1723
  %v1725 = vadd.f32 %v1722, 1.0
  %v1726 = vadd.f32 %v1724, 1.0
  %v1727 = vrcp.pop %v1725
  %v1728 = vmul.f32 1.0, %v1727
  %v1729 = vrcp.pop %v1726
  %v1730 = vmul.f32 1.0, %v1729
  %v1731 = vadd.f32 %v1697, %v741
  %v1732 = vadd.f32 %v1700, %v741
  %v1733 = vmul.f32 %v1714, %v1731
  %v1734 = vmul.f32 %v1716, %v1732
  %v1735 = vadd.f32 %v1614, %v1733
  %v1736 = vadd.f32 %v1617, %v1734
  %v1737 = vtanh.pop %v1735
  %v1738 = vtanh.pop %v1736
  %v1739 = vsub.f32 %v1594, %v1737
  %v1740 = vsub.f32 %v1595, %v1738
  %v1741 = vmul.f32 %v1728, %v1739
  %v1742 = vmul.f32 %v1730, %v1740
  %v1743 = vadd.f32 %v1737, %v1741
  %v1744 = vadd.f32 %v1738, %v1742
  %s1745 = sadd.s32 %s484, 6
  %v1746 = vstv %s1745
  %vm1747 = vcmp.lt.s32.totalorder %v1746, %v482
  %vm1748 = vcmp.lt.s32.totalorder %v1746, %v483
  %v1749 = vsel %vm1747, 1, 0
  %v1750 = vsel %vm1748, 1, 0
  %1751 = vset.pattern.permute.xlu0 0
  %1752 = vperm.xlu0 %1751, %v1749
  %v1753 = vpop.permute.xlu0 %1752
  %1754 = vset.pattern.permute.xlu0 0
  %1755 = vperm.xlu0 %1754, %v1750
  %v1756 = vpop.permute.xlu0 %1755
  %vm1757 = vcmp.eq.s32.totalorder %v1753, 1
  %vm1758 = vcmp.eq.s32.totalorder %v1756, 1
  %v1759 = vsel %vm1757, %v1743, %v1594
  %v1760 = vsel %vm1758, %v1744, %v1595
  %v1761 = vsel %vm1757, %v1743, 0.0
  %v1762 = vsel %vm1758, %v1744, 0.0
  %v1763 = vpack.c.bf16 %v1762, %v1761
  %v1765 = vunpack.c.l.b16 %v1763
  %v1766 = vunpack.c.h.b16 %v1763
  %v1767 = vpack.c.b16 %v1765, %v1765
  %v1768 = vpack.c.b16 %v1766, %v1766
  %s1771 = scalar_lea.vmem %s61, 48
  %1772 = vst [vmem:[%s1771] sm:$0xf] %v1767
  %1773 = vst [vmem:[%s1771 + $0x4] sm:$0xf] %v1768
  %s1774 = smul.u32 14, 3
  %s1775 = smul.addr %s1774, 8
  %s1776 = scalar_lea.vmem [#allocation2], %s1775
  %v1777 = vld [vmem:[%s1776] sm:$0xff]
  %v1778 = vld [vmem:[%s1776 + $0x8] sm:$0xff]
  %v1779 = vld [vmem:[%s1776 + $0x10] sm:$0xff]
  %v1780 = vld [vmem:[%s1776 + $0x18] sm:$0xff]
  %v1781 = vld [vmem:[%s1776 + $0x20] sm:$0xff]
  %v1782 = vld [vmem:[%s1776 + $0x28] sm:$0xff]
  %v1783 = vpack.c.bf16 %v1760, %v1759
  %1784 = vmatprep.subr.bf16.mxu0 %v578
  %1785 = vmatpush1.bf16.msra.mxu0 %v577
  %1786 = vmatprep.subr.bf16.mxu0 %v581
  %1787 = vmatpush1.bf16.msra.mxu0 %v580
  %1788 = vmatprep.subr.bf16.mxu0 %v584
  %1789 = vmatpush1.bf16.msra.mxu0 %v583
  %1790 = vmatprep.subr.bf16.mxu0 %v587
  %1791 = vmatpush1.bf16.msra.mxu0 %v586
  %1792 = vmatprep.subr.bf16.mxu0 %v590
  %1793 = vmatpush1.bf16.msra.mxu0 %v589
  %1794 = vmatprep.subr.bf16.mxu0 %v593
  %1795 = vmatpush1.bf16.msra.mxu0 %v592
  %1796 = vmatprep.subr.bf16.mxu0 %v596
  %1797 = vmatpush1.bf16.msra.mxu0 %v595
  %1798 = vmatprep.subr.bf16.mxu0 %v599
  %1799 = vmatpush1.bf16.msra.mxu0 %v598
  %1800 = vmatprep.subr.bf16.mxu0 0
  %1801 = vmatpush1.bf16.msra.mxu0 0
  %1802 = vmatprep.subr.bf16.mxu0 0
  %1803 = vmatpush1.bf16.msra.mxu0 0
  %1804 = vmatprep.subr.bf16.mxu0 0
  %1805 = vmatpush1.bf16.msra.mxu0 0
  %1806 = vmatprep.subr.bf16.mxu0 0
  %1807 = vmatpush1.bf16.msra.mxu0 0
  %1808 = vmatprep.subr.bf16.mxu0 0
  %1809 = vmatpush1.bf16.msra.mxu0 0
  %1810 = vmatprep.subr.bf16.mxu0 0
  %1811 = vmatpush1.bf16.msra.mxu0 0
  %1812 = vmatprep.subr.bf16.mxu0 0
  %1813 = vmatpush1.bf16.msra.mxu0 0
  %1814 = vmatprep.subr.bf16.mxu0 0
  %1815 = vmatpush1.bf16.msra.mxu0 0
  %1816 = vmatprep.mubr.bf16.mxu0 0
  %1817 = vmatmul.mubr.bf16.gmra.mrb[0].mxu0 %v1783
  %v1818 = vpop.f32.mrb[0].mxu0
  %v1819 = vadd.f32 0.0, %v1818
  %v1820 = vpop.f32.mrb[0].mxu0
  %v1821 = vadd.f32 0.0, %v1820
  %v1822 = vpop.f32.mrb[0].mxu0
  %v1823 = vadd.f32 0.0, %v1822
  %v1824 = vpop.f32.mrb[0].mxu0
  %v1825 = vadd.f32 0.0, %v1824
  %1826 = vdwg.mxu0
  %1827 = vmatprep.subr.bf16.mxu0 0
  %1828 = vmatpush1.bf16.msra.mxu0 %v579
  %1829 = vmatprep.subr.bf16.mxu0 0
  %1830 = vmatpush1.bf16.msra.mxu0 %v582
  %1831 = vmatprep.subr.bf16.mxu0 0
  %1832 = vmatpush1.bf16.msra.mxu0 %v585
  %1833 = vmatprep.subr.bf16.mxu0 0
  %1834 = vmatpush1.bf16.msra.mxu0 %v588
  %1835 = vmatprep.subr.bf16.mxu0 0
  %1836 = vmatpush1.bf16.msra.mxu0 %v591
  %1837 = vmatprep.subr.bf16.mxu0 0
  %1838 = vmatpush1.bf16.msra.mxu0 %v594
  %1839 = vmatprep.subr.bf16.mxu0 0
  %1840 = vmatpush1.bf16.msra.mxu0 %v597
  %1841 = vmatprep.subr.bf16.mxu0 0
  %1842 = vmatpush1.bf16.msra.mxu0 %v600
  %1843 = vmatprep.subr.bf16.mxu0 0
  %1844 = vmatpush1.bf16.msra.mxu0 0
  %1845 = vmatprep.subr.bf16.mxu0 0
  %1846 = vmatpush1.bf16.msra.mxu0 0
  %1847 = vmatprep.subr.bf16.mxu0 0
  %1848 = vmatpush1.bf16.msra.mxu0 0
  %1849 = vmatprep.subr.bf16.mxu0 0
  %1850 = vmatpush1.bf16.msra.mxu0 0
  %1851 = vmatprep.subr.bf16.mxu0 0
  %1852 = vmatpush1.bf16.msra.mxu0 0
  %1853 = vmatprep.subr.bf16.mxu0 0
  %1854 = vmatpush1.bf16.msra.mxu0 0
  %1855 = vmatprep.subr.bf16.mxu0 0
  %1856 = vmatpush1.bf16.msra.mxu0 0
  %1857 = vmatprep.subr.bf16.mxu0 0
  %1858 = vmatpush1.bf16.msra.mxu0 0
  %1859 = vmatprep.mubr.bf16.mxu0 0
  %1860 = vmatmul.mubr.bf16.gmra.mrb[0].mxu0 %v1783
  %v1861 = vpop.f32.mrb[0].mxu0
  %v1862 = vadd.f32 0.0, %v1861
  %v1863 = vpop.f32.mrb[0].mxu0
  %v1864 = vpop.f32.mrb[0].mxu0
  %v1865 = vadd.f32 0.0, %v1864
  %v1866 = vpop.f32.mrb[0].mxu0
  %1867 = vdwg.mxu0
  %v1868 = vadd.f32 %v1777, %v1819
  %v1869 = vadd.f32 %v1780, %v1823
  %v1870 = vxor.u32 %v1868, 2147483648
  %v1871 = vxor.u32 %v1869, 2147483648
  %v1872 = vmul.f32 %v1870, 1.442695
  %v1873 = vpow.pop %v1872
  %v1874 = vmul.f32 %v1871, 1.442695
  %v1875 = vpow.pop %v1874
  %v1876 = vadd.f32 %v1873, 1.0
  %v1877 = vadd.f32 %v1875, 1.0
  %v1878 = vrcp.pop %v1876
  %v1879 = vmul.f32 1.0, %v1878
  %v1880 = vrcp.pop %v1877
  %v1881 = vmul.f32 1.0, %v1880
  %v1882 = vadd.f32 %v1778, %v1821
  %v1883 = vadd.f32 %v1781, %v1825
  %v1884 = vxor.u32 %v1882, 2147483648
  %v1885 = vxor.u32 %v1883, 2147483648
  %v1886 = vmul.f32 %v1884, 1.442695
  %v1887 = vpow.pop %v1886
  %v1888 = vmul.f32 %v1885, 1.442695
  %v1889 = vpow.pop %v1888
  %v1890 = vadd.f32 %v1887, 1.0
  %v1891 = vadd.f32 %v1889, 1.0
  %v1892 = vrcp.pop %v1890
  %v1893 = vmul.f32 1.0, %v1892
  %v1894 = vrcp.pop %v1891
  %v1895 = vmul.f32 1.0, %v1894
  %v1896 = vadd.f32 %v1862, %v741
  %v1897 = vadd.f32 %v1865, %v741
  %v1898 = vmul.f32 %v1879, %v1896
  %v1899 = vmul.f32 %v1881, %v1897
  %v1900 = vadd.f32 %v1779, %v1898
  %v1901 = vadd.f32 %v1782, %v1899
  %v1902 = vtanh.pop %v1900
  %v1903 = vtanh.pop %v1901
  %v1904 = vsub.f32 %v1759, %v1902
  %v1905 = vsub.f32 %v1760, %v1903
  %v1906 = vmul.f32 %v1893, %v1904
  %v1907 = vmul.f32 %v1895, %v1905
  %v1908 = vadd.f32 %v1902, %v1906
  %v1909 = vadd.f32 %v1903, %v1907
  %s1910 = sadd.s32 %s484, 7
  %v1911 = vstv %s1910
  %vm1912 = vcmp.lt.s32.totalorder %v1911, %v482
  %vm1913 = vcmp.lt.s32.totalorder %v1911, %v483
  %v1914 = vsel %vm1912, 1, 0
  %v1915 = vsel %vm1913, 1, 0
  %1916 = vset.pattern.permute.xlu0 0
  %1917 = vperm.xlu0 %1916, %v1914
  %v1918 = vpop.permute.xlu0 %1917
  %1919 = vset.pattern.permute.xlu0 0
  %1920 = vperm.xlu0 %1919, %v1915
  %v1921 = vpop.permute.xlu0 %1920
  %vm1922 = vcmp.eq.s32.totalorder %v1918, 1
  %vm1923 = vcmp.eq.s32.totalorder %v1921, 1
  %v1924 = vsel %vm1922, %v1908, %v1759
  %v1925 = vsel %vm1923, %v1909, %v1760
  %v1926 = vsel %vm1922, %v1908, 0.0
  %v1927 = vsel %vm1923, %v1909, 0.0
  %v1928 = vpack.c.bf16 %v1927, %v1926
  %v1930 = vunpack.c.l.b16 %v1928
  %v1931 = vunpack.c.h.b16 %v1928
  %v1932 = vpack.c.b16 %v1930, %v1930
  %v1933 = vpack.c.b16 %v1931, %v1931
  %s1936 = scalar_lea.vmem %s61, 56
  %1937 = vst [vmem:[%s1936] sm:$0xf] %v1932
  %1938 = vst [vmem:[%s1936 + $0x4] sm:$0xf] %v1933
  %1939 = vst [vmem:[#allocation3] sm:$0xff] %v1924
  %1940 = vst [vmem:[#allocation3 + $0x8] sm:$0xff] %v1925
  // Predicated region
  $region34: #{encoder_rnn_forward.2} parent=0 // pred_check
    %p1941 = pneg %p65
  $region35: #{encoder_rnn_forward.2} parent=0 // pred_check_branch
    %1943 = sbr.rel (%p1941) target = $region37
  $region36: #{encoder_rnn_forward.2} parent=0 // pred_region
    %1944 = vst [vmem:[%s8] sm:$0xff] %v1924
    %1945 = vst [vmem:[%s8 + $0x8] sm:$0xff] %v1925
  $region37: #{encoder_rnn_forward.2} parent=0 // pred_fallthru
    _
  %s1946 = sadd.s32 0, 0
  %s1947 = smul.u32 16, %s1946
  %p1948 = scmp.lt.s32.totalorder %s1947, 15
  %s1949 = scalar_select %p1948, %s1947, 15
  %s1950 = smul.addr %s1949, 4
  %s1951 = scalar_lea.vmem %s7, %s1950
  // Predicated region
  $region38: #{encoder_rnn_forward.2} parent=0 // pred_check
    _
  $region39: #{encoder_rnn_forward.2} parent=0 // pred_check_branch
    %1953 = sbr.rel (0) target = $region41
  $region40: #{encoder_rnn_forward.2} parent=0 // pred_region
    %s1954 = sadd.s32 0, 0
    %s1955 = smul.u32 16, %s1954
  $region41: #{encoder_rnn_forward.2} parent=0 // pred_fallthru
    _
  // Predicated region
  $region42: #{encoder_rnn_forward.2} parent=0 // pred_check
    _
  $region43: #{encoder_rnn_forward.2} parent=0 // pred_check_branch
    %1957 = sbr.rel (0) target = $region45
  $region44: #{encoder_rnn_forward.2} parent=0 // pred_region
    _
  $region45: #{encoder_rnn_forward.2} parent=0 // pred_fallthru
    _
  // Predicated region
  $region46: #{encoder_rnn_forward.2} parent=0 // pred_check
    _
  $region47: #{encoder_rnn_forward.2} parent=0 // pred_check_branch
    %1959 = sbr.rel (0) target = $region49
  $region48: #{encoder_rnn_forward.2} parent=0 // pred_region
    %s1960 = sadd.s32 0, 0
    %s1961 = smul.u32 16, %s1960
    %p1962 = scmp.lt.s32.totalorder %s1961, 15
    %s1963 = scalar_select %p1962, %s1961, 15
    %s1964 = smul.addr %s1963, 4
    %s1965 = scalar_lea.vmem %s7, %s1964
  $region49: #{encoder_rnn_forward.2} parent=0 // pred_fallthru
    _
  // Predicated region
  $region50: #{encoder_rnn_forward.2} parent=0 // pred_check
    _
  $region51: #{encoder_rnn_forward.2} parent=0 // pred_check_branch
    %1967 = sbr.rel (0) target = $region53
  $region52: #{encoder_rnn_forward.2} parent=0 // pred_region
    _
  $region53: #{encoder_rnn_forward.2} parent=0 // pred_fallthru
    _

</llo_original>
